<compile_context>
chip_gen: v5e
topology: v5e:2x2
jax: 0.10.0
libtpu: 0.0.40
codegen_flags: <defaults>
</compile_context>

<pallas_src>
import functools

import jax
import jax.numpy as jnp
from jax import lax
from jax.experimental import pallas as pl
from jax.experimental.pallas import tpu as pltpu

dim_u = 1
dim_xc = 0
dim_ue = dim_xc + dim_u        # 1
dim_x = 4
dim_xe = dim_x + dim_xc        # 4
HIDDEN = 20
OUT = dim_xe * dim_ue          # 4

LANES = 128
GROUPS = LANES // dim_xe       # 32 samples packed per 128-lane row
HIDDEN_E = GROUPS * HIDDEN     # 640 expanded hidden lanes


def _round_up(x, m):
    return (x + m - 1) // m * m


def snn_kernel(x_ref, w1_ref, b1_ref, w2_ref, b2_ref, o_ref):
    # Every tile is fully lane- and sublane-dense (no masked loads/stores,
    # no dead sublanes).
    x = x_ref[...]                                                # (TR, 128)
    h = jnp.dot(x, w1_ref[...],
                preferred_element_type=jnp.float32,
                precision=lax.Precision.HIGHEST) + b1_ref[...]    # (TR, 640)
    h = jnp.tanh(h)
    o = jnp.dot(h, w2_ref[...],
                preferred_element_type=jnp.float32,
                precision=lax.Precision.HIGHEST) + b2_ref[...]    # (TR, 128)
    o_ref[...] = o.astype(o_ref.dtype)


@functools.partial(jax.jit, static_argnames=("tr",))
def snn_forward(x, w1, b1, w2, b2, tr=2048):
    """x: (B, dim_xe) f32 -> (B, dim_xe, dim_ue) f32.

    Same math as PyTorch SNN.forward: tanh(x @ W1 + b1) @ W2 + b2, reshaped.
    Weights are stored as (in_features, out_features) (i.e. PyTorch W.T).
    `tr` is the row tile; one row packs 32 samples, so tr=2048 <=> 64K-sample
    batch tiles.
    """
    B = x.shape[0]

    # Block-expanded (block-diagonal) weights: built once, tiny, constant
    # under jit.  kron(eye(32), W) places one copy of W per 4-lane group.
    eye = jnp.eye(GROUPS, dtype=jnp.float32)
    w1e = jnp.kron(eye, w1.astype(jnp.float32))               # (128, 640)
    w2e = jnp.kron(eye, w2.astype(jnp.float32))               # (640, 128)
    b1e = jnp.tile(b1.astype(jnp.float32), GROUPS)[None, :]   # (1, 640)
    b2e = jnp.tile(b2.astype(jnp.float32), GROUPS)[None, :]   # (1, 128)

    # Zero-cost lane packing of the batch: (B,4) -> flat -> (R, 128).
    flat = x.astype(jnp.float32).reshape(-1)                  # (B*4,)
    rows = _round_up(B * dim_xe, LANES) // LANES
    tr_eff = min(tr, _round_up(rows, 8))
    rows_pad = _round_up(rows, tr_eff)
    pad = rows_pad * LANES - B * dim_xe
    if pad:
        flat = jnp.concatenate([flat, jnp.zeros((pad,), jnp.float32)])
    xg = flat.reshape(rows_pad, LANES)

    grid = (rows_pad // tr_eff,)
    cost = pl.CostEstimate(
        flops=2 * rows_pad * (LANES * HIDDEN_E + HIDDEN_E * LANES)
        + rows_pad * (HIDDEN_E + LANES),
        transcendentals=rows_pad * HIDDEN_E,
        bytes_accessed=4 * (2 * rows_pad * LANES
                            + 2 * LANES * HIDDEN_E + HIDDEN_E + LANES),
    )

    og = pl.pallas_call(
        snn_kernel,
        out_shape=jax.ShapeDtypeStruct((rows_pad, LANES), jnp.float32),
        grid=grid,
        in_specs=[
            pl.BlockSpec((tr_eff, LANES), lambda i: (i, 0)),    # x rows (pipelined)
            pl.BlockSpec((LANES, HIDDEN_E), lambda i: (0, 0)),  # W1 expanded (resident)
            pl.BlockSpec((1, HIDDEN_E), lambda i: (0, 0)),      # b1 expanded
            pl.BlockSpec((HIDDEN_E, LANES), lambda i: (0, 0)),  # W2 expanded (resident)
            pl.BlockSpec((1, LANES), lambda i: (0, 0)),         # b2 expanded
        ],
        out_specs=pl.BlockSpec((tr_eff, LANES), lambda i: (i, 0)),
        compiler_params=pltpu.CompilerParams(
            dimension_semantics=("parallel",),   # batch tiles -> both TCs on v7x
            vmem_limit_bytes=40 << 20,           # ~16-20 MiB used; safe on v7x's 64 MiB
        ),
        cost_estimate=cost,
    )(xg, w1e, b1e, w2e, b2e)

    s_flat = og.reshape(-1)[: B * dim_xe].reshape(B, OUT)
    return s_flat.reshape(B, dim_xe, dim_ue)     # == view(-1, dim_xe, dim_ue)


def snn_reference(x, w1, b1, w2, b2):
    """Pure-JAX reference of the same math (f32, HIGHEST precision)."""
    h = jnp.tanh(jnp.dot(x, w1, precision=lax.Precision.HIGHEST) + b1[None, :])
    o = jnp.dot(h, w2, precision=lax.Precision.HIGHEST) + b2[None, :]
    return o.reshape(-1, dim_xe, dim_ue)


def init_params(key):
    """Deterministic init mimicking PyTorch nn.Linear default U[-1/sqrt(fan_in), +]."""
    k1, k2, k3, k4 = jax.random.split(key, 4)
    bound1 = 1.0 / jnp.sqrt(jnp.float32(dim_xe))
    bound2 = 1.0 / jnp.sqrt(jnp.float32(HIDDEN))
    w1 = jax.random.uniform(k1, (dim_xe, HIDDEN), jnp.float32, -bound1, bound1)
    b1 = jax.random.uniform(k2, (HIDDEN,), jnp.float32, -bound1, bound1)
    w2 = jax.random.uniform(k3, (HIDDEN, OUT), jnp.float32, -bound2, bound2)
    b2 = jax.random.uniform(k4, (OUT,), jnp.float32, -bound2, bound2)
    return w1, b1, w2, b2


if __name__ == "__main__":
    key = jax.random.PRNGKey(0)
    kx, kp = jax.random.split(key)
    w1, b1, w2, b2 = init_params(kp)

    # Small batch (single grid step, heavy padding path).
    B = 8
    x = jax.random.normal(kx, (B, dim_xe), jnp.float32)
    s = jax.block_until_ready(snn_forward(x, w1, b1, w2, b2))
    ref = snn_reference(x, w1, b1, w2, b2)
    assert s.shape == (B, dim_xe, dim_ue), s.shape
    assert jnp.allclose(s, ref, atol=1e-4, rtol=1e-4), float(jnp.max(jnp.abs(s - ref)))

    # Batch that exercises multiple grid steps and a ragged remainder
    # (tr=8 rows forces a 2-step grid at this small size).
    B2 = 300
    x2 = jax.random.normal(kx, (B2, dim_xe), jnp.float32)
    s2 = jax.block_until_ready(snn_forward(x2, w1, b1, w2, b2, tr=8))
    ref2 = snn_reference(x2, w1, b1, w2, b2)
    assert s2.shape == (B2, dim_xe, dim_ue), s2.shape
    assert jnp.allclose(s2, ref2, atol=1e-4, rtol=1e-4), float(jnp.max(jnp.abs(s2 - ref2)))

    print("KERNEL_OK")
</pallas_src>

<mosaic_0001>
module attributes {stable_mosaic.version = 11 : i64} {
  func.func @snn_kernel(%arg0: i32, %arg1: memref<8x128xf32, #tpu.memory_space<vmem>>, %arg2: memref<128x640xf32, #tpu.memory_space<vmem>>, %arg3: memref<1x640xf32, #tpu.memory_space<vmem>>, %arg4: memref<640x128xf32, #tpu.memory_space<vmem>>, %arg5: memref<1x128xf32, #tpu.memory_space<vmem>>, %arg6: memref<8x128xf32, #tpu.memory_space<vmem>>) attributes {dimension_semantics = [#tpu.dimension_semantics<parallel>], iteration_bounds = array<i64: 1>, scalar_prefetch = 0 : i64, scratch_operands = 0 : i64, tpu.core_type = #tpu.core_type<tc>, window_params = [{transform_indices = @transform_0, window_bounds = array<i64: 8, 128>}, {pipeline_mode = #tpu.pipeline_mode<synchronous>, transform_indices = @transform_1, window_bounds = array<i64: 128, 640>}, {pipeline_mode = #tpu.pipeline_mode<synchronous>, transform_indices = @transform_2, window_bounds = array<i64: 1, 640>}, {pipeline_mode = #tpu.pipeline_mode<synchronous>, transform_indices = @transform_3, window_bounds = array<i64: 640, 128>}, {pipeline_mode = #tpu.pipeline_mode<synchronous>, transform_indices = @transform_4, window_bounds = array<i64: 1, 128>}, {transform_indices = @transform_5, window_bounds = array<i64: 8, 128>}]} {
    %c0 = arith.constant 0 : index
    %c0_0 = arith.constant 0 : index
    %0 = vector.load %arg1[%c0, %c0_0] : memref<8x128xf32, #tpu.memory_space<vmem>>, vector<8x128xf32>
    %c0_1 = arith.constant 0 : index
    %c0_2 = arith.constant 0 : index
    %1 = vector.load %arg2[%c0_1, %c0_2] : memref<128x640xf32, #tpu.memory_space<vmem>>, vector<128x640xf32>
    %cst = arith.constant dense<0.000000e+00> : vector<8x640xf32>
    %2 = tpu.matmul %0, %1, %cst {dimension_numbers = #tpu.dot_dimension_numbers<[1], [0], [0], [1], [0, 0, 1, 1], [], []>, precision = #tpu.contract_precision<fp32>} : vector<8x128xf32>, vector<128x640xf32>, vector<8x640xf32> -> vector<8x640xf32>
    %c0_3 = arith.constant 0 : index
    %c0_4 = arith.constant 0 : index
    %3 = vector.load %arg3[%c0_3, %c0_4] : memref<1x640xf32, #tpu.memory_space<vmem>>, vector<1x640xf32>
    %4 = vector.broadcast %3 : vector<1x640xf32> to vector<8x640xf32>
    %5 = arith.addf %2, %4 : vector<8x640xf32>
    %6 = math.tanh %5 : vector<8x640xf32>
    %c0_5 = arith.constant 0 : index
    %c0_6 = arith.constant 0 : index
    %7 = vector.load %arg4[%c0_5, %c0_6] : memref<640x128xf32, #tpu.memory_space<vmem>>, vector<640x128xf32>
    %cst_7 = arith.constant dense<0.000000e+00> : vector<8x128xf32>
    %8 = tpu.matmul %6, %7, %cst_7 {dimension_numbers = #tpu.dot_dimension_numbers<[1], [0], [0], [1], [0, 0, 1, 1], [], []>, precision = #tpu.contract_precision<fp32>} : vector<8x640xf32>, vector<640x128xf32>, vector<8x128xf32> -> vector<8x128xf32>
    %c0_8 = arith.constant 0 : index
    %c0_9 = arith.constant 0 : index
    %9 = vector.load %arg5[%c0_8, %c0_9] : memref<1x128xf32, #tpu.memory_space<vmem>>, vector<1x128xf32>
    %10 = vector.broadcast %9 : vector<1x128xf32> to vector<8x128xf32>
    %11 = arith.addf %8, %10 : vector<8x128xf32>
    %c0_10 = arith.constant 0 : index
    %c0_11 = arith.constant 0 : index
    %12 = vector.load %arg6[%c0_10, %c0_11] : memref<8x128xf32, #tpu.memory_space<vmem>>, vector<8x128xf32>
    tpu.vector_store %arg6[%c0_10, %c0_11], %11 {strides = array<i32>} : memref<8x128xf32, #tpu.memory_space<vmem>>, vector<8x128xf32>,
    return
  }
  func.func @transform_0(%arg0: i32) -> (i32, i32) {
    %c0_i32 = arith.constant 0 : i32
    %c0_i32_0 = arith.constant 0 : i32
    return %arg0, %c0_i32 : i32, i32
  }
  func.func @transform_1(%arg0: i32) -> (i32, i32) {
    %c0_i32 = arith.constant 0 : i32
    %c0_i32_0 = arith.constant 0 : i32
    %c0_i32_1 = arith.constant 0 : i32
    return %c0_i32, %c0_i32_0 : i32, i32
  }
  func.func @transform_2(%arg0: i32) -> (i32, i32) {
    %c0_i32 = arith.constant 0 : i32
    %c0_i32_0 = arith.constant 0 : i32
    %c0_i32_1 = arith.constant 0 : i32
    return %c0_i32, %c0_i32_0 : i32, i32
  }
  func.func @transform_3(%arg0: i32) -> (i32, i32) {
    %c0_i32 = arith.constant 0 : i32
    %c0_i32_0 = arith.constant 0 : i32
    %c0_i32_1 = arith.constant 0 : i32
    return %c0_i32, %c0_i32_0 : i32, i32
  }
  func.func @transform_4(%arg0: i32) -> (i32, i32) {
    %c0_i32 = arith.constant 0 : i32
    %c0_i32_0 = arith.constant 0 : i32
    %c0_i32_1 = arith.constant 0 : i32
    return %c0_i32, %c0_i32_0 : i32, i32
  }
  func.func @transform_5(%arg0: i32) -> (i32, i32) {
    %c0_i32 = arith.constant 0 : i32
    %c0_i32_0 = arith.constant 0 : i32
    return %arg0, %c0_i32 : i32, i32
  }
}

</mosaic_0001>

<llo_original>
// kernel: tile.13
$region0: #{tile.13}
  #allocation0 [shape = 's32[1]{0}', space=sflag, size = 0x4, scoped, tag = 'scoped memory for tile.13']
  %s0 = inlined_call_operand.vmem [shape: f32[20], index: 0, kind: input, shape index: {}]
  %s1 = inlined_call_operand.vmem [shape: f32[32,20], index: 1, kind: output, shape index: {}]
  // Predicated region
  $region2: #{tile.13} parent=0 // pred_check
    _
  $region3: #{tile.13} parent=0 // pred_check_branch
    %3 = sbr.rel (0) target = $region5
  $region4: #{tile.13} parent=0 // pred_region
    _
  $region5: #{tile.13} parent=0 // pred_fallthru
    _
  %v4 = vld [vmem:[%s0] ss:$0 sm:$0xff]
  %5 = vst [vmem:[%s1] sm:$0xff] %v4
  %s6 = scalar_lea.vmem %s1, 8
  %7 = vst [vmem:[%s6] sm:$0xff] %v4
  %s8 = scalar_lea.vmem %s1, 16
  %9 = vst [vmem:[%s8] sm:$0xff] %v4
  %s10 = scalar_lea.vmem %s1, 24
  %11 = vst [vmem:[%s10] sm:$0xff] %v4

// kernel: tile.14
$region0: #{tile.14}
  %s0 = inlined_call_operand.vmem [shape: f32[32,20], index: 0, kind: input, shape index: {}]
  %s1 = inlined_call_operand.vmem [shape: f32[1,640], index: 1, kind: output, shape index: {}]
  $region1: #{tile.14} parent=0
    #allocation0 [shape = 'u8[20480]{0}', space=vmem, size = 0x5000, scoped, tag = 'scoped mem for output reshape']
    %v2 = vld [vmem:[%s0] sm:$0x1]
    %vm3 = vcmask 162816
    %4 = vst.msk [vmem:[#allocation0] sm:$0x1] %vm3, %v2
    %s5 = scalar_lea.vmem %s0, 19
    %v6 = vld [vmem:[%s5] sm:$0x1]
    %s7 = scalar_lea.vmem %s0, 19
    %v8 = vld [vmem:[%s7] sm:$0x1]
    %vm9 = vcmask 31744
    %v10 = vsel %vm9, %v8, %v6
    %11 = vrot.lane.b32.xlu0 %v10, 124
    %v12 = vpop.permute.xlu0 %11
    %vm13 = vcmask 130048
    %s14 = scalar_lea.vmem [#allocation0], 24
    %15 = vst.msk [vmem:[%s14] sm:$0x1] %vm13, %v12
    %vm16 = vcmask 1048544
    %s17 = scalar_lea.vmem [#allocation0], 16
    %18 = vst.msk [vmem:[%s17] sm:$0x1] %vm16, %v12
    %s19 = scalar_lea.vmem %s0, 6
    %v20 = vld [vmem:[%s19] sm:$0x1]
    %s21 = scalar_lea.vmem %s0, 6
    %v22 = vld [vmem:[%s21] sm:$0x1]
    %vm23 = vcmask 64512
    %v24 = vsel %vm23, %v22, %v20
    %25 = vrot.lane.b32.xlu0 %v24, 120
    %v26 = vpop.permute.xlu0 %25
    %vm27 = vcmask 97280
    %s28 = scalar_lea.vmem [#allocation0], 8
    %29 = vst.msk [vmem:[%s28] sm:$0x1] %vm27, %v26
    %vm30 = vcmask 1048512
    %31 = vst.msk [vmem:[#allocation0] sm:$0x1] %vm30, %v26
    %s32 = scalar_lea.vmem %s0, 25
    %v33 = vld [vmem:[%s32] sm:$0x1]
    %s34 = scalar_lea.vmem %s0, 25
    %v35 = vld [vmem:[%s34] sm:$0x1]
    %vm36 = vcmask 97280
    %v37 = vsel %vm36, %v35, %v33
    %38 = vrot.lane.b32.xlu0 %v37, 116
    %v39 = vpop.permute.xlu0 %38
    %vm40 = vcmask 64512
    %s41 = scalar_lea.vmem [#allocation0], 32
    %42 = vst.msk [vmem:[%s41] sm:$0x1] %vm40, %v39
    %vm43 = vcmask 1048480
    %s44 = scalar_lea.vmem [#allocation0], 24
    %45 = vst.msk [vmem:[%s44] sm:$0x1] %vm43, %v39
    %s46 = scalar_lea.vmem %s0, 12
    %v47 = vld [vmem:[%s46] sm:$0x1]
    %s48 = scalar_lea.vmem %s0, 12
    %v49 = vld [vmem:[%s48] sm:$0x1]
    %vm50 = vcmask 130048
    %v51 = vsel %vm50, %v49, %v47
    %52 = vrot.lane.b32.xlu0 %v51, 112
    %v53 = vpop.permute.xlu0 %52
    %vm54 = vcmask 31744
    %s55 = scalar_lea.vmem [#allocation0], 16
    %56 = vst.msk [vmem:[%s55] sm:$0x1] %vm54, %v53
    %vm57 = vcmask 1048448
    %s58 = scalar_lea.vmem [#allocation0], 8
    %59 = vst.msk [vmem:[%s58] sm:$0x1] %vm57, %v53
    %s60 = scalar_lea.vmem %s0, 31
    %v61 = vld [vmem:[%s60] sm:$0x1]
    %62 = vrot.lane.b32.xlu0 %v61, 108
    %v63 = vpop.permute.xlu0 %62
    %vm64 = vcmask 1048416
    %s65 = scalar_lea.vmem [#allocation0], 32
    %66 = vst.msk [vmem:[%s65] sm:$0x1] %vm64, %v63
    %s67 = scalar_lea.vmem %s0, 18
    %v68 = vld [vmem:[%s67] sm:$0x1]
    %69 = vrot.lane.b32.xlu0 %v68, 104
    %v70 = vpop.permute.xlu0 %69
    %vm71 = vcmask 1015616
    %s72 = scalar_lea.vmem [#allocation0], 16
    %73 = vst.msk [vmem:[%s72] sm:$0x1] %vm71, %v70
    %s74 = scalar_lea.vmem %s0, 5
    %v75 = vld [vmem:[%s74] sm:$0x1]
    %76 = vrot.lane.b32.xlu0 %v75, 100
    %v77 = vpop.permute.xlu0 %76
    %vm78 = vcmask 982816
    %79 = vst.msk [vmem:[#allocation0] sm:$0x1] %vm78, %v77
    %s80 = scalar_lea.vmem %s0, 24
    %v81 = vld [vmem:[%s80] sm:$0x1]
    %82 = vrot.lane.b32.xlu0 %v81, 96
    %v83 = vpop.permute.xlu0 %82
    %vm84 = vcmask 950016
    %s85 = scalar_lea.vmem [#allocation0], 24
    %86 = vst.msk [vmem:[%s85] sm:$0x1] %vm84, %v83
    %s87 = scalar_lea.vmem %s0, 11
    %v88 = vld [vmem:[%s87] sm:$0x1]
    %89 = vrot.lane.b32.xlu0 %v88, 92
    %v90 = vpop.permute.xlu0 %89
    %vm91 = vcmask 917216
    %s92 = scalar_lea.vmem [#allocation0], 8
    %93 = vst.msk [vmem:[%s92] sm:$0x1] %vm91, %v90
    %s94 = scalar_lea.vmem %s0, 30
    %v95 = vld [vmem:[%s94] sm:$0x1]
    %96 = vrot.lane.b32.xlu0 %v95, 88
    %v97 = vpop.permute.xlu0 %96
    %vm98 = vcmask 884416
    %s99 = scalar_lea.vmem [#allocation0], 32
    %100 = vst.msk [vmem:[%s99] sm:$0x1] %vm98, %v97
    %s101 = scalar_lea.vmem %s0, 17
    %v102 = vld [vmem:[%s101] sm:$0x1]
    %103 = vrot.lane.b32.xlu0 %v102, 84
    %v104 = vpop.permute.xlu0 %103
    %vm105 = vcmask 851616
    %s106 = scalar_lea.vmem [#allocation0], 16
    %107 = vst.msk [vmem:[%s106] sm:$0x1] %vm105, %v104
    %s108 = scalar_lea.vmem %s0, 4
    %v109 = vld [vmem:[%s108] sm:$0x1]
    %110 = vrot.lane.b32.xlu0 %v109, 80
    %v111 = vpop.permute.xlu0 %110
    %vm112 = vcmask 818816
    %113 = vst.msk [vmem:[#allocation0] sm:$0x1] %vm112, %v111
    %s114 = scalar_lea.vmem %s0, 23
    %v115 = vld [vmem:[%s114] sm:$0x1]
    %116 = vrot.lane.b32.xlu0 %v115, 76
    %v117 = vpop.permute.xlu0 %116
    %vm118 = vcmask 786016
    %s119 = scalar_lea.vmem [#allocation0], 24
    %120 = vst.msk [vmem:[%s119] sm:$0x1] %vm118, %v117
    %s121 = scalar_lea.vmem %s0, 10
    %v122 = vld [vmem:[%s121] sm:$0x1]
    %123 = vrot.lane.b32.xlu0 %v122, 72
    %v124 = vpop.permute.xlu0 %123
    %vm125 = vcmask 753216
    %s126 = scalar_lea.vmem [#allocation0], 8
    %127 = vst.msk [vmem:[%s126] sm:$0x1] %vm125, %v124
    %s128 = scalar_lea.vmem %s0, 29
    %v129 = vld [vmem:[%s128] sm:$0x1]
    %130 = vrot.lane.b32.xlu0 %v129, 68
    %v131 = vpop.permute.xlu0 %130
    %vm132 = vcmask 720416
    %s133 = scalar_lea.vmem [#allocation0], 32
    %134 = vst.msk [vmem:[%s133] sm:$0x1] %vm132, %v131
    %s135 = scalar_lea.vmem %s0, 16
    %v136 = vld [vmem:[%s135] sm:$0x1]
    %137 = vrot.lane.b32.xlu0 %v136, 64
    %v138 = vpop.permute.xlu0 %137
    %vm139 = vcmask 687616
    %s140 = scalar_lea.vmem [#allocation0], 16
    %141 = vst.msk [vmem:[%s140] sm:$0x1] %vm139, %v138
    %s142 = scalar_lea.vmem %s0, 3
    %v143 = vld [vmem:[%s142] sm:$0x1]
    %144 = vrot.lane.b32.xlu0 %v143, 60
    %v145 = vpop.permute.xlu0 %144
    %vm146 = vcmask 654816
    %147 = vst.msk [vmem:[#allocation0] sm:$0x1] %vm146, %v145
    %s148 = scalar_lea.vmem %s0, 22
    %v149 = vld [vmem:[%s148] sm:$0x1]
    %150 = vrot.lane.b32.xlu0 %v149, 56
    %v151 = vpop.permute.xlu0 %150
    %vm152 = vcmask 622016
    %s153 = scalar_lea.vmem [#allocation0], 24
    %154 = vst.msk [vmem:[%s153] sm:$0x1] %vm152, %v151
    %s155 = scalar_lea.vmem %s0, 9
    %v156 = vld [vmem:[%s155] sm:$0x1]
    %157 = vrot.lane.b32.xlu0 %v156, 52
    %v158 = vpop.permute.xlu0 %157
    %vm159 = vcmask 589216
    %s160 = scalar_lea.vmem [#allocation0], 8
    %161 = vst.msk [vmem:[%s160] sm:$0x1] %vm159, %v158
    %s162 = scalar_lea.vmem %s0, 28
    %v163 = vld [vmem:[%s162] sm:$0x1]
    %164 = vrot.lane.b32.xlu0 %v163, 48
    %v165 = vpop.permute.xlu0 %164
    %vm166 = vcmask 556416
    %s167 = scalar_lea.vmem [#allocation0], 32
    %168 = vst.msk [vmem:[%s167] sm:$0x1] %vm166, %v165
    %s169 = scalar_lea.vmem %s0, 15
    %v170 = vld [vmem:[%s169] sm:$0x1]
    %171 = vrot.lane.b32.xlu0 %v170, 44
    %v172 = vpop.permute.xlu0 %171
    %vm173 = vcmask 523616
    %s174 = scalar_lea.vmem [#allocation0], 16
    %175 = vst.msk [vmem:[%s174] sm:$0x1] %vm173, %v172
    %s176 = scalar_lea.vmem %s0, 2
    %v177 = vld [vmem:[%s176] sm:$0x1]
    %178 = vrot.lane.b32.xlu0 %v177, 40
    %v179 = vpop.permute.xlu0 %178
    %vm180 = vcmask 490816
    %181 = vst.msk [vmem:[#allocation0] sm:$0x1] %vm180, %v179
    %s182 = scalar_lea.vmem %s0, 21
    %v183 = vld [vmem:[%s182] sm:$0x1]
    %184 = vrot.lane.b32.xlu0 %v183, 36
    %v185 = vpop.permute.xlu0 %184
    %vm186 = vcmask 458016
    %s187 = scalar_lea.vmem [#allocation0], 24
    %188 = vst.msk [vmem:[%s187] sm:$0x1] %vm186, %v185
    %s189 = scalar_lea.vmem %s0, 8
    %v190 = vld [vmem:[%s189] sm:$0x1]
    %191 = vrot.lane.b32.xlu0 %v190, 32
    %v192 = vpop.permute.xlu0 %191
    %vm193 = vcmask 425216
    %s194 = scalar_lea.vmem [#allocation0], 8
    %195 = vst.msk [vmem:[%s194] sm:$0x1] %vm193, %v192
    %s196 = scalar_lea.vmem %s0, 27
    %v197 = vld [vmem:[%s196] sm:$0x1]
    %198 = vrot.lane.b32.xlu0 %v197, 28
    %v199 = vpop.permute.xlu0 %198
    %vm200 = vcmask 392416
    %s201 = scalar_lea.vmem [#allocation0], 32
    %202 = vst.msk [vmem:[%s201] sm:$0x1] %vm200, %v199
    %s203 = scalar_lea.vmem %s0, 14
    %v204 = vld [vmem:[%s203] sm:$0x1]
    %205 = vrot.lane.b32.xlu0 %v204, 24
    %v206 = vpop.permute.xlu0 %205
    %vm207 = vcmask 359616
    %s208 = scalar_lea.vmem [#allocation0], 16
    %209 = vst.msk [vmem:[%s208] sm:$0x1] %vm207, %v206
    %s210 = scalar_lea.vmem %s0, 1
    %v211 = vld [vmem:[%s210] sm:$0x1]
    %212 = vrot.lane.b32.xlu0 %v211, 20
    %v213 = vpop.permute.xlu0 %212
    %vm214 = vcmask 326816
    %215 = vst.msk [vmem:[#allocation0] sm:$0x1] %vm214, %v213
    %s216 = scalar_lea.vmem %s0, 20
    %v217 = vld [vmem:[%s216] sm:$0x1]
    %218 = vrot.lane.b32.xlu0 %v217, 16
    %v219 = vpop.permute.xlu0 %218
    %vm220 = vcmask 294016
    %s221 = scalar_lea.vmem [#allocation0], 24
    %222 = vst.msk [vmem:[%s221] sm:$0x1] %vm220, %v219
    %s223 = scalar_lea.vmem %s0, 7
    %v224 = vld [vmem:[%s223] sm:$0x1]
    %225 = vrot.lane.b32.xlu0 %v224, 12
    %v226 = vpop.permute.xlu0 %225
    %vm227 = vcmask 261216
    %s228 = scalar_lea.vmem [#allocation0], 8
    %229 = vst.msk [vmem:[%s228] sm:$0x1] %vm227, %v226
    %s230 = scalar_lea.vmem %s0, 26
    %v231 = vld [vmem:[%s230] sm:$0x1]
    %232 = vrot.lane.b32.xlu0 %v231, 8
    %v233 = vpop.permute.xlu0 %232
    %vm234 = vcmask 228416
    %s235 = scalar_lea.vmem [#allocation0], 32
    %236 = vst.msk [vmem:[%s235] sm:$0x1] %vm234, %v233
    %s237 = scalar_lea.vmem %s0, 13
    %v238 = vld [vmem:[%s237] sm:$0x1]
    %239 = vrot.lane.b32.xlu0 %v238, 4
    %v240 = vpop.permute.xlu0 %239
    %vm241 = vcmask 195616
    %s242 = scalar_lea.vmem [#allocation0], 16
    %243 = vst.msk [vmem:[%s242] sm:$0x1] %vm241, %v240
    %s245 = ssub.s32 2, 1
    %v246 = vld [vmem:[#allocation0] sm:%s245]
    %s248 = ssub.s32 2, 1
    %249 = vst [vmem:[%s1] sm:%s248] %v246
    %s250 = scalar_lea.vmem [#allocation0], 8
    %v251 = vld [vmem:[%s250] sm:%s245]
    %s253 = ssub.s32 2, 1
    %s254 = scalar_lea.vmem %s1, 1
    %255 = vst [vmem:[%s254] sm:%s253] %v251
    %s256 = scalar_lea.vmem [#allocation0], 16
    %v257 = vld [vmem:[%s256] sm:%s245]
    %s259 = ssub.s32 2, 1
    %s260 = scalar_lea.vmem %s1, 2
    %261 = vst [vmem:[%s260] sm:%s259] %v257
    %s262 = scalar_lea.vmem [#allocation0], 24
    %v263 = vld [vmem:[%s262] sm:%s245]
    %s265 = ssub.s32 2, 1
    %s266 = scalar_lea.vmem %s1, 3
    %267 = vst [vmem:[%s266] sm:%s265] %v263
    %s268 = scalar_lea.vmem [#allocation0], 32
    %v269 = vld [vmem:[%s268] sm:%s245]
    %s271 = ssub.s32 2, 1
    %s272 = scalar_lea.vmem %s1, 4
    %273 = vst [vmem:[%s272] sm:%s271] %v269

// kernel: tile.18
$region0: #{tile.18}
  #allocation0 [shape = 's32[1]{0}', space=sflag, size = 0x4, scoped, tag = 'scoped memory for tile.18']
  %s0 = inlined_call_operand.vmem [shape: f32[4], index: 0, kind: input, shape index: {}]
  %s1 = inlined_call_operand.vmem [shape: f32[32,4], index: 1, kind: output, shape index: {}]
  // Predicated region
  $region2: #{tile.18} parent=0 // pred_check
    _
  $region3: #{tile.18} parent=0 // pred_check_branch
    %3 = sbr.rel (0) target = $region5
  $region4: #{tile.18} parent=0 // pred_region
    _
  $region5: #{tile.18} parent=0 // pred_fallthru
    _
  %v4 = vld [vmem:[%s0] ss:$0 sm:$0xff]
  %5 = vst [vmem:[%s1] sm:$0xff] %v4
  %s6 = scalar_lea.vmem %s1, 8
  %7 = vst [vmem:[%s6] sm:$0xff] %v4
  %s8 = scalar_lea.vmem %s1, 16
  %9 = vst [vmem:[%s8] sm:$0xff] %v4
  %s10 = scalar_lea.vmem %s1, 24
  %11 = vst [vmem:[%s10] sm:$0xff] %v4

// kernel: tile.19
$region0: #{tile.19}
  %s0 = inlined_call_operand.vmem [shape: f32[32,4], index: 0, kind: input, shape index: {}]
  %s1 = inlined_call_operand.vmem [shape: f32[1,128], index: 1, kind: output, shape index: {}]
  $region1: #{tile.19} parent=0
    #allocation0 [shape = 'u8[4096]{0}', space=vmem, size = 0x1000, scoped, tag = 'scoped mem for output reshape']
    %v2 = vld [vmem:[%s0] sm:$0x1]
    %vm3 = vcmask 31744
    %4 = vst.msk [vmem:[#allocation0] sm:$0x1] %vm3, %v2
    %s5 = scalar_lea.vmem %s0, 31
    %v6 = vld [vmem:[%s5] sm:$0x1]
    %7 = vrot.lane.b32.xlu0 %v6, 124
    %v8 = vpop.permute.xlu0 %7
    %vm9 = vcmask 1048544
    %10 = vst.msk [vmem:[#allocation0] sm:$0x1] %vm9, %v8
    %s11 = scalar_lea.vmem %s0, 30
    %v12 = vld [vmem:[%s11] sm:$0x1]
    %13 = vrot.lane.b32.xlu0 %v12, 120
    %v14 = vpop.permute.xlu0 %13
    %vm15 = vcmask 1015744
    %16 = vst.msk [vmem:[#allocation0] sm:$0x1] %vm15, %v14
    %s17 = scalar_lea.vmem %s0, 29
    %v18 = vld [vmem:[%s17] sm:$0x1]
    %19 = vrot.lane.b32.xlu0 %v18, 116
    %v20 = vpop.permute.xlu0 %19
    %vm21 = vcmask 982944
    %22 = vst.msk [vmem:[#allocation0] sm:$0x1] %vm21, %v20
    %s23 = scalar_lea.vmem %s0, 28
    %v24 = vld [vmem:[%s23] sm:$0x1]
    %25 = vrot.lane.b32.xlu0 %v24, 112
    %v26 = vpop.permute.xlu0 %25
    %vm27 = vcmask 950144
    %28 = vst.msk [vmem:[#allocation0] sm:$0x1] %vm27, %v26
    %s29 = scalar_lea.vmem %s0, 27
    %v30 = vld [vmem:[%s29] sm:$0x1]
    %31 = vrot.lane.b32.xlu0 %v30, 108
    %v32 = vpop.permute.xlu0 %31
    %vm33 = vcmask 917344
    %34 = vst.msk [vmem:[#allocation0] sm:$0x1] %vm33, %v32
    %s35 = scalar_lea.vmem %s0, 26
    %v36 = vld [vmem:[%s35] sm:$0x1]
    %37 = vrot.lane.b32.xlu0 %v36, 104
    %v38 = vpop.permute.xlu0 %37
    %vm39 = vcmask 884544
    %40 = vst.msk [vmem:[#allocation0] sm:$0x1] %vm39, %v38
    %s41 = scalar_lea.vmem %s0, 25
    %v42 = vld [vmem:[%s41] sm:$0x1]
    %43 = vrot.lane.b32.xlu0 %v42, 100
    %v44 = vpop.permute.xlu0 %43
    %vm45 = vcmask 851744
    %46 = vst.msk [vmem:[#allocation0] sm:$0x1] %vm45, %v44
    %s47 = scalar_lea.vmem %s0, 24
    %v48 = vld [vmem:[%s47] sm:$0x1]
    %49 = vrot.lane.b32.xlu0 %v48, 96
    %v50 = vpop.permute.xlu0 %49
    %vm51 = vcmask 818944
    %52 = vst.msk [vmem:[#allocation0] sm:$0x1] %vm51, %v50
    %s53 = scalar_lea.vmem %s0, 23
    %v54 = vld [vmem:[%s53] sm:$0x1]
    %55 = vrot.lane.b32.xlu0 %v54, 92
    %v56 = vpop.permute.xlu0 %55
    %vm57 = vcmask 786144
    %58 = vst.msk [vmem:[#allocation0] sm:$0x1] %vm57, %v56
    %s59 = scalar_lea.vmem %s0, 22
    %v60 = vld [vmem:[%s59] sm:$0x1]
    %61 = vrot.lane.b32.xlu0 %v60, 88
    %v62 = vpop.permute.xlu0 %61
    %vm63 = vcmask 753344
    %64 = vst.msk [vmem:[#allocation0] sm:$0x1] %vm63, %v62
    %s65 = scalar_lea.vmem %s0, 21
    %v66 = vld [vmem:[%s65] sm:$0x1]
    %67 = vrot.lane.b32.xlu0 %v66, 84
    %v68 = vpop.permute.xlu0 %67
    %vm69 = vcmask 720544
    %70 = vst.msk [vmem:[#allocation0] sm:$0x1] %vm69, %v68
    %s71 = scalar_lea.vmem %s0, 20
    %v72 = vld [vmem:[%s71] sm:$0x1]
    %73 = vrot.lane.b32.xlu0 %v72, 80
    %v74 = vpop.permute.xlu0 %73
    %vm75 = vcmask 687744
    %76 = vst.msk [vmem:[#allocation0] sm:$0x1] %vm75, %v74
    %s77 = scalar_lea.vmem %s0, 19
    %v78 = vld [vmem:[%s77] sm:$0x1]
    %79 = vrot.lane.b32.xlu0 %v78, 76
    %v80 = vpop.permute.xlu0 %79
    %vm81 = vcmask 654944
    %82 = vst.msk [vmem:[#allocation0] sm:$0x1] %vm81, %v80
    %s83 = scalar_lea.vmem %s0, 18
    %v84 = vld [vmem:[%s83] sm:$0x1]
    %85 = vrot.lane.b32.xlu0 %v84, 72
    %v86 = vpop.permute.xlu0 %85
    %vm87 = vcmask 622144
    %88 = vst.msk [vmem:[#allocation0] sm:$0x1] %vm87, %v86
    %s89 = scalar_lea.vmem %s0, 17
    %v90 = vld [vmem:[%s89] sm:$0x1]
    %91 = vrot.lane.b32.xlu0 %v90, 68
    %v92 = vpop.permute.xlu0 %91
    %vm93 = vcmask 589344
    %94 = vst.msk [vmem:[#allocation0] sm:$0x1] %vm93, %v92
    %s95 = scalar_lea.vmem %s0, 16
    %v96 = vld [vmem:[%s95] sm:$0x1]
    %97 = vrot.lane.b32.xlu0 %v96, 64
    %v98 = vpop.permute.xlu0 %97
    %vm99 = vcmask 556544
    %100 = vst.msk [vmem:[#allocation0] sm:$0x1] %vm99, %v98
    %s101 = scalar_lea.vmem %s0, 15
    %v102 = vld [vmem:[%s101] sm:$0x1]
    %103 = vrot.lane.b32.xlu0 %v102, 60
    %v104 = vpop.permute.xlu0 %103
    %vm105 = vcmask 523744
    %106 = vst.msk [vmem:[#allocation0] sm:$0x1] %vm105, %v104
    %s107 = scalar_lea.vmem %s0, 14
    %v108 = vld [vmem:[%s107] sm:$0x1]
    %109 = vrot.lane.b32.xlu0 %v108, 56
    %v110 = vpop.permute.xlu0 %109
    %vm111 = vcmask 490944
    %112 = vst.msk [vmem:[#allocation0] sm:$0x1] %vm111, %v110
    %s113 = scalar_lea.vmem %s0, 13
    %v114 = vld [vmem:[%s113] sm:$0x1]
    %115 = vrot.lane.b32.xlu0 %v114, 52
    %v116 = vpop.permute.xlu0 %115
    %vm117 = vcmask 458144
    %118 = vst.msk [vmem:[#allocation0] sm:$0x1] %vm117, %v116
    %s119 = scalar_lea.vmem %s0, 12
    %v120 = vld [vmem:[%s119] sm:$0x1]
    %121 = vrot.lane.b32.xlu0 %v120, 48
    %v122 = vpop.permute.xlu0 %121
    %vm123 = vcmask 425344
    %124 = vst.msk [vmem:[#allocation0] sm:$0x1] %vm123, %v122
    %s125 = scalar_lea.vmem %s0, 11
    %v126 = vld [vmem:[%s125] sm:$0x1]
    %127 = vrot.lane.b32.xlu0 %v126, 44
    %v128 = vpop.permute.xlu0 %127
    %vm129 = vcmask 392544
    %130 = vst.msk [vmem:[#allocation0] sm:$0x1] %vm129, %v128
    %s131 = scalar_lea.vmem %s0, 10
    %v132 = vld [vmem:[%s131] sm:$0x1]
    %133 = vrot.lane.b32.xlu0 %v132, 40
    %v134 = vpop.permute.xlu0 %133
    %vm135 = vcmask 359744
    %136 = vst.msk [vmem:[#allocation0] sm:$0x1] %vm135, %v134
    %s137 = scalar_lea.vmem %s0, 9
    %v138 = vld [vmem:[%s137] sm:$0x1]
    %139 = vrot.lane.b32.xlu0 %v138, 36
    %v140 = vpop.permute.xlu0 %139
    %vm141 = vcmask 326944
    %142 = vst.msk [vmem:[#allocation0] sm:$0x1] %vm141, %v140
    %s143 = scalar_lea.vmem %s0, 8
    %v144 = vld [vmem:[%s143] sm:$0x1]
    %145 = vrot.lane.b32.xlu0 %v144, 32
    %v146 = vpop.permute.xlu0 %145
    %vm147 = vcmask 294144
    %148 = vst.msk [vmem:[#allocation0] sm:$0x1] %vm147, %v146
    %s149 = scalar_lea.vmem %s0, 7
    %v150 = vld [vmem:[%s149] sm:$0x1]
    %151 = vrot.lane.b32.xlu0 %v150, 28
    %v152 = vpop.permute.xlu0 %151
    %vm153 = vcmask 261344
    %154 = vst.msk [vmem:[#allocation0] sm:$0x1] %vm153, %v152
    %s155 = scalar_lea.vmem %s0, 6
    %v156 = vld [vmem:[%s155] sm:$0x1]
    %157 = vrot.lane.b32.xlu0 %v156, 24
    %v158 = vpop.permute.xlu0 %157
    %vm159 = vcmask 228544
    %160 = vst.msk [vmem:[#allocation0] sm:$0x1] %vm159, %v158
    %s161 = scalar_lea.vmem %s0, 5
    %v162 = vld [vmem:[%s161] sm:$0x1]
    %163 = vrot.lane.b32.xlu0 %v162, 20
    %v164 = vpop.permute.xlu0 %163
    %vm165 = vcmask 195744
    %166 = vst.msk [vmem:[#allocation0] sm:$0x1] %vm165, %v164
    %s167 = scalar_lea.vmem %s0, 4
    %v168 = vld [vmem:[%s167] sm:$0x1]
    %169 = vrot.lane.b32.xlu0 %v168, 16
    %v170 = vpop.permute.xlu0 %169
    %vm171 = vcmask 162944
    %172 = vst.msk [vmem:[#allocation0] sm:$0x1] %vm171, %v170
    %s173 = scalar_lea.vmem %s0, 3
    %v174 = vld [vmem:[%s173] sm:$0x1]
    %175 = vrot.lane.b32.xlu0 %v174, 12
    %v176 = vpop.permute.xlu0 %175
    %vm177 = vcmask 130144
    %178 = vst.msk [vmem:[#allocation0] sm:$0x1] %vm177, %v176
    %s179 = scalar_lea.vmem %s0, 2
    %v180 = vld [vmem:[%s179] sm:$0x1]
    %181 = vrot.lane.b32.xlu0 %v180, 8
    %v182 = vpop.permute.xlu0 %181
    %vm183 = vcmask 97344
    %184 = vst.msk [vmem:[#allocation0] sm:$0x1] %vm183, %v182
    %s185 = scalar_lea.vmem %s0, 1
    %v186 = vld [vmem:[%s185] sm:$0x1]
    %187 = vrot.lane.b32.xlu0 %v186, 4
    %v188 = vpop.permute.xlu0 %187
    %vm189 = vcmask 64544
    %190 = vst.msk [vmem:[#allocation0] sm:$0x1] %vm189, %v188
    %s192 = ssub.s32 2, 1
    %v193 = vld [vmem:[#allocation0] sm:%s192]
    %s195 = ssub.s32 2, 1
    %196 = vst [vmem:[%s1] sm:%s195] %v193

// kernel: snn_forward.1
$region0: #{snn_forward.1}
  #allocation0 [shape = 'u32[]', space=smem, size = 0x4, offset = 0x4, fixed_abs, tag = 'smem constant byte address 0x4 - core index']
  #allocation1 [shape = 'u32[72,128]{1,0:T(1,128)}', space=vmem, size = 0x9000, scoped, tag = 'internal scratch']
  %s0 = inlined_call_operand.vmem [shape: f32[8,128], index: 0, kind: input, shape index: {}]
  %s1 = inlined_call_operand.vmem [shape: f32[128,640], index: 1, kind: input, shape index: {}]
  %s2 = inlined_call_operand.vmem [shape: f32[1,640], index: 2, kind: input, shape index: {}]
  %s3 = inlined_call_operand.vmem [shape: f32[640,128], index: 3, kind: input, shape index: {}]
  %s4 = inlined_call_operand.vmem [shape: f32[1,128], index: 4, kind: input, shape index: {}]
  %s5 = inlined_call_operand.vmem [shape: f32[8,128], index: 5, kind: output, shape index: {}]
  %s6 = sld [smem:[#allocation0]]
  $region30: #{snn_forward.1} parent=0
    _
  %s8 = ssub.s32 1, %s6
  %s9 = scalar_select 0, %s8, %s6
  // Predicated region
  $region2: #{snn_forward.1} parent=0 // pred_check
    _
  $region3: #{snn_forward.1} parent=0 // pred_check_branch
    %11 = sbr.rel (0) target = $region5
  $region4: #{snn_forward.1} parent=0 // pred_region
    _
  $region5: #{snn_forward.1} parent=0 // pred_fallthru
    _
  // Predicated region
  $region6: #{snn_forward.1} parent=0 // pred_check
    _
  $region7: #{snn_forward.1} parent=0 // pred_check_branch
    %13 = sbr.rel (0) target = $region9
  $region8: #{snn_forward.1} parent=0 // pred_region
    _
  $region9: #{snn_forward.1} parent=0 // pred_fallthru
    _
  // Predicated region
  $region10: #{snn_forward.1} parent=0 // pred_check
    _
  $region11: #{snn_forward.1} parent=0 // pred_check_branch
    %15 = sbr.rel (0) target = $region13
  $region12: #{snn_forward.1} parent=0 // pred_region
    _
  $region13: #{snn_forward.1} parent=0 // pred_fallthru
    _
  // Predicated region
  $region14: #{snn_forward.1} parent=0 // pred_check
    _
  $region15: #{snn_forward.1} parent=0 // pred_check_branch
    %17 = sbr.rel (0) target = $region17
  $region16: #{snn_forward.1} parent=0 // pred_region
    _
  $region17: #{snn_forward.1} parent=0 // pred_fallthru
    _
  // Predicated region
  $region18: #{snn_forward.1} parent=0 // pred_check
    _
  $region19: #{snn_forward.1} parent=0 // pred_check_branch
    %19 = sbr.rel (0) target = $region21
  $region20: #{snn_forward.1} parent=0 // pred_region
    _
  $region21: #{snn_forward.1} parent=0 // pred_fallthru
    _
  %v20 = vld [vmem:[%s0] sm:$0xff]
  %v21 = vld [vmem:[%s1] sm:$0xff]
  %v22 = vld [vmem:[%s1 + $0x8] sm:$0xff]
  %v23 = vld [vmem:[%s1 + $0x10] sm:$0xff]
  %v24 = vld [vmem:[%s1 + $0x18] sm:$0xff]
  %v25 = vld [vmem:[%s1 + $0x20] sm:$0xff]
  %v26 = vld [vmem:[%s1 + $0x28] sm:$0xff]
  %v27 = vld [vmem:[%s1 + $0x30] sm:$0xff]
  %v28 = vld [vmem:[%s1 + $0x38] sm:$0xff]
  %v29 = vld [vmem:[%s1 + $0x40] sm:$0xff]
  %v30 = vld [vmem:[%s1 + $0x48] sm:$0xff]
  %v31 = vld [vmem:[%s1 + $0x50] sm:$0xff]
  %v32 = vld [vmem:[%s1 + $0x58] sm:$0xff]
  %v33 = vld [vmem:[%s1 + $0x60] sm:$0xff]
  %v34 = vld [vmem:[%s1 + $0x68] sm:$0xff]
  %v35 = vld [vmem:[%s1 + $0x70] sm:$0xff]
  %v36 = vld [vmem:[%s1 + $0x78] sm:$0xff]
  %v37 = vld [vmem:[%s1 + $0x80] sm:$0xff]
  %v38 = vld [vmem:[%s1 + $0x88] sm:$0xff]
  %v39 = vld [vmem:[%s1 + $0x90] sm:$0xff]
  %v40 = vld [vmem:[%s1 + $0x98] sm:$0xff]
  %v41 = vld [vmem:[%s1 + $0xa0] sm:$0xff]
  %v42 = vld [vmem:[%s1 + $0xa8] sm:$0xff]
  %v43 = vld [vmem:[%s1 + $0xb0] sm:$0xff]
  %v44 = vld [vmem:[%s1 + $0xb8] sm:$0xff]
  %v45 = vld [vmem:[%s1 + $0xc0] sm:$0xff]
  %v46 = vld [vmem:[%s1 + $0xc8] sm:$0xff]
  %v47 = vld [vmem:[%s1 + $0xd0] sm:$0xff]
  %v48 = vld [vmem:[%s1 + $0xd8] sm:$0xff]
  %v49 = vld [vmem:[%s1 + $0xe0] sm:$0xff]
  %v50 = vld [vmem:[%s1 + $0xe8] sm:$0xff]
  %v51 = vld [vmem:[%s1 + $0xf0] sm:$0xff]
  %v52 = vld [vmem:[%s1 + $0xf8] sm:$0xff]
  %v53 = vld [vmem:[%s1 + $0x100] sm:$0xff]
  %v54 = vld [vmem:[%s1 + $0x108] sm:$0xff]
  %v55 = vld [vmem:[%s1 + $0x110] sm:$0xff]
  %v56 = vld [vmem:[%s1 + $0x118] sm:$0xff]
  %v57 = vld [vmem:[%s1 + $0x120] sm:$0xff]
  %v58 = vld [vmem:[%s1 + $0x128] sm:$0xff]
  %v59 = vld [vmem:[%s1 + $0x130] sm:$0xff]
  %v60 = vld [vmem:[%s1 + $0x138] sm:$0xff]
  %v61 = vld [vmem:[%s1 + $0x140] sm:$0xff]
  %v62 = vld [vmem:[%s1 + $0x148] sm:$0xff]
  %v63 = vld [vmem:[%s1 + $0x150] sm:$0xff]
  %v64 = vld [vmem:[%s1 + $0x158] sm:$0xff]
  %v65 = vld [vmem:[%s1 + $0x160] sm:$0xff]
  %v66 = vld [vmem:[%s1 + $0x168] sm:$0xff]
  %v67 = vld [vmem:[%s1 + $0x170] sm:$0xff]
  %v68 = vld [vmem:[%s1 + $0x178] sm:$0xff]
  %v69 = vld [vmem:[%s1 + $0x180] sm:$0xff]
  %v70 = vld [vmem:[%s1 + $0x188] sm:$0xff]
  %v71 = vld [vmem:[%s1 + $0x190] sm:$0xff]
  %v72 = vld [vmem:[%s1 + $0x198] sm:$0xff]
  %v73 = vld [vmem:[%s1 + $0x1a0] sm:$0xff]
  %v74 = vld [vmem:[%s1 + $0x1a8] sm:$0xff]
  %v75 = vld [vmem:[%s1 + $0x1b0] sm:$0xff]
  %v76 = vld [vmem:[%s1 + $0x1b8] sm:$0xff]
  %v77 = vld [vmem:[%s1 + $0x1c0] sm:$0xff]
  %v78 = vld [vmem:[%s1 + $0x1c8] sm:$0xff]
  %v79 = vld [vmem:[%s1 + $0x1d0] sm:$0xff]
  %v80 = vld [vmem:[%s1 + $0x1d8] sm:$0xff]
  %v81 = vld [vmem:[%s1 + $0x1e0] sm:$0xff]
  %v82 = vld [vmem:[%s1 + $0x1e8] sm:$0xff]
  %v83 = vld [vmem:[%s1 + $0x1f0] sm:$0xff]
  %v84 = vld [vmem:[%s1 + $0x1f8] sm:$0xff]
  %v85 = vld [vmem:[%s1 + $0x200] sm:$0xff]
  %v86 = vld [vmem:[%s1 + $0x208] sm:$0xff]
  %v87 = vld [vmem:[%s1 + $0x210] sm:$0xff]
  %v88 = vld [vmem:[%s1 + $0x218] sm:$0xff]
  %v89 = vld [vmem:[%s1 + $0x220] sm:$0xff]
  %v90 = vld [vmem:[%s1 + $0x228] sm:$0xff]
  %v91 = vld [vmem:[%s1 + $0x230] sm:$0xff]
  %v92 = vld [vmem:[%s1 + $0x238] sm:$0xff]
  %v93 = vld [vmem:[%s1 + $0x240] sm:$0xff]
  %v94 = vld [vmem:[%s1 + $0x248] sm:$0xff]
  %v95 = vld [vmem:[%s1 + $0x250] sm:$0xff]
  %v96 = vld [vmem:[%s1 + $0x258] sm:$0xff]
  %v97 = vld [vmem:[%s1 + $0x260] sm:$0xff]
  %v98 = vld [vmem:[%s1 + $0x268] sm:$0xff]
  %v99 = vld [vmem:[%s1 + $0x270] sm:$0xff]
  %v100 = vld [vmem:[%s1 + $0x278] sm:$0xff]
  %v101 = vld [vmem:[%s2] sm:$0x1f]
  %v103 = vperm.slane %v101, 0
  %v104 = vperm.slane %v101, 1
  %v105 = vperm.slane %v101, 2
  %v106 = vperm.slane %v101, 3
  %v107 = vperm.slane %v101, 4
  %v113 = vand.u32 %v96, 4294901760
  %114 = vmatpush.msra.mxu0 %v113
  %v115 = vand.u32 %v91, 4294901760
  %116 = vmatpush.msra.mxu0 %v115
  %v117 = vand.u32 %v86, 4294901760
  %118 = vmatpush.msra.mxu0 %v117
  %v119 = vand.u32 %v81, 4294901760
  %120 = vmatpush.msra.mxu0 %v119
  %v121 = vand.u32 %v76, 4294901760
  %122 = vmatpush.msra.mxu0 %v121
  %v123 = vand.u32 %v71, 4294901760
  %124 = vmatpush.msra.mxu0 %v123
  %v125 = vand.u32 %v66, 4294901760
  %126 = vmatpush.msra.mxu0 %v125
  %v127 = vand.u32 %v61, 4294901760
  %128 = vmatpush.msra.mxu0 %v127
  %v129 = vand.u32 %v56, 4294901760
  %130 = vmatpush.msra.mxu0 %v129
  %v131 = vand.u32 %v51, 4294901760
  %132 = vmatpush.msra.mxu0 %v131
  %v133 = vand.u32 %v46, 4294901760
  %134 = vmatpush.msra.mxu0 %v133
  %v135 = vand.u32 %v41, 4294901760
  %136 = vmatpush.msra.mxu0 %v135
  %v137 = vand.u32 %v36, 4294901760
  %138 = vmatpush.msra.mxu0 %v137
  %v139 = vand.u32 %v31, 4294901760
  %140 = vmatpush.msra.mxu0 %v139
  %v141 = vand.u32 %v26, 4294901760
  %142 = vmatpush.msra.mxu0 %v141
  %v143 = vand.u32 %v21, 4294901760
  %144 = vmatpush.msra.mxu0 %v143
  %v145 = vand.u32 %v20, 4294901760
  %v146 = vsub.f32 %v20, %v145
  %v147 = vand.u32 %v146, 4294901760
  %v148 = vsub.f32 %v146, %v147
  %v149 = vand.u32 %v148, 4294901760
  %150 = vmatmul.f32.gmra.mxu0 %v149
  %v151 = vpop.f32.mrf.mxu0
  %v152 = vadd.f32 %v103, %v151
  %153 = vdwg.mxu0
  %v154 = vand.u32 %v96, 4294901760
  %v155 = vsub.f32 %v96, %v154
  %v156 = vand.u32 %v155, 4294901760
  %v157 = vsub.f32 %v155, %v156
  %v158 = vand.u32 %v157, 4294901760
  %159 = vmatpush.msra.mxu0 %v158
  %v160 = vand.u32 %v91, 4294901760
  %v161 = vsub.f32 %v91, %v160
  %v162 = vand.u32 %v161, 4294901760
  %v163 = vsub.f32 %v161, %v162
  %v164 = vand.u32 %v163, 4294901760
  %165 = vmatpush.msra.mxu0 %v164
  %v166 = vand.u32 %v86, 4294901760
  %v167 = vsub.f32 %v86, %v166
  %v168 = vand.u32 %v167, 4294901760
  %v169 = vsub.f32 %v167, %v168
  %v170 = vand.u32 %v169, 4294901760
  %171 = vmatpush.msra.mxu0 %v170
  %v172 = vand.u32 %v81, 4294901760
  %v173 = vsub.f32 %v81, %v172
  %v174 = vand.u32 %v173, 4294901760
  %v175 = vsub.f32 %v173, %v174
  %v176 = vand.u32 %v175, 4294901760
  %177 = vmatpush.msra.mxu0 %v176
  %v178 = vand.u32 %v76, 4294901760
  %v179 = vsub.f32 %v76, %v178
  %v180 = vand.u32 %v179, 4294901760
  %v181 = vsub.f32 %v179, %v180
  %v182 = vand.u32 %v181, 4294901760
  %183 = vmatpush.msra.mxu0 %v182
  %v184 = vand.u32 %v71, 4294901760
  %v185 = vsub.f32 %v71, %v184
  %v186 = vand.u32 %v185, 4294901760
  %v187 = vsub.f32 %v185, %v186
  %v188 = vand.u32 %v187, 4294901760
  %189 = vmatpush.msra.mxu0 %v188
  %v190 = vand.u32 %v66, 4294901760
  %v191 = vsub.f32 %v66, %v190
  %v192 = vand.u32 %v191, 4294901760
  %v193 = vsub.f32 %v191, %v192
  %v194 = vand.u32 %v193, 4294901760
  %195 = vmatpush.msra.mxu0 %v194
  %v196 = vand.u32 %v61, 4294901760
  %v197 = vsub.f32 %v61, %v196
  %v198 = vand.u32 %v197, 4294901760
  %v199 = vsub.f32 %v197, %v198
  %v200 = vand.u32 %v199, 4294901760
  %201 = vmatpush.msra.mxu0 %v200
  %v202 = vand.u32 %v56, 4294901760
  %v203 = vsub.f32 %v56, %v202
  %v204 = vand.u32 %v203, 4294901760
  %v205 = vsub.f32 %v203, %v204
  %v206 = vand.u32 %v205, 4294901760
  %207 = vmatpush.msra.mxu0 %v206
  %v208 = vand.u32 %v51, 4294901760
  %v209 = vsub.f32 %v51, %v208
  %v210 = vand.u32 %v209, 4294901760
  %v211 = vsub.f32 %v209, %v210
  %v212 = vand.u32 %v211, 4294901760
  %213 = vmatpush.msra.mxu0 %v212
  %v214 = vand.u32 %v46, 4294901760
  %v215 = vsub.f32 %v46, %v214
  %v216 = vand.u32 %v215, 4294901760
  %v217 = vsub.f32 %v215, %v216
  %v218 = vand.u32 %v217, 4294901760
  %219 = vmatpush.msra.mxu0 %v218
  %v220 = vand.u32 %v41, 4294901760
  %v221 = vsub.f32 %v41, %v220
  %v222 = vand.u32 %v221, 4294901760
  %v223 = vsub.f32 %v221, %v222
  %v224 = vand.u32 %v223, 4294901760
  %225 = vmatpush.msra.mxu0 %v224
  %v226 = vand.u32 %v36, 4294901760
  %v227 = vsub.f32 %v36, %v226
  %v228 = vand.u32 %v227, 4294901760
  %v229 = vsub.f32 %v227, %v228
  %v230 = vand.u32 %v229, 4294901760
  %231 = vmatpush.msra.mxu0 %v230
  %v232 = vand.u32 %v31, 4294901760
  %v233 = vsub.f32 %v31, %v232
  %v234 = vand.u32 %v233, 4294901760
  %v235 = vsub.f32 %v233, %v234
  %v236 = vand.u32 %v235, 4294901760
  %237 = vmatpush.msra.mxu0 %v236
  %v238 = vand.u32 %v26, 4294901760
  %v239 = vsub.f32 %v26, %v238
  %v240 = vand.u32 %v239, 4294901760
  %v241 = vsub.f32 %v239, %v240
  %v242 = vand.u32 %v241, 4294901760
  %243 = vmatpush.msra.mxu0 %v242
  %v244 = vand.u32 %v21, 4294901760
  %v245 = vsub.f32 %v21, %v244
  %v246 = vand.u32 %v245, 4294901760
  %v247 = vsub.f32 %v245, %v246
  %v248 = vand.u32 %v247, 4294901760
  %249 = vmatpush.msra.mxu0 %v248
  %v250 = vand.u32 %v20, 4294901760
  %251 = vmatmul.f32.gmra.mxu0 %v250
  %v252 = vpop.f32.mrf.mxu0
  %v253 = vadd.f32 %v152, %v252
  %254 = vdwg.mxu0
  %v255 = vand.u32 %v96, 4294901760
  %v256 = vsub.f32 %v96, %v255
  %257 = vmatpush.msra.mxu0 %v256
  %v258 = vand.u32 %v91, 4294901760
  %v259 = vsub.f32 %v91, %v258
  %260 = vmatpush.msra.mxu0 %v259
  %v261 = vand.u32 %v86, 4294901760
  %v262 = vsub.f32 %v86, %v261
  %263 = vmatpush.msra.mxu0 %v262
  %v264 = vand.u32 %v81, 4294901760
  %v265 = vsub.f32 %v81, %v264
  %266 = vmatpush.msra.mxu0 %v265
  %v267 = vand.u32 %v76, 4294901760
  %v268 = vsub.f32 %v76, %v267
  %269 = vmatpush.msra.mxu0 %v268
  %v270 = vand.u32 %v71, 4294901760
  %v271 = vsub.f32 %v71, %v270
  %272 = vmatpush.msra.mxu0 %v271
  %v273 = vand.u32 %v66, 4294901760
  %v274 = vsub.f32 %v66, %v273
  %275 = vmatpush.msra.mxu0 %v274
  %v276 = vand.u32 %v61, 4294901760
  %v277 = vsub.f32 %v61, %v276
  %278 = vmatpush.msra.mxu0 %v277
  %v279 = vand.u32 %v56, 4294901760
  %v280 = vsub.f32 %v56, %v279
  %281 = vmatpush.msra.mxu0 %v280
  %v282 = vand.u32 %v51, 4294901760
  %v283 = vsub.f32 %v51, %v282
  %284 = vmatpush.msra.mxu0 %v283
  %v285 = vand.u32 %v46, 4294901760
  %v286 = vsub.f32 %v46, %v285
  %287 = vmatpush.msra.mxu0 %v286
  %v288 = vand.u32 %v41, 4294901760
  %v289 = vsub.f32 %v41, %v288
  %290 = vmatpush.msra.mxu0 %v289
  %v291 = vand.u32 %v36, 4294901760
  %v292 = vsub.f32 %v36, %v291
  %293 = vmatpush.msra.mxu0 %v292
  %v294 = vand.u32 %v31, 4294901760
  %v295 = vsub.f32 %v31, %v294
  %296 = vmatpush.msra.mxu0 %v295
  %v297 = vand.u32 %v26, 4294901760
  %v298 = vsub.f32 %v26, %v297
  %299 = vmatpush.msra.mxu0 %v298
  %v300 = vand.u32 %v21, 4294901760
  %v301 = vsub.f32 %v21, %v300
  %302 = vmatpush.msra.mxu0 %v301
  %v303 = vand.u32 %v20, 4294901760
  %v304 = vsub.f32 %v20, %v303
  %305 = vmatmul.f32.gmra.mxu0 %v304
  %v306 = vpop.f32.mrf.mxu0
  %v307 = vadd.f32 %v253, %v306
  %308 = vdwg.mxu0
  %v309 = vand.u32 %v96, 4294901760
  %310 = vmatpush.msra.mxu0 %v309
  %v311 = vand.u32 %v91, 4294901760
  %312 = vmatpush.msra.mxu0 %v311
  %v313 = vand.u32 %v86, 4294901760
  %314 = vmatpush.msra.mxu0 %v313
  %v315 = vand.u32 %v81, 4294901760
  %316 = vmatpush.msra.mxu0 %v315
  %v317 = vand.u32 %v76, 4294901760
  %318 = vmatpush.msra.mxu0 %v317
  %v319 = vand.u32 %v71, 4294901760
  %320 = vmatpush.msra.mxu0 %v319
  %v321 = vand.u32 %v66, 4294901760
  %322 = vmatpush.msra.mxu0 %v321
  %v323 = vand.u32 %v61, 4294901760
  %324 = vmatpush.msra.mxu0 %v323
  %v325 = vand.u32 %v56, 4294901760
  %326 = vmatpush.msra.mxu0 %v325
  %v327 = vand.u32 %v51, 4294901760
  %328 = vmatpush.msra.mxu0 %v327
  %v329 = vand.u32 %v46, 4294901760
  %330 = vmatpush.msra.mxu0 %v329
  %v331 = vand.u32 %v41, 4294901760
  %332 = vmatpush.msra.mxu0 %v331
  %v333 = vand.u32 %v36, 4294901760
  %334 = vmatpush.msra.mxu0 %v333
  %v335 = vand.u32 %v31, 4294901760
  %336 = vmatpush.msra.mxu0 %v335
  %v337 = vand.u32 %v26, 4294901760
  %338 = vmatpush.msra.mxu0 %v337
  %v339 = vand.u32 %v21, 4294901760
  %340 = vmatpush.msra.mxu0 %v339
  %v341 = vand.u32 %v20, 4294901760
  %v342 = vsub.f32 %v20, %v341
  %v343 = vand.u32 %v342, 4294901760
  %344 = vmatmul.f32.gmra.mxu0 %v343
  %v345 = vpop.f32.mrf.mxu0
  %v346 = vadd.f32 %v307, %v345
  %347 = vdwg.mxu0
  %v348 = vand.u32 %v96, 4294901760
  %v349 = vsub.f32 %v96, %v348
  %v350 = vand.u32 %v349, 4294901760
  %351 = vmatpush.msra.mxu0 %v350
  %v352 = vand.u32 %v91, 4294901760
  %v353 = vsub.f32 %v91, %v352
  %v354 = vand.u32 %v353, 4294901760
  %355 = vmatpush.msra.mxu0 %v354
  %v356 = vand.u32 %v86, 4294901760
  %v357 = vsub.f32 %v86, %v356
  %v358 = vand.u32 %v357, 4294901760
  %359 = vmatpush.msra.mxu0 %v358
  %v360 = vand.u32 %v81, 4294901760
  %v361 = vsub.f32 %v81, %v360
  %v362 = vand.u32 %v361, 4294901760
  %363 = vmatpush.msra.mxu0 %v362
  %v364 = vand.u32 %v76, 4294901760
  %v365 = vsub.f32 %v76, %v364
  %v366 = vand.u32 %v365, 4294901760
  %367 = vmatpush.msra.mxu0 %v366
  %v368 = vand.u32 %v71, 4294901760
  %v369 = vsub.f32 %v71, %v368
  %v370 = vand.u32 %v369, 4294901760
  %371 = vmatpush.msra.mxu0 %v370
  %v372 = vand.u32 %v66, 4294901760
  %v373 = vsub.f32 %v66, %v372
  %v374 = vand.u32 %v373, 4294901760
  %375 = vmatpush.msra.mxu0 %v374
  %v376 = vand.u32 %v61, 4294901760
  %v377 = vsub.f32 %v61, %v376
  %v378 = vand.u32 %v377, 4294901760
  %379 = vmatpush.msra.mxu0 %v378
  %v380 = vand.u32 %v56, 4294901760
  %v381 = vsub.f32 %v56, %v380
  %v382 = vand.u32 %v381, 4294901760
  %383 = vmatpush.msra.mxu0 %v382
  %v384 = vand.u32 %v51, 4294901760
  %v385 = vsub.f32 %v51, %v384
  %v386 = vand.u32 %v385, 4294901760
  %387 = vmatpush.msra.mxu0 %v386
  %v388 = vand.u32 %v46, 4294901760
  %v389 = vsub.f32 %v46, %v388
  %v390 = vand.u32 %v389, 4294901760
  %391 = vmatpush.msra.mxu0 %v390
  %v392 = vand.u32 %v41, 4294901760
  %v393 = vsub.f32 %v41, %v392
  %v394 = vand.u32 %v393, 4294901760
  %395 = vmatpush.msra.mxu0 %v394
  %v396 = vand.u32 %v36, 4294901760
  %v397 = vsub.f32 %v36, %v396
  %v398 = vand.u32 %v397, 4294901760
  %399 = vmatpush.msra.mxu0 %v398
  %v400 = vand.u32 %v31, 4294901760
  %v401 = vsub.f32 %v31, %v400
  %v402 = vand.u32 %v401, 4294901760
  %403 = vmatpush.msra.mxu0 %v402
  %v404 = vand.u32 %v26, 4294901760
  %v405 = vsub.f32 %v26, %v404
  %v406 = vand.u32 %v405, 4294901760
  %407 = vmatpush.msra.mxu0 %v406
  %v408 = vand.u32 %v21, 4294901760
  %v409 = vsub.f32 %v21, %v408
  %v410 = vand.u32 %v409, 4294901760
  %411 = vmatpush.msra.mxu0 %v410
  %v412 = vand.u32 %v20, 4294901760
  %413 = vmatmul.f32.gmra.mxu0 %v412
  %v414 = vpop.f32.mrf.mxu0
  %v415 = vadd.f32 %v346, %v414
  %416 = vdwg.mxu0
  %v417 = vand.u32 %v96, 4294901760
  %418 = vmatpush.msra.mxu0 %v417
  %v419 = vand.u32 %v91, 4294901760
  %420 = vmatpush.msra.mxu0 %v419
  %v421 = vand.u32 %v86, 4294901760
  %422 = vmatpush.msra.mxu0 %v421
  %v423 = vand.u32 %v81, 4294901760
  %424 = vmatpush.msra.mxu0 %v423
  %v425 = vand.u32 %v76, 4294901760
  %426 = vmatpush.msra.mxu0 %v425
  %v427 = vand.u32 %v71, 4294901760
  %428 = vmatpush.msra.mxu0 %v427
  %v429 = vand.u32 %v66, 4294901760
  %430 = vmatpush.msra.mxu0 %v429
  %v431 = vand.u32 %v61, 4294901760
  %432 = vmatpush.msra.mxu0 %v431
  %v433 = vand.u32 %v56, 4294901760
  %434 = vmatpush.msra.mxu0 %v433
  %v435 = vand.u32 %v51, 4294901760
  %436 = vmatpush.msra.mxu0 %v435
  %v437 = vand.u32 %v46, 4294901760
  %438 = vmatpush.msra.mxu0 %v437
  %v439 = vand.u32 %v41, 4294901760
  %440 = vmatpush.msra.mxu0 %v439
  %v441 = vand.u32 %v36, 4294901760
  %442 = vmatpush.msra.mxu0 %v441
  %v443 = vand.u32 %v31, 4294901760
  %444 = vmatpush.msra.mxu0 %v443
  %v445 = vand.u32 %v26, 4294901760
  %446 = vmatpush.msra.mxu0 %v445
  %v447 = vand.u32 %v21, 4294901760
  %448 = vmatpush.msra.mxu0 %v447
  %v449 = vand.u32 %v20, 4294901760
  %450 = vmatmul.f32.gmra.mxu0 %v449
  %v451 = vpop.f32.mrf.mxu0
  %v452 = vadd.f32 %v415, %v451
  %453 = vdwg.mxu0
  %v454 = vand.u32 %v97, 4294901760
  %455 = vmatpush.msra.mxu0 %v454
  %v456 = vand.u32 %v92, 4294901760
  %457 = vmatpush.msra.mxu0 %v456
  %v458 = vand.u32 %v87, 4294901760
  %459 = vmatpush.msra.mxu0 %v458
  %v460 = vand.u32 %v82, 4294901760
  %461 = vmatpush.msra.mxu0 %v460
  %v462 = vand.u32 %v77, 4294901760
  %463 = vmatpush.msra.mxu0 %v462
  %v464 = vand.u32 %v72, 4294901760
  %465 = vmatpush.msra.mxu0 %v464
  %v466 = vand.u32 %v67, 4294901760
  %467 = vmatpush.msra.mxu0 %v466
  %v468 = vand.u32 %v62, 4294901760
  %469 = vmatpush.msra.mxu0 %v468
  %v470 = vand.u32 %v57, 4294901760
  %471 = vmatpush.msra.mxu0 %v470
  %v472 = vand.u32 %v52, 4294901760
  %473 = vmatpush.msra.mxu0 %v472
  %v474 = vand.u32 %v47, 4294901760
  %475 = vmatpush.msra.mxu0 %v474
  %v476 = vand.u32 %v42, 4294901760
  %477 = vmatpush.msra.mxu0 %v476
  %v478 = vand.u32 %v37, 4294901760
  %479 = vmatpush.msra.mxu0 %v478
  %v480 = vand.u32 %v32, 4294901760
  %481 = vmatpush.msra.mxu0 %v480
  %v482 = vand.u32 %v27, 4294901760
  %483 = vmatpush.msra.mxu0 %v482
  %v484 = vand.u32 %v22, 4294901760
  %485 = vmatpush.msra.mxu0 %v484
  %v486 = vand.u32 %v20, 4294901760
  %v487 = vsub.f32 %v20, %v486
  %v488 = vand.u32 %v487, 4294901760
  %v489 = vsub.f32 %v487, %v488
  %v490 = vand.u32 %v489, 4294901760
  %491 = vmatmul.f32.gmra.mxu0 %v490
  %v492 = vpop.f32.mrf.mxu0
  %v493 = vadd.f32 %v104, %v492
  %494 = vdwg.mxu0
  %v495 = vand.u32 %v97, 4294901760
  %v496 = vsub.f32 %v97, %v495
  %v497 = vand.u32 %v496, 4294901760
  %v498 = vsub.f32 %v496, %v497
  %v499 = vand.u32 %v498, 4294901760
  %500 = vmatpush.msra.mxu0 %v499
  %v501 = vand.u32 %v92, 4294901760
  %v502 = vsub.f32 %v92, %v501
  %v503 = vand.u32 %v502, 4294901760
  %v504 = vsub.f32 %v502, %v503
  %v505 = vand.u32 %v504, 4294901760
  %506 = vmatpush.msra.mxu0 %v505
  %v507 = vand.u32 %v87, 4294901760
  %v508 = vsub.f32 %v87, %v507
  %v509 = vand.u32 %v508, 4294901760
  %v510 = vsub.f32 %v508, %v509
  %v511 = vand.u32 %v510, 4294901760
  %512 = vmatpush.msra.mxu0 %v511
  %v513 = vand.u32 %v82, 4294901760
  %v514 = vsub.f32 %v82, %v513
  %v515 = vand.u32 %v514, 4294901760
  %v516 = vsub.f32 %v514, %v515
  %v517 = vand.u32 %v516, 4294901760
  %518 = vmatpush.msra.mxu0 %v517
  %v519 = vand.u32 %v77, 4294901760
  %v520 = vsub.f32 %v77, %v519
  %v521 = vand.u32 %v520, 4294901760
  %v522 = vsub.f32 %v520, %v521
  %v523 = vand.u32 %v522, 4294901760
  %524 = vmatpush.msra.mxu0 %v523
  %v525 = vand.u32 %v72, 4294901760
  %v526 = vsub.f32 %v72, %v525
  %v527 = vand.u32 %v526, 4294901760
  %v528 = vsub.f32 %v526, %v527
  %v529 = vand.u32 %v528, 4294901760
  %530 = vmatpush.msra.mxu0 %v529
  %v531 = vand.u32 %v67, 4294901760
  %v532 = vsub.f32 %v67, %v531
  %v533 = vand.u32 %v532, 4294901760
  %v534 = vsub.f32 %v532, %v533
  %v535 = vand.u32 %v534, 4294901760
  %536 = vmatpush.msra.mxu0 %v535
  %v537 = vand.u32 %v62, 4294901760
  %v538 = vsub.f32 %v62, %v537
  %v539 = vand.u32 %v538, 4294901760
  %v540 = vsub.f32 %v538, %v539
  %v541 = vand.u32 %v540, 4294901760
  %542 = vmatpush.msra.mxu0 %v541
  %v543 = vand.u32 %v57, 4294901760
  %v544 = vsub.f32 %v57, %v543
  %v545 = vand.u32 %v544, 4294901760
  %v546 = vsub.f32 %v544, %v545
  %v547 = vand.u32 %v546, 4294901760
  %548 = vmatpush.msra.mxu0 %v547
  %v549 = vand.u32 %v52, 4294901760
  %v550 = vsub.f32 %v52, %v549
  %v551 = vand.u32 %v550, 4294901760
  %v552 = vsub.f32 %v550, %v551
  %v553 = vand.u32 %v552, 4294901760
  %554 = vmatpush.msra.mxu0 %v553
  %v555 = vand.u32 %v47, 4294901760
  %v556 = vsub.f32 %v47, %v555
  %v557 = vand.u32 %v556, 4294901760
  %v558 = vsub.f32 %v556, %v557
  %v559 = vand.u32 %v558, 4294901760
  %560 = vmatpush.msra.mxu0 %v559
  %v561 = vand.u32 %v42, 4294901760
  %v562 = vsub.f32 %v42, %v561
  %v563 = vand.u32 %v562, 4294901760
  %v564 = vsub.f32 %v562, %v563
  %v565 = vand.u32 %v564, 4294901760
  %566 = vmatpush.msra.mxu0 %v565
  %v567 = vand.u32 %v37, 4294901760
  %v568 = vsub.f32 %v37, %v567
  %v569 = vand.u32 %v568, 4294901760
  %v570 = vsub.f32 %v568, %v569
  %v571 = vand.u32 %v570, 4294901760
  %572 = vmatpush.msra.mxu0 %v571
  %v573 = vand.u32 %v32, 4294901760
  %v574 = vsub.f32 %v32, %v573
  %v575 = vand.u32 %v574, 4294901760
  %v576 = vsub.f32 %v574, %v575
  %v577 = vand.u32 %v576, 4294901760
  %578 = vmatpush.msra.mxu0 %v577
  %v579 = vand.u32 %v27, 4294901760
  %v580 = vsub.f32 %v27, %v579
  %v581 = vand.u32 %v580, 4294901760
  %v582 = vsub.f32 %v580, %v581
  %v583 = vand.u32 %v582, 4294901760
  %584 = vmatpush.msra.mxu0 %v583
  %v585 = vand.u32 %v22, 4294901760
  %v586 = vsub.f32 %v22, %v585
  %v587 = vand.u32 %v586, 4294901760
  %v588 = vsub.f32 %v586, %v587
  %v589 = vand.u32 %v588, 4294901760
  %590 = vmatpush.msra.mxu0 %v589
  %v591 = vand.u32 %v20, 4294901760
  %592 = vmatmul.f32.gmra.mxu0 %v591
  %v593 = vpop.f32.mrf.mxu0
  %v594 = vadd.f32 %v493, %v593
  %595 = vdwg.mxu0
  %v596 = vand.u32 %v97, 4294901760
  %v597 = vsub.f32 %v97, %v596
  %598 = vmatpush.msra.mxu0 %v597
  %v599 = vand.u32 %v92, 4294901760
  %v600 = vsub.f32 %v92, %v599
  %601 = vmatpush.msra.mxu0 %v600
  %v602 = vand.u32 %v87, 4294901760
  %v603 = vsub.f32 %v87, %v602
  %604 = vmatpush.msra.mxu0 %v603
  %v605 = vand.u32 %v82, 4294901760
  %v606 = vsub.f32 %v82, %v605
  %607 = vmatpush.msra.mxu0 %v606
  %v608 = vand.u32 %v77, 4294901760
  %v609 = vsub.f32 %v77, %v608
  %610 = vmatpush.msra.mxu0 %v609
  %v611 = vand.u32 %v72, 4294901760
  %v612 = vsub.f32 %v72, %v611
  %613 = vmatpush.msra.mxu0 %v612
  %v614 = vand.u32 %v67, 4294901760
  %v615 = vsub.f32 %v67, %v614
  %616 = vmatpush.msra.mxu0 %v615
  %v617 = vand.u32 %v62, 4294901760
  %v618 = vsub.f32 %v62, %v617
  %619 = vmatpush.msra.mxu0 %v618
  %v620 = vand.u32 %v57, 4294901760
  %v621 = vsub.f32 %v57, %v620
  %622 = vmatpush.msra.mxu0 %v621
  %v623 = vand.u32 %v52, 4294901760
  %v624 = vsub.f32 %v52, %v623
  %625 = vmatpush.msra.mxu0 %v624
  %v626 = vand.u32 %v47, 4294901760
  %v627 = vsub.f32 %v47, %v626
  %628 = vmatpush.msra.mxu0 %v627
  %v629 = vand.u32 %v42, 4294901760
  %v630 = vsub.f32 %v42, %v629
  %631 = vmatpush.msra.mxu0 %v630
  %v632 = vand.u32 %v37, 4294901760
  %v633 = vsub.f32 %v37, %v632
  %634 = vmatpush.msra.mxu0 %v633
  %v635 = vand.u32 %v32, 4294901760
  %v636 = vsub.f32 %v32, %v635
  %637 = vmatpush.msra.mxu0 %v636
  %v638 = vand.u32 %v27, 4294901760
  %v639 = vsub.f32 %v27, %v638
  %640 = vmatpush.msra.mxu0 %v639
  %v641 = vand.u32 %v22, 4294901760
  %v642 = vsub.f32 %v22, %v641
  %643 = vmatpush.msra.mxu0 %v642
  %v644 = vand.u32 %v20, 4294901760
  %v645 = vsub.f32 %v20, %v644
  %646 = vmatmul.f32.gmra.mxu0 %v645
  %v647 = vpop.f32.mrf.mxu0
  %v648 = vadd.f32 %v594, %v647
  %649 = vdwg.mxu0
  %v650 = vand.u32 %v97, 4294901760
  %651 = vmatpush.msra.mxu0 %v650
  %v652 = vand.u32 %v92, 4294901760
  %653 = vmatpush.msra.mxu0 %v652
  %v654 = vand.u32 %v87, 4294901760
  %655 = vmatpush.msra.mxu0 %v654
  %v656 = vand.u32 %v82, 4294901760
  %657 = vmatpush.msra.mxu0 %v656
  %v658 = vand.u32 %v77, 4294901760
  %659 = vmatpush.msra.mxu0 %v658
  %v660 = vand.u32 %v72, 4294901760
  %661 = vmatpush.msra.mxu0 %v660
  %v662 = vand.u32 %v67, 4294901760
  %663 = vmatpush.msra.mxu0 %v662
  %v664 = vand.u32 %v62, 4294901760
  %665 = vmatpush.msra.mxu0 %v664
  %v666 = vand.u32 %v57, 4294901760
  %667 = vmatpush.msra.mxu0 %v666
  %v668 = vand.u32 %v52, 4294901760
  %669 = vmatpush.msra.mxu0 %v668
  %v670 = vand.u32 %v47, 4294901760
  %671 = vmatpush.msra.mxu0 %v670
  %v672 = vand.u32 %v42, 4294901760
  %673 = vmatpush.msra.mxu0 %v672
  %v674 = vand.u32 %v37, 4294901760
  %675 = vmatpush.msra.mxu0 %v674
  %v676 = vand.u32 %v32, 4294901760
  %677 = vmatpush.msra.mxu0 %v676
  %v678 = vand.u32 %v27, 4294901760
  %679 = vmatpush.msra.mxu0 %v678
  %v680 = vand.u32 %v22, 4294901760
  %681 = vmatpush.msra.mxu0 %v680
  %v682 = vand.u32 %v20, 4294901760
  %v683 = vsub.f32 %v20, %v682
  %v684 = vand.u32 %v683, 4294901760
  %685 = vmatmul.f32.gmra.mxu0 %v684
  %v686 = vpop.f32.mrf.mxu0
  %v687 = vadd.f32 %v648, %v686
  %688 = vdwg.mxu0
  %v689 = vand.u32 %v97, 4294901760
  %v690 = vsub.f32 %v97, %v689
  %v691 = vand.u32 %v690, 4294901760
  %692 = vmatpush.msra.mxu0 %v691
  %v693 = vand.u32 %v92, 4294901760
  %v694 = vsub.f32 %v92, %v693
  %v695 = vand.u32 %v694, 4294901760
  %696 = vmatpush.msra.mxu0 %v695
  %v697 = vand.u32 %v87, 4294901760
  %v698 = vsub.f32 %v87, %v697
  %v699 = vand.u32 %v698, 4294901760
  %700 = vmatpush.msra.mxu0 %v699
  %v701 = vand.u32 %v82, 4294901760
  %v702 = vsub.f32 %v82, %v701
  %v703 = vand.u32 %v702, 4294901760
  %704 = vmatpush.msra.mxu0 %v703
  %v705 = vand.u32 %v77, 4294901760
  %v706 = vsub.f32 %v77, %v705
  %v707 = vand.u32 %v706, 4294901760
  %708 = vmatpush.msra.mxu0 %v707
  %v709 = vand.u32 %v72, 4294901760
  %v710 = vsub.f32 %v72, %v709
  %v711 = vand.u32 %v710, 4294901760
  %712 = vmatpush.msra.mxu0 %v711
  %v713 = vand.u32 %v67, 4294901760
  %v714 = vsub.f32 %v67, %v713
  %v715 = vand.u32 %v714, 4294901760
  %716 = vmatpush.msra.mxu0 %v715
  %v717 = vand.u32 %v62, 4294901760
  %v718 = vsub.f32 %v62, %v717
  %v719 = vand.u32 %v718, 4294901760
  %720 = vmatpush.msra.mxu0 %v719
  %v721 = vand.u32 %v57, 4294901760
  %v722 = vsub.f32 %v57, %v721
  %v723 = vand.u32 %v722, 4294901760
  %724 = vmatpush.msra.mxu0 %v723
  %v725 = vand.u32 %v52, 4294901760
  %v726 = vsub.f32 %v52, %v725
  %v727 = vand.u32 %v726, 4294901760
  %728 = vmatpush.msra.mxu0 %v727
  %v729 = vand.u32 %v47, 4294901760
  %v730 = vsub.f32 %v47, %v729
  %v731 = vand.u32 %v730, 4294901760
  %732 = vmatpush.msra.mxu0 %v731
  %v733 = vand.u32 %v42, 4294901760
  %v734 = vsub.f32 %v42, %v733
  %v735 = vand.u32 %v734, 4294901760
  %736 = vmatpush.msra.mxu0 %v735
  %v737 = vand.u32 %v37, 4294901760
  %v738 = vsub.f32 %v37, %v737
  %v739 = vand.u32 %v738, 4294901760
  %740 = vmatpush.msra.mxu0 %v739
  %v741 = vand.u32 %v32, 4294901760
  %v742 = vsub.f32 %v32, %v741
  %v743 = vand.u32 %v742, 4294901760
  %744 = vmatpush.msra.mxu0 %v743
  %v745 = vand.u32 %v27, 4294901760
  %v746 = vsub.f32 %v27, %v745
  %v747 = vand.u32 %v746, 4294901760
  %748 = vmatpush.msra.mxu0 %v747
  %v749 = vand.u32 %v22, 4294901760
  %v750 = vsub.f32 %v22, %v749
  %v751 = vand.u32 %v750, 4294901760
  %752 = vmatpush.msra.mxu0 %v751
  %v753 = vand.u32 %v20, 4294901760
  %754 = vmatmul.f32.gmra.mxu0 %v753
  %v755 = vpop.f32.mrf.mxu0
  %v756 = vadd.f32 %v687, %v755
  %757 = vdwg.mxu0
  %v758 = vand.u32 %v97, 4294901760
  %759 = vmatpush.msra.mxu0 %v758
  %v760 = vand.u32 %v92, 4294901760
  %761 = vmatpush.msra.mxu0 %v760
  %v762 = vand.u32 %v87, 4294901760
  %763 = vmatpush.msra.mxu0 %v762
  %v764 = vand.u32 %v82, 4294901760
  %765 = vmatpush.msra.mxu0 %v764
  %v766 = vand.u32 %v77, 4294901760
  %767 = vmatpush.msra.mxu0 %v766
  %v768 = vand.u32 %v72, 4294901760
  %769 = vmatpush.msra.mxu0 %v768
  %v770 = vand.u32 %v67, 4294901760
  %771 = vmatpush.msra.mxu0 %v770
  %v772 = vand.u32 %v62, 4294901760
  %773 = vmatpush.msra.mxu0 %v772
  %v774 = vand.u32 %v57, 4294901760
  %775 = vmatpush.msra.mxu0 %v774
  %v776 = vand.u32 %v52, 4294901760
  %777 = vmatpush.msra.mxu0 %v776
  %v778 = vand.u32 %v47, 4294901760
  %779 = vmatpush.msra.mxu0 %v778
  %v780 = vand.u32 %v42, 4294901760
  %781 = vmatpush.msra.mxu0 %v780
  %v782 = vand.u32 %v37, 4294901760
  %783 = vmatpush.msra.mxu0 %v782
  %v784 = vand.u32 %v32, 4294901760
  %785 = vmatpush.msra.mxu0 %v784
  %v786 = vand.u32 %v27, 4294901760
  %787 = vmatpush.msra.mxu0 %v786
  %v788 = vand.u32 %v22, 4294901760
  %789 = vmatpush.msra.mxu0 %v788
  %v790 = vand.u32 %v20, 4294901760
  %791 = vmatmul.f32.gmra.mxu0 %v790
  %v792 = vpop.f32.mrf.mxu0
  %v793 = vadd.f32 %v756, %v792
  %794 = vdwg.mxu0
  %v795 = vand.u32 %v98, 4294901760
  %796 = vmatpush.msra.mxu0 %v795
  %v797 = vand.u32 %v93, 4294901760
  %798 = vmatpush.msra.mxu0 %v797
  %v799 = vand.u32 %v88, 4294901760
  %800 = vmatpush.msra.mxu0 %v799
  %v801 = vand.u32 %v83, 4294901760
  %802 = vmatpush.msra.mxu0 %v801
  %v803 = vand.u32 %v78, 4294901760
  %804 = vmatpush.msra.mxu0 %v803
  %v805 = vand.u32 %v73, 4294901760
  %806 = vmatpush.msra.mxu0 %v805
  %v807 = vand.u32 %v68, 4294901760
  %808 = vmatpush.msra.mxu0 %v807
  %v809 = vand.u32 %v63, 4294901760
  %810 = vmatpush.msra.mxu0 %v809
  %v811 = vand.u32 %v58, 4294901760
  %812 = vmatpush.msra.mxu0 %v811
  %v813 = vand.u32 %v53, 4294901760
  %814 = vmatpush.msra.mxu0 %v813
  %v815 = vand.u32 %v48, 4294901760
  %816 = vmatpush.msra.mxu0 %v815
  %v817 = vand.u32 %v43, 4294901760
  %818 = vmatpush.msra.mxu0 %v817
  %v819 = vand.u32 %v38, 4294901760
  %820 = vmatpush.msra.mxu0 %v819
  %v821 = vand.u32 %v33, 4294901760
  %822 = vmatpush.msra.mxu0 %v821
  %v823 = vand.u32 %v28, 4294901760
  %824 = vmatpush.msra.mxu0 %v823
  %v825 = vand.u32 %v23, 4294901760
  %826 = vmatpush.msra.mxu0 %v825
  %v827 = vand.u32 %v20, 4294901760
  %v828 = vsub.f32 %v20, %v827
  %v829 = vand.u32 %v828, 4294901760
  %v830 = vsub.f32 %v828, %v829
  %v831 = vand.u32 %v830, 4294901760
  %832 = vmatmul.f32.gmra.mxu0 %v831
  %v833 = vpop.f32.mrf.mxu0
  %v834 = vadd.f32 %v105, %v833
  %835 = vdwg.mxu0
  %v836 = vand.u32 %v98, 4294901760
  %v837 = vsub.f32 %v98, %v836
  %v838 = vand.u32 %v837, 4294901760
  %v839 = vsub.f32 %v837, %v838
  %v840 = vand.u32 %v839, 4294901760
  %841 = vmatpush.msra.mxu0 %v840
  %v842 = vand.u32 %v93, 4294901760
  %v843 = vsub.f32 %v93, %v842
  %v844 = vand.u32 %v843, 4294901760
  %v845 = vsub.f32 %v843, %v844
  %v846 = vand.u32 %v845, 4294901760
  %847 = vmatpush.msra.mxu0 %v846
  %v848 = vand.u32 %v88, 4294901760
  %v849 = vsub.f32 %v88, %v848
  %v850 = vand.u32 %v849, 4294901760
  %v851 = vsub.f32 %v849, %v850
  %v852 = vand.u32 %v851, 4294901760
  %853 = vmatpush.msra.mxu0 %v852
  %v854 = vand.u32 %v83, 4294901760
  %v855 = vsub.f32 %v83, %v854
  %v856 = vand.u32 %v855, 4294901760
  %v857 = vsub.f32 %v855, %v856
  %v858 = vand.u32 %v857, 4294901760
  %859 = vmatpush.msra.mxu0 %v858
  %v860 = vand.u32 %v78, 4294901760
  %v861 = vsub.f32 %v78, %v860
  %v862 = vand.u32 %v861, 4294901760
  %v863 = vsub.f32 %v861, %v862
  %v864 = vand.u32 %v863, 4294901760
  %865 = vmatpush.msra.mxu0 %v864
  %v866 = vand.u32 %v73, 4294901760
  %v867 = vsub.f32 %v73, %v866
  %v868 = vand.u32 %v867, 4294901760
  %v869 = vsub.f32 %v867, %v868
  %v870 = vand.u32 %v869, 4294901760
  %871 = vmatpush.msra.mxu0 %v870
  %v872 = vand.u32 %v68, 4294901760
  %v873 = vsub.f32 %v68, %v872
  %v874 = vand.u32 %v873, 4294901760
  %v875 = vsub.f32 %v873, %v874
  %v876 = vand.u32 %v875, 4294901760
  %877 = vmatpush.msra.mxu0 %v876
  %v878 = vand.u32 %v63, 4294901760
  %v879 = vsub.f32 %v63, %v878
  %v880 = vand.u32 %v879, 4294901760
  %v881 = vsub.f32 %v879, %v880
  %v882 = vand.u32 %v881, 4294901760
  %883 = vmatpush.msra.mxu0 %v882
  %v884 = vand.u32 %v58, 4294901760
  %v885 = vsub.f32 %v58, %v884
  %v886 = vand.u32 %v885, 4294901760
  %v887 = vsub.f32 %v885, %v886
  %v888 = vand.u32 %v887, 4294901760
  %889 = vmatpush.msra.mxu0 %v888
  %v890 = vand.u32 %v53, 4294901760
  %v891 = vsub.f32 %v53, %v890
  %v892 = vand.u32 %v891, 4294901760
  %v893 = vsub.f32 %v891, %v892
  %v894 = vand.u32 %v893, 4294901760
  %895 = vmatpush.msra.mxu0 %v894
  %v896 = vand.u32 %v48, 4294901760
  %v897 = vsub.f32 %v48, %v896
  %v898 = vand.u32 %v897, 4294901760
  %v899 = vsub.f32 %v897, %v898
  %v900 = vand.u32 %v899, 4294901760
  %901 = vmatpush.msra.mxu0 %v900
  %v902 = vand.u32 %v43, 4294901760
  %v903 = vsub.f32 %v43, %v902
  %v904 = vand.u32 %v903, 4294901760
  %v905 = vsub.f32 %v903, %v904
  %v906 = vand.u32 %v905, 4294901760
  %907 = vmatpush.msra.mxu0 %v906
  %v908 = vand.u32 %v38, 4294901760
  %v909 = vsub.f32 %v38, %v908
  %v910 = vand.u32 %v909, 4294901760
  %v911 = vsub.f32 %v909, %v910
  %v912 = vand.u32 %v911, 4294901760
  %913 = vmatpush.msra.mxu0 %v912
  %v914 = vand.u32 %v33, 4294901760
  %v915 = vsub.f32 %v33, %v914
  %v916 = vand.u32 %v915, 4294901760
  %v917 = vsub.f32 %v915, %v916
  %v918 = vand.u32 %v917, 4294901760
  %919 = vmatpush.msra.mxu0 %v918
  %v920 = vand.u32 %v28, 4294901760
  %v921 = vsub.f32 %v28, %v920
  %v922 = vand.u32 %v921, 4294901760
  %v923 = vsub.f32 %v921, %v922
  %v924 = vand.u32 %v923, 4294901760
  %925 = vmatpush.msra.mxu0 %v924
  %v926 = vand.u32 %v23, 4294901760
  %v927 = vsub.f32 %v23, %v926
  %v928 = vand.u32 %v927, 4294901760
  %v929 = vsub.f32 %v927, %v928
  %v930 = vand.u32 %v929, 4294901760
  %931 = vmatpush.msra.mxu0 %v930
  %v932 = vand.u32 %v20, 4294901760
  %933 = vmatmul.f32.gmra.mxu0 %v932
  %v934 = vpop.f32.mrf.mxu0
  %v935 = vadd.f32 %v834, %v934
  %936 = vdwg.mxu0
  %v937 = vand.u32 %v98, 4294901760
  %v938 = vsub.f32 %v98, %v937
  %939 = vmatpush.msra.mxu0 %v938
  %v940 = vand.u32 %v93, 4294901760
  %v941 = vsub.f32 %v93, %v940
  %942 = vmatpush.msra.mxu0 %v941
  %v943 = vand.u32 %v88, 4294901760
  %v944 = vsub.f32 %v88, %v943
  %945 = vmatpush.msra.mxu0 %v944
  %v946 = vand.u32 %v83, 4294901760
  %v947 = vsub.f32 %v83, %v946
  %948 = vmatpush.msra.mxu0 %v947
  %v949 = vand.u32 %v78, 4294901760
  %v950 = vsub.f32 %v78, %v949
  %951 = vmatpush.msra.mxu0 %v950
  %v952 = vand.u32 %v73, 4294901760
  %v953 = vsub.f32 %v73, %v952
  %954 = vmatpush.msra.mxu0 %v953
  %v955 = vand.u32 %v68, 4294901760
  %v956 = vsub.f32 %v68, %v955
  %957 = vmatpush.msra.mxu0 %v956
  %v958 = vand.u32 %v63, 4294901760
  %v959 = vsub.f32 %v63, %v958
  %960 = vmatpush.msra.mxu0 %v959
  %v961 = vand.u32 %v58, 4294901760
  %v962 = vsub.f32 %v58, %v961
  %963 = vmatpush.msra.mxu0 %v962
  %v964 = vand.u32 %v53, 4294901760
  %v965 = vsub.f32 %v53, %v964
  %966 = vmatpush.msra.mxu0 %v965
  %v967 = vand.u32 %v48, 4294901760
  %v968 = vsub.f32 %v48, %v967
  %969 = vmatpush.msra.mxu0 %v968
  %v970 = vand.u32 %v43, 4294901760
  %v971 = vsub.f32 %v43, %v970
  %972 = vmatpush.msra.mxu0 %v971
  %v973 = vand.u32 %v38, 4294901760
  %v974 = vsub.f32 %v38, %v973
  %975 = vmatpush.msra.mxu0 %v974
  %v976 = vand.u32 %v33, 4294901760
  %v977 = vsub.f32 %v33, %v976
  %978 = vmatpush.msra.mxu0 %v977
  %v979 = vand.u32 %v28, 4294901760
  %v980 = vsub.f32 %v28, %v979
  %981 = vmatpush.msra.mxu0 %v980
  %v982 = vand.u32 %v23, 4294901760
  %v983 = vsub.f32 %v23, %v982
  %984 = vmatpush.msra.mxu0 %v983
  %v985 = vand.u32 %v20, 4294901760
  %v986 = vsub.f32 %v20, %v985
  %987 = vmatmul.f32.gmra.mxu0 %v986
  %v988 = vpop.f32.mrf.mxu0
  %v989 = vadd.f32 %v935, %v988
  %990 = vdwg.mxu0
  %v991 = vand.u32 %v98, 4294901760
  %992 = vmatpush.msra.mxu0 %v991
  %v993 = vand.u32 %v93, 4294901760
  %994 = vmatpush.msra.mxu0 %v993
  %v995 = vand.u32 %v88, 4294901760
  %996 = vmatpush.msra.mxu0 %v995
  %v997 = vand.u32 %v83, 4294901760
  %998 = vmatpush.msra.mxu0 %v997
  %v999 = vand.u32 %v78, 4294901760
  %1000 = vmatpush.msra.mxu0 %v999
  %v1001 = vand.u32 %v73, 4294901760
  %1002 = vmatpush.msra.mxu0 %v1001
  %v1003 = vand.u32 %v68, 4294901760
  %1004 = vmatpush.msra.mxu0 %v1003
  %v1005 = vand.u32 %v63, 4294901760
  %1006 = vmatpush.msra.mxu0 %v1005
  %v1007 = vand.u32 %v58, 4294901760
  %1008 = vmatpush.msra.mxu0 %v1007
  %v1009 = vand.u32 %v53, 4294901760
  %1010 = vmatpush.msra.mxu0 %v1009
  %v1011 = vand.u32 %v48, 4294901760
  %1012 = vmatpush.msra.mxu0 %v1011
  %v1013 = vand.u32 %v43, 4294901760
  %1014 = vmatpush.msra.mxu0 %v1013
  %v1015 = vand.u32 %v38, 4294901760
  %1016 = vmatpush.msra.mxu0 %v1015
  %v1017 = vand.u32 %v33, 4294901760
  %1018 = vmatpush.msra.mxu0 %v1017
  %v1019 = vand.u32 %v28, 4294901760
  %1020 = vmatpush.msra.mxu0 %v1019
  %v1021 = vand.u32 %v23, 4294901760
  %1022 = vmatpush.msra.mxu0 %v1021
  %v1023 = vand.u32 %v20, 4294901760
  %v1024 = vsub.f32 %v20, %v1023
  %v1025 = vand.u32 %v1024, 4294901760
  %1026 = vmatmul.f32.gmra.mxu0 %v1025
  %v1027 = vpop.f32.mrf.mxu0
  %v1028 = vadd.f32 %v989, %v1027
  %1029 = vdwg.mxu0
  %v1030 = vand.u32 %v98, 4294901760
  %v1031 = vsub.f32 %v98, %v1030
  %v1032 = vand.u32 %v1031, 4294901760
  %1033 = vmatpush.msra.mxu0 %v1032
  %v1034 = vand.u32 %v93, 4294901760
  %v1035 = vsub.f32 %v93, %v1034
  %v1036 = vand.u32 %v1035, 4294901760
  %1037 = vmatpush.msra.mxu0 %v1036
  %v1038 = vand.u32 %v88, 4294901760
  %v1039 = vsub.f32 %v88, %v1038
  %v1040 = vand.u32 %v1039, 4294901760
  %1041 = vmatpush.msra.mxu0 %v1040
  %v1042 = vand.u32 %v83, 4294901760
  %v1043 = vsub.f32 %v83, %v1042
  %v1044 = vand.u32 %v1043, 4294901760
  %1045 = vmatpush.msra.mxu0 %v1044
  %v1046 = vand.u32 %v78, 4294901760
  %v1047 = vsub.f32 %v78, %v1046
  %v1048 = vand.u32 %v1047, 4294901760
  %1049 = vmatpush.msra.mxu0 %v1048
  %v1050 = vand.u32 %v73, 4294901760
  %v1051 = vsub.f32 %v73, %v1050
  %v1052 = vand.u32 %v1051, 4294901760
  %1053 = vmatpush.msra.mxu0 %v1052
  %v1054 = vand.u32 %v68, 4294901760
  %v1055 = vsub.f32 %v68, %v1054
  %v1056 = vand.u32 %v1055, 4294901760
  %1057 = vmatpush.msra.mxu0 %v1056
  %v1058 = vand.u32 %v63, 4294901760
  %v1059 = vsub.f32 %v63, %v1058
  %v1060 = vand.u32 %v1059, 4294901760
  %1061 = vmatpush.msra.mxu0 %v1060
  %v1062 = vand.u32 %v58, 4294901760
  %v1063 = vsub.f32 %v58, %v1062
  %v1064 = vand.u32 %v1063, 4294901760
  %1065 = vmatpush.msra.mxu0 %v1064
  %v1066 = vand.u32 %v53, 4294901760
  %v1067 = vsub.f32 %v53, %v1066
  %v1068 = vand.u32 %v1067, 4294901760
  %1069 = vmatpush.msra.mxu0 %v1068
  %v1070 = vand.u32 %v48, 4294901760
  %v1071 = vsub.f32 %v48, %v1070
  %v1072 = vand.u32 %v1071, 4294901760
  %1073 = vmatpush.msra.mxu0 %v1072
  %v1074 = vand.u32 %v43, 4294901760
  %v1075 = vsub.f32 %v43, %v1074
  %v1076 = vand.u32 %v1075, 4294901760
  %1077 = vmatpush.msra.mxu0 %v1076
  %v1078 = vand.u32 %v38, 4294901760
  %v1079 = vsub.f32 %v38, %v1078
  %v1080 = vand.u32 %v1079, 4294901760
  %1081 = vmatpush.msra.mxu0 %v1080
  %v1082 = vand.u32 %v33, 4294901760
  %v1083 = vsub.f32 %v33, %v1082
  %v1084 = vand.u32 %v1083, 4294901760
  %1085 = vmatpush.msra.mxu0 %v1084
  %v1086 = vand.u32 %v28, 4294901760
  %v1087 = vsub.f32 %v28, %v1086
  %v1088 = vand.u32 %v1087, 4294901760
  %1089 = vmatpush.msra.mxu0 %v1088
  %v1090 = vand.u32 %v23, 4294901760
  %v1091 = vsub.f32 %v23, %v1090
  %v1092 = vand.u32 %v1091, 4294901760
  %1093 = vmatpush.msra.mxu0 %v1092
  %v1094 = vand.u32 %v20, 4294901760
  %1095 = vmatmul.f32.gmra.mxu0 %v1094
  %v1096 = vpop.f32.mrf.mxu0
  %v1097 = vadd.f32 %v1028, %v1096
  %1098 = vdwg.mxu0
  %v1099 = vand.u32 %v98, 4294901760
  %1100 = vmatpush.msra.mxu0 %v1099
  %v1101 = vand.u32 %v93, 4294901760
  %1102 = vmatpush.msra.mxu0 %v1101
  %v1103 = vand.u32 %v88, 4294901760
  %1104 = vmatpush.msra.mxu0 %v1103
  %v1105 = vand.u32 %v83, 4294901760
  %1106 = vmatpush.msra.mxu0 %v1105
  %v1107 = vand.u32 %v78, 4294901760
  %1108 = vmatpush.msra.mxu0 %v1107
  %v1109 = vand.u32 %v73, 4294901760
  %1110 = vmatpush.msra.mxu0 %v1109
  %v1111 = vand.u32 %v68, 4294901760
  %1112 = vmatpush.msra.mxu0 %v1111
  %v1113 = vand.u32 %v63, 4294901760
  %1114 = vmatpush.msra.mxu0 %v1113
  %v1115 = vand.u32 %v58, 4294901760
  %1116 = vmatpush.msra.mxu0 %v1115
  %v1117 = vand.u32 %v53, 4294901760
  %1118 = vmatpush.msra.mxu0 %v1117
  %v1119 = vand.u32 %v48, 4294901760
  %1120 = vmatpush.msra.mxu0 %v1119
  %v1121 = vand.u32 %v43, 4294901760
  %1122 = vmatpush.msra.mxu0 %v1121
  %v1123 = vand.u32 %v38, 4294901760
  %1124 = vmatpush.msra.mxu0 %v1123
  %v1125 = vand.u32 %v33, 4294901760
  %1126 = vmatpush.msra.mxu0 %v1125
  %v1127 = vand.u32 %v28, 4294901760
  %1128 = vmatpush.msra.mxu0 %v1127
  %v1129 = vand.u32 %v23, 4294901760
  %1130 = vmatpush.msra.mxu0 %v1129
  %v1131 = vand.u32 %v20, 4294901760
  %1132 = vmatmul.f32.gmra.mxu0 %v1131
  %v1133 = vpop.f32.mrf.mxu0
  %v1134 = vadd.f32 %v1097, %v1133
  %1135 = vdwg.mxu0
  %v1136 = vand.u32 %v99, 4294901760
  %1137 = vmatpush.msra.mxu0 %v1136
  %v1138 = vand.u32 %v94, 4294901760
  %1139 = vmatpush.msra.mxu0 %v1138
  %v1140 = vand.u32 %v89, 4294901760
  %1141 = vmatpush.msra.mxu0 %v1140
  %v1142 = vand.u32 %v84, 4294901760
  %1143 = vmatpush.msra.mxu0 %v1142
  %v1144 = vand.u32 %v79, 4294901760
  %1145 = vmatpush.msra.mxu0 %v1144
  %v1146 = vand.u32 %v74, 4294901760
  %1147 = vmatpush.msra.mxu0 %v1146
  %v1148 = vand.u32 %v69, 4294901760
  %1149 = vmatpush.msra.mxu0 %v1148
  %v1150 = vand.u32 %v64, 4294901760
  %1151 = vmatpush.msra.mxu0 %v1150
  %v1152 = vand.u32 %v59, 4294901760
  %1153 = vmatpush.msra.mxu0 %v1152
  %v1154 = vand.u32 %v54, 4294901760
  %1155 = vmatpush.msra.mxu0 %v1154
  %v1156 = vand.u32 %v49, 4294901760
  %1157 = vmatpush.msra.mxu0 %v1156
  %v1158 = vand.u32 %v44, 4294901760
  %1159 = vmatpush.msra.mxu0 %v1158
  %v1160 = vand.u32 %v39, 4294901760
  %1161 = vmatpush.msra.mxu0 %v1160
  %v1162 = vand.u32 %v34, 4294901760
  %1163 = vmatpush.msra.mxu0 %v1162
  %v1164 = vand.u32 %v29, 4294901760
  %1165 = vmatpush.msra.mxu0 %v1164
  %v1166 = vand.u32 %v24, 4294901760
  %1167 = vmatpush.msra.mxu0 %v1166
  %v1168 = vand.u32 %v20, 4294901760
  %v1169 = vsub.f32 %v20, %v1168
  %v1170 = vand.u32 %v1169, 4294901760
  %v1171 = vsub.f32 %v1169, %v1170
  %v1172 = vand.u32 %v1171, 4294901760
  %1173 = vmatmul.f32.gmra.mxu0 %v1172
  %v1174 = vpop.f32.mrf.mxu0
  %v1175 = vadd.f32 %v106, %v1174
  %1176 = vdwg.mxu0
  %v1177 = vand.u32 %v99, 4294901760
  %v1178 = vsub.f32 %v99, %v1177
  %v1179 = vand.u32 %v1178, 4294901760
  %v1180 = vsub.f32 %v1178, %v1179
  %v1181 = vand.u32 %v1180, 4294901760
  %1182 = vmatpush.msra.mxu0 %v1181
  %v1183 = vand.u32 %v94, 4294901760
  %v1184 = vsub.f32 %v94, %v1183
  %v1185 = vand.u32 %v1184, 4294901760
  %v1186 = vsub.f32 %v1184, %v1185
  %v1187 = vand.u32 %v1186, 4294901760
  %1188 = vmatpush.msra.mxu0 %v1187
  %v1189 = vand.u32 %v89, 4294901760
  %v1190 = vsub.f32 %v89, %v1189
  %v1191 = vand.u32 %v1190, 4294901760
  %v1192 = vsub.f32 %v1190, %v1191
  %v1193 = vand.u32 %v1192, 4294901760
  %1194 = vmatpush.msra.mxu0 %v1193
  %v1195 = vand.u32 %v84, 4294901760
  %v1196 = vsub.f32 %v84, %v1195
  %v1197 = vand.u32 %v1196, 4294901760
  %v1198 = vsub.f32 %v1196, %v1197
  %v1199 = vand.u32 %v1198, 4294901760
  %1200 = vmatpush.msra.mxu0 %v1199
  %v1201 = vand.u32 %v79, 4294901760
  %v1202 = vsub.f32 %v79, %v1201
  %v1203 = vand.u32 %v1202, 4294901760
  %v1204 = vsub.f32 %v1202, %v1203
  %v1205 = vand.u32 %v1204, 4294901760
  %1206 = vmatpush.msra.mxu0 %v1205
  %v1207 = vand.u32 %v74, 4294901760
  %v1208 = vsub.f32 %v74, %v1207
  %v1209 = vand.u32 %v1208, 4294901760
  %v1210 = vsub.f32 %v1208, %v1209
  %v1211 = vand.u32 %v1210, 4294901760
  %1212 = vmatpush.msra.mxu0 %v1211
  %v1213 = vand.u32 %v69, 4294901760
  %v1214 = vsub.f32 %v69, %v1213
  %v1215 = vand.u32 %v1214, 4294901760
  %v1216 = vsub.f32 %v1214, %v1215
  %v1217 = vand.u32 %v1216, 4294901760
  %1218 = vmatpush.msra.mxu0 %v1217
  %v1219 = vand.u32 %v64, 4294901760
  %v1220 = vsub.f32 %v64, %v1219
  %v1221 = vand.u32 %v1220, 4294901760
  %v1222 = vsub.f32 %v1220, %v1221
  %v1223 = vand.u32 %v1222, 4294901760
  %1224 = vmatpush.msra.mxu0 %v1223
  %v1225 = vand.u32 %v59, 4294901760
  %v1226 = vsub.f32 %v59, %v1225
  %v1227 = vand.u32 %v1226, 4294901760
  %v1228 = vsub.f32 %v1226, %v1227
  %v1229 = vand.u32 %v1228, 4294901760
  %1230 = vmatpush.msra.mxu0 %v1229
  %v1231 = vand.u32 %v54, 4294901760
  %v1232 = vsub.f32 %v54, %v1231
  %v1233 = vand.u32 %v1232, 4294901760
  %v1234 = vsub.f32 %v1232, %v1233
  %v1235 = vand.u32 %v1234, 4294901760
  %1236 = vmatpush.msra.mxu0 %v1235
  %v1237 = vand.u32 %v49, 4294901760
  %v1238 = vsub.f32 %v49, %v1237
  %v1239 = vand.u32 %v1238, 4294901760
  %v1240 = vsub.f32 %v1238, %v1239
  %v1241 = vand.u32 %v1240, 4294901760
  %1242 = vmatpush.msra.mxu0 %v1241
  %v1243 = vand.u32 %v44, 4294901760
  %v1244 = vsub.f32 %v44, %v1243
  %v1245 = vand.u32 %v1244, 4294901760
  %v1246 = vsub.f32 %v1244, %v1245
  %v1247 = vand.u32 %v1246, 4294901760
  %1248 = vmatpush.msra.mxu0 %v1247
  %v1249 = vand.u32 %v39, 4294901760
  %v1250 = vsub.f32 %v39, %v1249
  %v1251 = vand.u32 %v1250, 4294901760
  %v1252 = vsub.f32 %v1250, %v1251
  %v1253 = vand.u32 %v1252, 4294901760
  %1254 = vmatpush.msra.mxu0 %v1253
  %v1255 = vand.u32 %v34, 4294901760
  %v1256 = vsub.f32 %v34, %v1255
  %v1257 = vand.u32 %v1256, 4294901760
  %v1258 = vsub.f32 %v1256, %v1257
  %v1259 = vand.u32 %v1258, 4294901760
  %1260 = vmatpush.msra.mxu0 %v1259
  %v1261 = vand.u32 %v29, 4294901760
  %v1262 = vsub.f32 %v29, %v1261
  %v1263 = vand.u32 %v1262, 4294901760
  %v1264 = vsub.f32 %v1262, %v1263
  %v1265 = vand.u32 %v1264, 4294901760
  %1266 = vmatpush.msra.mxu0 %v1265
  %v1267 = vand.u32 %v24, 4294901760
  %v1268 = vsub.f32 %v24, %v1267
  %v1269 = vand.u32 %v1268, 4294901760
  %v1270 = vsub.f32 %v1268, %v1269
  %v1271 = vand.u32 %v1270, 4294901760
  %1272 = vmatpush.msra.mxu0 %v1271
  %v1273 = vand.u32 %v20, 4294901760
  %1274 = vmatmul.f32.gmra.mxu0 %v1273
  %v1275 = vpop.f32.mrf.mxu0
  %v1276 = vadd.f32 %v1175, %v1275
  %1277 = vdwg.mxu0
  %v1278 = vand.u32 %v99, 4294901760
  %v1279 = vsub.f32 %v99, %v1278
  %1280 = vmatpush.msra.mxu0 %v1279
  %v1281 = vand.u32 %v94, 4294901760
  %v1282 = vsub.f32 %v94, %v1281
  %1283 = vmatpush.msra.mxu0 %v1282
  %v1284 = vand.u32 %v89, 4294901760
  %v1285 = vsub.f32 %v89, %v1284
  %1286 = vmatpush.msra.mxu0 %v1285
  %v1287 = vand.u32 %v84, 4294901760
  %v1288 = vsub.f32 %v84, %v1287
  %1289 = vmatpush.msra.mxu0 %v1288
  %v1290 = vand.u32 %v79, 4294901760
  %v1291 = vsub.f32 %v79, %v1290
  %1292 = vmatpush.msra.mxu0 %v1291
  %v1293 = vand.u32 %v74, 4294901760
  %v1294 = vsub.f32 %v74, %v1293
  %1295 = vmatpush.msra.mxu0 %v1294
  %v1296 = vand.u32 %v69, 4294901760
  %v1297 = vsub.f32 %v69, %v1296
  %1298 = vmatpush.msra.mxu0 %v1297
  %v1299 = vand.u32 %v64, 4294901760
  %v1300 = vsub.f32 %v64, %v1299
  %1301 = vmatpush.msra.mxu0 %v1300
  %v1302 = vand.u32 %v59, 4294901760
  %v1303 = vsub.f32 %v59, %v1302
  %1304 = vmatpush.msra.mxu0 %v1303
  %v1305 = vand.u32 %v54, 4294901760
  %v1306 = vsub.f32 %v54, %v1305
  %1307 = vmatpush.msra.mxu0 %v1306
  %v1308 = vand.u32 %v49, 4294901760
  %v1309 = vsub.f32 %v49, %v1308
  %1310 = vmatpush.msra.mxu0 %v1309
  %v1311 = vand.u32 %v44, 4294901760
  %v1312 = vsub.f32 %v44, %v1311
  %1313 = vmatpush.msra.mxu0 %v1312
  %v1314 = vand.u32 %v39, 4294901760
  %v1315 = vsub.f32 %v39, %v1314
  %1316 = vmatpush.msra.mxu0 %v1315
  %v1317 = vand.u32 %v34, 4294901760
  %v1318 = vsub.f32 %v34, %v1317
  %1319 = vmatpush.msra.mxu0 %v1318
  %v1320 = vand.u32 %v29, 4294901760
  %v1321 = vsub.f32 %v29, %v1320
  %1322 = vmatpush.msra.mxu0 %v1321
  %v1323 = vand.u32 %v24, 4294901760
  %v1324 = vsub.f32 %v24, %v1323
  %1325 = vmatpush.msra.mxu0 %v1324
  %v1326 = vand.u32 %v20, 4294901760
  %v1327 = vsub.f32 %v20, %v1326
  %1328 = vmatmul.f32.gmra.mxu0 %v1327
  %v1329 = vpop.f32.mrf.mxu0
  %v1330 = vadd.f32 %v1276, %v1329
  %1331 = vdwg.mxu0
  %v1332 = vand.u32 %v99, 4294901760
  %1333 = vmatpush.msra.mxu0 %v1332
  %v1334 = vand.u32 %v94, 4294901760
  %1335 = vmatpush.msra.mxu0 %v1334
  %v1336 = vand.u32 %v89, 4294901760
  %1337 = vmatpush.msra.mxu0 %v1336
  %v1338 = vand.u32 %v84, 4294901760
  %1339 = vmatpush.msra.mxu0 %v1338
  %v1340 = vand.u32 %v79, 4294901760
  %1341 = vmatpush.msra.mxu0 %v1340
  %v1342 = vand.u32 %v74, 4294901760
  %1343 = vmatpush.msra.mxu0 %v1342
  %v1344 = vand.u32 %v69, 4294901760
  %1345 = vmatpush.msra.mxu0 %v1344
  %v1346 = vand.u32 %v64, 4294901760
  %1347 = vmatpush.msra.mxu0 %v1346
  %v1348 = vand.u32 %v59, 4294901760
  %1349 = vmatpush.msra.mxu0 %v1348
  %v1350 = vand.u32 %v54, 4294901760
  %1351 = vmatpush.msra.mxu0 %v1350
  %v1352 = vand.u32 %v49, 4294901760
  %1353 = vmatpush.msra.mxu0 %v1352
  %v1354 = vand.u32 %v44, 4294901760
  %1355 = vmatpush.msra.mxu0 %v1354
  %v1356 = vand.u32 %v39, 4294901760
  %1357 = vmatpush.msra.mxu0 %v1356
  %v1358 = vand.u32 %v34, 4294901760
  %1359 = vmatpush.msra.mxu0 %v1358
  %v1360 = vand.u32 %v29, 4294901760
  %1361 = vmatpush.msra.mxu0 %v1360
  %v1362 = vand.u32 %v24, 4294901760
  %1363 = vmatpush.msra.mxu0 %v1362
  %v1364 = vand.u32 %v20, 4294901760
  %v1365 = vsub.f32 %v20, %v1364
  %v1366 = vand.u32 %v1365, 4294901760
  %1367 = vmatmul.f32.gmra.mxu0 %v1366
  %v1368 = vpop.f32.mrf.mxu0
  %v1369 = vadd.f32 %v1330, %v1368
  %1370 = vdwg.mxu0
  %v1371 = vand.u32 %v99, 4294901760
  %v1372 = vsub.f32 %v99, %v1371
  %v1373 = vand.u32 %v1372, 4294901760
  %1374 = vmatpush.msra.mxu0 %v1373
  %v1375 = vand.u32 %v94, 4294901760
  %v1376 = vsub.f32 %v94, %v1375
  %v1377 = vand.u32 %v1376, 4294901760
  %1378 = vmatpush.msra.mxu0 %v1377
  %v1379 = vand.u32 %v89, 4294901760
  %v1380 = vsub.f32 %v89, %v1379
  %v1381 = vand.u32 %v1380, 4294901760
  %1382 = vmatpush.msra.mxu0 %v1381
  %v1383 = vand.u32 %v84, 4294901760
  %v1384 = vsub.f32 %v84, %v1383
  %v1385 = vand.u32 %v1384, 4294901760
  %1386 = vmatpush.msra.mxu0 %v1385
  %v1387 = vand.u32 %v79, 4294901760
  %v1388 = vsub.f32 %v79, %v1387
  %v1389 = vand.u32 %v1388, 4294901760
  %1390 = vmatpush.msra.mxu0 %v1389
  %v1391 = vand.u32 %v74, 4294901760
  %v1392 = vsub.f32 %v74, %v1391
  %v1393 = vand.u32 %v1392, 4294901760
  %1394 = vmatpush.msra.mxu0 %v1393
  %v1395 = vand.u32 %v69, 4294901760
  %v1396 = vsub.f32 %v69, %v1395
  %v1397 = vand.u32 %v1396, 4294901760
  %1398 = vmatpush.msra.mxu0 %v1397
  %v1399 = vand.u32 %v64, 4294901760
  %v1400 = vsub.f32 %v64, %v1399
  %v1401 = vand.u32 %v1400, 4294901760
  %1402 = vmatpush.msra.mxu0 %v1401
  %v1403 = vand.u32 %v59, 4294901760
  %v1404 = vsub.f32 %v59, %v1403
  %v1405 = vand.u32 %v1404, 4294901760
  %1406 = vmatpush.msra.mxu0 %v1405
  %v1407 = vand.u32 %v54, 4294901760
  %v1408 = vsub.f32 %v54, %v1407
  %v1409 = vand.u32 %v1408, 4294901760
  %1410 = vmatpush.msra.mxu0 %v1409
  %v1411 = vand.u32 %v49, 4294901760
  %v1412 = vsub.f32 %v49, %v1411
  %v1413 = vand.u32 %v1412, 4294901760
  %1414 = vmatpush.msra.mxu0 %v1413
  %v1415 = vand.u32 %v44, 4294901760
  %v1416 = vsub.f32 %v44, %v1415
  %v1417 = vand.u32 %v1416, 4294901760
  %1418 = vmatpush.msra.mxu0 %v1417
  %v1419 = vand.u32 %v39, 4294901760
  %v1420 = vsub.f32 %v39, %v1419
  %v1421 = vand.u32 %v1420, 4294901760
  %1422 = vmatpush.msra.mxu0 %v1421
  %v1423 = vand.u32 %v34, 4294901760
  %v1424 = vsub.f32 %v34, %v1423
  %v1425 = vand.u32 %v1424, 4294901760
  %1426 = vmatpush.msra.mxu0 %v1425
  %v1427 = vand.u32 %v29, 4294901760
  %v1428 = vsub.f32 %v29, %v1427
  %v1429 = vand.u32 %v1428, 4294901760
  %1430 = vmatpush.msra.mxu0 %v1429
  %v1431 = vand.u32 %v24, 4294901760
  %v1432 = vsub.f32 %v24, %v1431
  %v1433 = vand.u32 %v1432, 4294901760
  %1434 = vmatpush.msra.mxu0 %v1433
  %v1435 = vand.u32 %v20, 4294901760
  %1436 = vmatmul.f32.gmra.mxu0 %v1435
  %v1437 = vpop.f32.mrf.mxu0
  %v1438 = vadd.f32 %v1369, %v1437
  %1439 = vdwg.mxu0
  %v1440 = vand.u32 %v99, 4294901760
  %1441 = vmatpush.msra.mxu0 %v1440
  %v1442 = vand.u32 %v94, 4294901760
  %1443 = vmatpush.msra.mxu0 %v1442
  %v1444 = vand.u32 %v89, 4294901760
  %1445 = vmatpush.msra.mxu0 %v1444
  %v1446 = vand.u32 %v84, 4294901760
  %1447 = vmatpush.msra.mxu0 %v1446
  %v1448 = vand.u32 %v79, 4294901760
  %1449 = vmatpush.msra.mxu0 %v1448
  %v1450 = vand.u32 %v74, 4294901760
  %1451 = vmatpush.msra.mxu0 %v1450
  %v1452 = vand.u32 %v69, 4294901760
  %1453 = vmatpush.msra.mxu0 %v1452
  %v1454 = vand.u32 %v64, 4294901760
  %1455 = vmatpush.msra.mxu0 %v1454
  %v1456 = vand.u32 %v59, 4294901760
  %1457 = vmatpush.msra.mxu0 %v1456
  %v1458 = vand.u32 %v54, 4294901760
  %1459 = vmatpush.msra.mxu0 %v1458
  %v1460 = vand.u32 %v49, 4294901760
  %1461 = vmatpush.msra.mxu0 %v1460
  %v1462 = vand.u32 %v44, 4294901760
  %1463 = vmatpush.msra.mxu0 %v1462
  %v1464 = vand.u32 %v39, 4294901760
  %1465 = vmatpush.msra.mxu0 %v1464
  %v1466 = vand.u32 %v34, 4294901760
  %1467 = vmatpush.msra.mxu0 %v1466
  %v1468 = vand.u32 %v29, 4294901760
  %1469 = vmatpush.msra.mxu0 %v1468
  %v1470 = vand.u32 %v24, 4294901760
  %1471 = vmatpush.msra.mxu0 %v1470
  %v1472 = vand.u32 %v20, 4294901760
  %1473 = vmatmul.f32.gmra.mxu0 %v1472
  %v1474 = vpop.f32.mrf.mxu0
  %v1475 = vadd.f32 %v1438, %v1474
  %1476 = vdwg.mxu0
  %v1477 = vand.u32 %v100, 4294901760
  %1478 = vmatpush.msra.mxu0 %v1477
  %v1479 = vand.u32 %v95, 4294901760
  %1480 = vmatpush.msra.mxu0 %v1479
  %v1481 = vand.u32 %v90, 4294901760
  %1482 = vmatpush.msra.mxu0 %v1481
  %v1483 = vand.u32 %v85, 4294901760
  %1484 = vmatpush.msra.mxu0 %v1483
  %v1485 = vand.u32 %v80, 4294901760
  %1486 = vmatpush.msra.mxu0 %v1485
  %v1487 = vand.u32 %v75, 4294901760
  %1488 = vmatpush.msra.mxu0 %v1487
  %v1489 = vand.u32 %v70, 4294901760
  %1490 = vmatpush.msra.mxu0 %v1489
  %v1491 = vand.u32 %v65, 4294901760
  %1492 = vmatpush.msra.mxu0 %v1491
  %v1493 = vand.u32 %v60, 4294901760
  %1494 = vmatpush.msra.mxu0 %v1493
  %v1495 = vand.u32 %v55, 4294901760
  %1496 = vmatpush.msra.mxu0 %v1495
  %v1497 = vand.u32 %v50, 4294901760
  %1498 = vmatpush.msra.mxu0 %v1497
  %v1499 = vand.u32 %v45, 4294901760
  %1500 = vmatpush.msra.mxu0 %v1499
  %v1501 = vand.u32 %v40, 4294901760
  %1502 = vmatpush.msra.mxu0 %v1501
  %v1503 = vand.u32 %v35, 4294901760
  %1504 = vmatpush.msra.mxu0 %v1503
  %v1505 = vand.u32 %v30, 4294901760
  %1506 = vmatpush.msra.mxu0 %v1505
  %v1507 = vand.u32 %v25, 4294901760
  %1508 = vmatpush.msra.mxu0 %v1507
  %v1509 = vand.u32 %v20, 4294901760
  %v1510 = vsub.f32 %v20, %v1509
  %v1511 = vand.u32 %v1510, 4294901760
  %v1512 = vsub.f32 %v1510, %v1511
  %v1513 = vand.u32 %v1512, 4294901760
  %1514 = vmatmul.f32.gmra.mxu0 %v1513
  %v1515 = vpop.f32.mrf.mxu0
  %v1516 = vadd.f32 %v107, %v1515
  %1517 = vdwg.mxu0
  %v1518 = vand.u32 %v100, 4294901760
  %v1519 = vsub.f32 %v100, %v1518
  %v1520 = vand.u32 %v1519, 4294901760
  %v1521 = vsub.f32 %v1519, %v1520
  %v1522 = vand.u32 %v1521, 4294901760
  %1523 = vmatpush.msra.mxu0 %v1522
  %v1524 = vand.u32 %v95, 4294901760
  %v1525 = vsub.f32 %v95, %v1524
  %v1526 = vand.u32 %v1525, 4294901760
  %v1527 = vsub.f32 %v1525, %v1526
  %v1528 = vand.u32 %v1527, 4294901760
  %1529 = vmatpush.msra.mxu0 %v1528
  %v1530 = vand.u32 %v90, 4294901760
  %v1531 = vsub.f32 %v90, %v1530
  %v1532 = vand.u32 %v1531, 4294901760
  %v1533 = vsub.f32 %v1531, %v1532
  %v1534 = vand.u32 %v1533, 4294901760
  %1535 = vmatpush.msra.mxu0 %v1534
  %v1536 = vand.u32 %v85, 4294901760
  %v1537 = vsub.f32 %v85, %v1536
  %v1538 = vand.u32 %v1537, 4294901760
  %v1539 = vsub.f32 %v1537, %v1538
  %v1540 = vand.u32 %v1539, 4294901760
  %1541 = vmatpush.msra.mxu0 %v1540
  %v1542 = vand.u32 %v80, 4294901760
  %v1543 = vsub.f32 %v80, %v1542
  %v1544 = vand.u32 %v1543, 4294901760
  %v1545 = vsub.f32 %v1543, %v1544
  %v1546 = vand.u32 %v1545, 4294901760
  %1547 = vmatpush.msra.mxu0 %v1546
  %v1548 = vand.u32 %v75, 4294901760
  %v1549 = vsub.f32 %v75, %v1548
  %v1550 = vand.u32 %v1549, 4294901760
  %v1551 = vsub.f32 %v1549, %v1550
  %v1552 = vand.u32 %v1551, 4294901760
  %1553 = vmatpush.msra.mxu0 %v1552
  %v1554 = vand.u32 %v70, 4294901760
  %v1555 = vsub.f32 %v70, %v1554
  %v1556 = vand.u32 %v1555, 4294901760
  %v1557 = vsub.f32 %v1555, %v1556
  %v1558 = vand.u32 %v1557, 4294901760
  %1559 = vmatpush.msra.mxu0 %v1558
  %v1560 = vand.u32 %v65, 4294901760
  %v1561 = vsub.f32 %v65, %v1560
  %v1562 = vand.u32 %v1561, 4294901760
  %v1563 = vsub.f32 %v1561, %v1562
  %v1564 = vand.u32 %v1563, 4294901760
  %1565 = vmatpush.msra.mxu0 %v1564
  %v1566 = vand.u32 %v60, 4294901760
  %v1567 = vsub.f32 %v60, %v1566
  %v1568 = vand.u32 %v1567, 4294901760
  %v1569 = vsub.f32 %v1567, %v1568
  %v1570 = vand.u32 %v1569, 4294901760
  %1571 = vmatpush.msra.mxu0 %v1570
  %v1572 = vand.u32 %v55, 4294901760
  %v1573 = vsub.f32 %v55, %v1572
  %v1574 = vand.u32 %v1573, 4294901760
  %v1575 = vsub.f32 %v1573, %v1574
  %v1576 = vand.u32 %v1575, 4294901760
  %1577 = vmatpush.msra.mxu0 %v1576
  %v1578 = vand.u32 %v50, 4294901760
  %v1579 = vsub.f32 %v50, %v1578
  %v1580 = vand.u32 %v1579, 4294901760
  %v1581 = vsub.f32 %v1579, %v1580
  %v1582 = vand.u32 %v1581, 4294901760
  %1583 = vmatpush.msra.mxu0 %v1582
  %v1584 = vand.u32 %v45, 4294901760
  %v1585 = vsub.f32 %v45, %v1584
  %v1586 = vand.u32 %v1585, 4294901760
  %v1587 = vsub.f32 %v1585, %v1586
  %v1588 = vand.u32 %v1587, 4294901760
  %1589 = vmatpush.msra.mxu0 %v1588
  %v1590 = vand.u32 %v40, 4294901760
  %v1591 = vsub.f32 %v40, %v1590
  %v1592 = vand.u32 %v1591, 4294901760
  %v1593 = vsub.f32 %v1591, %v1592
  %v1594 = vand.u32 %v1593, 4294901760
  %1595 = vmatpush.msra.mxu0 %v1594
  %v1596 = vand.u32 %v35, 4294901760
  %v1597 = vsub.f32 %v35, %v1596
  %v1598 = vand.u32 %v1597, 4294901760
  %v1599 = vsub.f32 %v1597, %v1598
  %v1600 = vand.u32 %v1599, 4294901760
  %1601 = vmatpush.msra.mxu0 %v1600
  %v1602 = vand.u32 %v30, 4294901760
  %v1603 = vsub.f32 %v30, %v1602
  %v1604 = vand.u32 %v1603, 4294901760
  %v1605 = vsub.f32 %v1603, %v1604
  %v1606 = vand.u32 %v1605, 4294901760
  %1607 = vmatpush.msra.mxu0 %v1606
  %v1608 = vand.u32 %v25, 4294901760
  %v1609 = vsub.f32 %v25, %v1608
  %v1610 = vand.u32 %v1609, 4294901760
  %v1611 = vsub.f32 %v1609, %v1610
  %v1612 = vand.u32 %v1611, 4294901760
  %1613 = vmatpush.msra.mxu0 %v1612
  %v1614 = vand.u32 %v20, 4294901760
  %1615 = vmatmul.f32.gmra.mxu0 %v1614
  %v1616 = vpop.f32.mrf.mxu0
  %v1617 = vadd.f32 %v1516, %v1616
  %1618 = vdwg.mxu0
  %v1619 = vand.u32 %v100, 4294901760
  %v1620 = vsub.f32 %v100, %v1619
  %1621 = vmatpush.msra.mxu0 %v1620
  %v1622 = vand.u32 %v95, 4294901760
  %v1623 = vsub.f32 %v95, %v1622
  %1624 = vmatpush.msra.mxu0 %v1623
  %v1625 = vand.u32 %v90, 4294901760
  %v1626 = vsub.f32 %v90, %v1625
  %1627 = vmatpush.msra.mxu0 %v1626
  %v1628 = vand.u32 %v85, 4294901760
  %v1629 = vsub.f32 %v85, %v1628
  %1630 = vmatpush.msra.mxu0 %v1629
  %v1631 = vand.u32 %v80, 4294901760
  %v1632 = vsub.f32 %v80, %v1631
  %1633 = vmatpush.msra.mxu0 %v1632
  %v1634 = vand.u32 %v75, 4294901760
  %v1635 = vsub.f32 %v75, %v1634
  %1636 = vmatpush.msra.mxu0 %v1635
  %v1637 = vand.u32 %v70, 4294901760
  %v1638 = vsub.f32 %v70, %v1637
  %1639 = vmatpush.msra.mxu0 %v1638
  %v1640 = vand.u32 %v65, 4294901760
  %v1641 = vsub.f32 %v65, %v1640
  %1642 = vmatpush.msra.mxu0 %v1641
  %v1643 = vand.u32 %v60, 4294901760
  %v1644 = vsub.f32 %v60, %v1643
  %1645 = vmatpush.msra.mxu0 %v1644
  %v1646 = vand.u32 %v55, 4294901760
  %v1647 = vsub.f32 %v55, %v1646
  %1648 = vmatpush.msra.mxu0 %v1647
  %v1649 = vand.u32 %v50, 4294901760
  %v1650 = vsub.f32 %v50, %v1649
  %1651 = vmatpush.msra.mxu0 %v1650
  %v1652 = vand.u32 %v45, 4294901760
  %v1653 = vsub.f32 %v45, %v1652
  %1654 = vmatpush.msra.mxu0 %v1653
  %v1655 = vand.u32 %v40, 4294901760
  %v1656 = vsub.f32 %v40, %v1655
  %1657 = vmatpush.msra.mxu0 %v1656
  %v1658 = vand.u32 %v35, 4294901760
  %v1659 = vsub.f32 %v35, %v1658
  %1660 = vmatpush.msra.mxu0 %v1659
  %v1661 = vand.u32 %v30, 4294901760
  %v1662 = vsub.f32 %v30, %v1661
  %1663 = vmatpush.msra.mxu0 %v1662
  %v1664 = vand.u32 %v25, 4294901760
  %v1665 = vsub.f32 %v25, %v1664
  %1666 = vmatpush.msra.mxu0 %v1665
  %v1667 = vand.u32 %v20, 4294901760
  %v1668 = vsub.f32 %v20, %v1667
  %1669 = vmatmul.f32.gmra.mxu0 %v1668
  %v1670 = vpop.f32.mrf.mxu0
  %v1671 = vadd.f32 %v1617, %v1670
  %1672 = vdwg.mxu0
  %v1673 = vand.u32 %v100, 4294901760
  %1674 = vmatpush.msra.mxu0 %v1673
  %v1675 = vand.u32 %v95, 4294901760
  %1676 = vmatpush.msra.mxu0 %v1675
  %v1677 = vand.u32 %v90, 4294901760
  %1678 = vmatpush.msra.mxu0 %v1677
  %v1679 = vand.u32 %v85, 4294901760
  %1680 = vmatpush.msra.mxu0 %v1679
  %v1681 = vand.u32 %v80, 4294901760
  %1682 = vmatpush.msra.mxu0 %v1681
  %v1683 = vand.u32 %v75, 4294901760
  %1684 = vmatpush.msra.mxu0 %v1683
  %v1685 = vand.u32 %v70, 4294901760
  %1686 = vmatpush.msra.mxu0 %v1685
  %v1687 = vand.u32 %v65, 4294901760
  %1688 = vmatpush.msra.mxu0 %v1687
  %v1689 = vand.u32 %v60, 4294901760
  %1690 = vmatpush.msra.mxu0 %v1689
  %v1691 = vand.u32 %v55, 4294901760
  %1692 = vmatpush.msra.mxu0 %v1691
  %v1693 = vand.u32 %v50, 4294901760
  %1694 = vmatpush.msra.mxu0 %v1693
  %v1695 = vand.u32 %v45, 4294901760
  %1696 = vmatpush.msra.mxu0 %v1695
  %v1697 = vand.u32 %v40, 4294901760
  %1698 = vmatpush.msra.mxu0 %v1697
  %v1699 = vand.u32 %v35, 4294901760
  %1700 = vmatpush.msra.mxu0 %v1699
  %v1701 = vand.u32 %v30, 4294901760
  %1702 = vmatpush.msra.mxu0 %v1701
  %v1703 = vand.u32 %v25, 4294901760
  %1704 = vmatpush.msra.mxu0 %v1703
  %v1705 = vand.u32 %v20, 4294901760
  %v1706 = vsub.f32 %v20, %v1705
  %v1707 = vand.u32 %v1706, 4294901760
  %1708 = vmatmul.f32.gmra.mxu0 %v1707
  %v1709 = vpop.f32.mrf.mxu0
  %v1710 = vadd.f32 %v1671, %v1709
  %1711 = vdwg.mxu0
  %v1712 = vand.u32 %v100, 4294901760
  %v1713 = vsub.f32 %v100, %v1712
  %v1714 = vand.u32 %v1713, 4294901760
  %1715 = vmatpush.msra.mxu0 %v1714
  %v1716 = vand.u32 %v95, 4294901760
  %v1717 = vsub.f32 %v95, %v1716
  %v1718 = vand.u32 %v1717, 4294901760
  %1719 = vmatpush.msra.mxu0 %v1718
  %v1720 = vand.u32 %v90, 4294901760
  %v1721 = vsub.f32 %v90, %v1720
  %v1722 = vand.u32 %v1721, 4294901760
  %1723 = vmatpush.msra.mxu0 %v1722
  %v1724 = vand.u32 %v85, 4294901760
  %v1725 = vsub.f32 %v85, %v1724
  %v1726 = vand.u32 %v1725, 4294901760
  %1727 = vmatpush.msra.mxu0 %v1726
  %v1728 = vand.u32 %v80, 4294901760
  %v1729 = vsub.f32 %v80, %v1728
  %v1730 = vand.u32 %v1729, 4294901760
  %1731 = vmatpush.msra.mxu0 %v1730
  %v1732 = vand.u32 %v75, 4294901760
  %v1733 = vsub.f32 %v75, %v1732
  %v1734 = vand.u32 %v1733, 4294901760
  %1735 = vmatpush.msra.mxu0 %v1734
  %v1736 = vand.u32 %v70, 4294901760
  %v1737 = vsub.f32 %v70, %v1736
  %v1738 = vand.u32 %v1737, 4294901760
  %1739 = vmatpush.msra.mxu0 %v1738
  %v1740 = vand.u32 %v65, 4294901760
  %v1741 = vsub.f32 %v65, %v1740
  %v1742 = vand.u32 %v1741, 4294901760
  %1743 = vmatpush.msra.mxu0 %v1742
  %v1744 = vand.u32 %v60, 4294901760
  %v1745 = vsub.f32 %v60, %v1744
  %v1746 = vand.u32 %v1745, 4294901760
  %1747 = vmatpush.msra.mxu0 %v1746
  %v1748 = vand.u32 %v55, 4294901760
  %v1749 = vsub.f32 %v55, %v1748
  %v1750 = vand.u32 %v1749, 4294901760
  %1751 = vmatpush.msra.mxu0 %v1750
  %v1752 = vand.u32 %v50, 4294901760
  %v1753 = vsub.f32 %v50, %v1752
  %v1754 = vand.u32 %v1753, 4294901760
  %1755 = vmatpush.msra.mxu0 %v1754
  %v1756 = vand.u32 %v45, 4294901760
  %v1757 = vsub.f32 %v45, %v1756
  %v1758 = vand.u32 %v1757, 4294901760
  %1759 = vmatpush.msra.mxu0 %v1758
  %v1760 = vand.u32 %v40, 4294901760
  %v1761 = vsub.f32 %v40, %v1760
  %v1762 = vand.u32 %v1761, 4294901760
  %1763 = vmatpush.msra.mxu0 %v1762
  %v1764 = vand.u32 %v35, 4294901760
  %v1765 = vsub.f32 %v35, %v1764
  %v1766 = vand.u32 %v1765, 4294901760
  %1767 = vmatpush.msra.mxu0 %v1766
  %v1768 = vand.u32 %v30, 4294901760
  %v1769 = vsub.f32 %v30, %v1768
  %v1770 = vand.u32 %v1769, 4294901760
  %1771 = vmatpush.msra.mxu0 %v1770
  %v1772 = vand.u32 %v25, 4294901760
  %v1773 = vsub.f32 %v25, %v1772
  %v1774 = vand.u32 %v1773, 4294901760
  %1775 = vmatpush.msra.mxu0 %v1774
  %v1776 = vand.u32 %v20, 4294901760
  %1777 = vmatmul.f32.gmra.mxu0 %v1776
  %v1778 = vpop.f32.mrf.mxu0
  %v1779 = vadd.f32 %v1710, %v1778
  %1780 = vdwg.mxu0
  %v1781 = vand.u32 %v100, 4294901760
  %1782 = vmatpush.msra.mxu0 %v1781
  %v1783 = vand.u32 %v95, 4294901760
  %1784 = vmatpush.msra.mxu0 %v1783
  %v1785 = vand.u32 %v90, 4294901760
  %1786 = vmatpush.msra.mxu0 %v1785
  %v1787 = vand.u32 %v85, 4294901760
  %1788 = vmatpush.msra.mxu0 %v1787
  %v1789 = vand.u32 %v80, 4294901760
  %1790 = vmatpush.msra.mxu0 %v1789
  %v1791 = vand.u32 %v75, 4294901760
  %1792 = vmatpush.msra.mxu0 %v1791
  %v1793 = vand.u32 %v70, 4294901760
  %1794 = vmatpush.msra.mxu0 %v1793
  %v1795 = vand.u32 %v65, 4294901760
  %1796 = vmatpush.msra.mxu0 %v1795
  %v1797 = vand.u32 %v60, 4294901760
  %1798 = vmatpush.msra.mxu0 %v1797
  %v1799 = vand.u32 %v55, 4294901760
  %1800 = vmatpush.msra.mxu0 %v1799
  %v1801 = vand.u32 %v50, 4294901760
  %1802 = vmatpush.msra.mxu0 %v1801
  %v1803 = vand.u32 %v45, 4294901760
  %1804 = vmatpush.msra.mxu0 %v1803
  %v1805 = vand.u32 %v40, 4294901760
  %1806 = vmatpush.msra.mxu0 %v1805
  %v1807 = vand.u32 %v35, 4294901760
  %1808 = vmatpush.msra.mxu0 %v1807
  %v1809 = vand.u32 %v30, 4294901760
  %1810 = vmatpush.msra.mxu0 %v1809
  %v1811 = vand.u32 %v25, 4294901760
  %1812 = vmatpush.msra.mxu0 %v1811
  %v1813 = vand.u32 %v20, 4294901760
  %1814 = vmatmul.f32.gmra.mxu0 %v1813
  %v1815 = vpop.f32.mrf.mxu0
  %v1816 = vadd.f32 %v1779, %v1815
  %1817 = vdwg.mxu0
  %v1818 = vtanh.pop %v452
  %v1819 = vtanh.pop %v793
  %v1820 = vtanh.pop %v1134
  %v1821 = vtanh.pop %v1475
  %v1822 = vtanh.pop %v1816
  %v1823 = vld [vmem:[%s3] sm:$0xff]
  %v1824 = vld [vmem:[%s3 + $0x8] sm:$0xff]
  %v1825 = vld [vmem:[%s3 + $0x10] sm:$0xff]
  %v1826 = vld [vmem:[%s3 + $0x18] sm:$0xff]
  %v1827 = vld [vmem:[%s3 + $0x20] sm:$0xff]
  %v1828 = vld [vmem:[%s3 + $0x28] sm:$0xff]
  %v1829 = vld [vmem:[%s3 + $0x30] sm:$0xff]
  %v1830 = vld [vmem:[%s3 + $0x38] sm:$0xff]
  %v1831 = vld [vmem:[%s3 + $0x40] sm:$0xff]
  %v1832 = vld [vmem:[%s3 + $0x48] sm:$0xff]
  %v1833 = vld [vmem:[%s3 + $0x50] sm:$0xff]
  %v1834 = vld [vmem:[%s3 + $0x58] sm:$0xff]
  %v1835 = vld [vmem:[%s3 + $0x60] sm:$0xff]
  %v1836 = vld [vmem:[%s3 + $0x68] sm:$0xff]
  %v1837 = vld [vmem:[%s3 + $0x70] sm:$0xff]
  %v1838 = vld [vmem:[%s3 + $0x78] sm:$0xff]
  %v1839 = vld [vmem:[%s3 + $0x80] sm:$0xff]
  %v1840 = vld [vmem:[%s3 + $0x88] sm:$0xff]
  %v1841 = vld [vmem:[%s3 + $0x90] sm:$0xff]
  %v1842 = vld [vmem:[%s3 + $0x98] sm:$0xff]
  %v1843 = vld [vmem:[%s3 + $0xa0] sm:$0xff]
  %v1844 = vld [vmem:[%s3 + $0xa8] sm:$0xff]
  %v1845 = vld [vmem:[%s3 + $0xb0] sm:$0xff]
  %v1846 = vld [vmem:[%s3 + $0xb8] sm:$0xff]
  %v1847 = vld [vmem:[%s3 + $0xc0] sm:$0xff]
  %v1848 = vld [vmem:[%s3 + $0xc8] sm:$0xff]
  %v1849 = vld [vmem:[%s3 + $0xd0] sm:$0xff]
  %v1850 = vld [vmem:[%s3 + $0xd8] sm:$0xff]
  %v1851 = vld [vmem:[%s3 + $0xe0] sm:$0xff]
  %v1852 = vld [vmem:[%s3 + $0xe8] sm:$0xff]
  %v1853 = vld [vmem:[%s3 + $0xf0] sm:$0xff]
  %v1854 = vld [vmem:[%s3 + $0xf8] sm:$0xff]
  %v1855 = vld [vmem:[%s3 + $0x100] sm:$0xff]
  %v1856 = vld [vmem:[%s3 + $0x108] sm:$0xff]
  %v1857 = vld [vmem:[%s3 + $0x110] sm:$0xff]
  %v1858 = vld [vmem:[%s3 + $0x118] sm:$0xff]
  %v1859 = vld [vmem:[%s3 + $0x120] sm:$0xff]
  %v1860 = vld [vmem:[%s3 + $0x128] sm:$0xff]
  %v1861 = vld [vmem:[%s3 + $0x130] sm:$0xff]
  %v1862 = vld [vmem:[%s3 + $0x138] sm:$0xff]
  %v1863 = vld [vmem:[%s3 + $0x140] sm:$0xff]
  %v1864 = vld [vmem:[%s3 + $0x148] sm:$0xff]
  %v1865 = vld [vmem:[%s3 + $0x150] sm:$0xff]
  %v1866 = vld [vmem:[%s3 + $0x158] sm:$0xff]
  %v1867 = vld [vmem:[%s3 + $0x160] sm:$0xff]
  %v1868 = vld [vmem:[%s3 + $0x168] sm:$0xff]
  %v1869 = vld [vmem:[%s3 + $0x170] sm:$0xff]
  %v1870 = vld [vmem:[%s3 + $0x178] sm:$0xff]
  %v1871 = vld [vmem:[%s3 + $0x180] sm:$0xff]
  %v1872 = vld [vmem:[%s3 + $0x188] sm:$0xff]
  %v1873 = vld [vmem:[%s3 + $0x190] sm:$0xff]
  %v1874 = vld [vmem:[%s3 + $0x198] sm:$0xff]
  %v1875 = vld [vmem:[%s3 + $0x1a0] sm:$0xff]
  %v1876 = vld [vmem:[%s3 + $0x1a8] sm:$0xff]
  %v1877 = vld [vmem:[%s3 + $0x1b0] sm:$0xff]
  %v1878 = vld [vmem:[%s3 + $0x1b8] sm:$0xff]
  %v1879 = vld [vmem:[%s3 + $0x1c0] sm:$0xff]
  %v1880 = vld [vmem:[%s3 + $0x1c8] sm:$0xff]
  %v1881 = vld [vmem:[%s3 + $0x1d0] sm:$0xff]
  %v1882 = vld [vmem:[%s3 + $0x1d8] sm:$0xff]
  %v1883 = vld [vmem:[%s3 + $0x1e0] sm:$0xff]
  %v1884 = vld [vmem:[%s3 + $0x1e8] sm:$0xff]
  %v1885 = vld [vmem:[%s3 + $0x1f0] sm:$0xff]
  %v1886 = vld [vmem:[%s3 + $0x1f8] sm:$0xff]
  %v1887 = vld [vmem:[%s3 + $0x200] sm:$0xff]
  %v1888 = vld [vmem:[%s3 + $0x208] sm:$0xff]
  %v1889 = vld [vmem:[%s3 + $0x210] sm:$0xff]
  %v1890 = vld [vmem:[%s3 + $0x218] sm:$0xff]
  %v1891 = vld [vmem:[%s3 + $0x220] sm:$0xff]
  %v1892 = vld [vmem:[%s3 + $0x228] sm:$0xff]
  %v1893 = vld [vmem:[%s3 + $0x230] sm:$0xff]
  %v1894 = vld [vmem:[%s3 + $0x238] sm:$0xff]
  %v1895 = vld [vmem:[%s3 + $0x240] sm:$0xff]
  %v1896 = vld [vmem:[%s3 + $0x248] sm:$0xff]
  %v1897 = vld [vmem:[%s3 + $0x250] sm:$0xff]
  %v1898 = vld [vmem:[%s3 + $0x258] sm:$0xff]
  %v1899 = vld [vmem:[%s3 + $0x260] sm:$0xff]
  %v1900 = vld [vmem:[%s3 + $0x268] sm:$0xff]
  %v1901 = vld [vmem:[%s3 + $0x270] sm:$0xff]
  %v1902 = vld [vmem:[%s3 + $0x278] sm:$0xff]
  %v1903 = vld [vmem:[%s4] sm:$0x1]
  %v1905 = vperm.slane %v1903, 0
  %v1907 = vand.u32 %v1838, 4294901760
  %1908 = vmatpush.msra.mxu0 %v1907
  %v1909 = vand.u32 %v1837, 4294901760
  %1910 = vmatpush.msra.mxu0 %v1909
  %v1911 = vand.u32 %v1836, 4294901760
  %1912 = vmatpush.msra.mxu0 %v1911
  %v1913 = vand.u32 %v1835, 4294901760
  %1914 = vmatpush.msra.mxu0 %v1913
  %v1915 = vand.u32 %v1834, 4294901760
  %1916 = vmatpush.msra.mxu0 %v1915
  %v1917 = vand.u32 %v1833, 4294901760
  %1918 = vmatpush.msra.mxu0 %v1917
  %v1919 = vand.u32 %v1832, 4294901760
  %1920 = vmatpush.msra.mxu0 %v1919
  %v1921 = vand.u32 %v1831, 4294901760
  %1922 = vmatpush.msra.mxu0 %v1921
  %v1923 = vand.u32 %v1830, 4294901760
  %1924 = vmatpush.msra.mxu0 %v1923
  %v1925 = vand.u32 %v1829, 4294901760
  %1926 = vmatpush.msra.mxu0 %v1925
  %v1927 = vand.u32 %v1828, 4294901760
  %1928 = vmatpush.msra.mxu0 %v1927
  %v1929 = vand.u32 %v1827, 4294901760
  %1930 = vmatpush.msra.mxu0 %v1929
  %v1931 = vand.u32 %v1826, 4294901760
  %1932 = vmatpush.msra.mxu0 %v1931
  %v1933 = vand.u32 %v1825, 4294901760
  %1934 = vmatpush.msra.mxu0 %v1933
  %v1935 = vand.u32 %v1824, 4294901760
  %1936 = vmatpush.msra.mxu0 %v1935
  %v1937 = vand.u32 %v1823, 4294901760
  %1938 = vmatpush.msra.mxu0 %v1937
  %v1939 = vand.u32 %v1818, 4294901760
  %v1940 = vsub.f32 %v1818, %v1939
  %v1941 = vand.u32 %v1940, 4294901760
  %v1942 = vsub.f32 %v1940, %v1941
  %v1943 = vand.u32 %v1942, 4294901760
  %1944 = vmatmul.f32.gmra.mxu0 %v1943
  %v1945 = vpop.f32.mrf.mxu0
  %v1946 = vadd.f32 %v1905, %v1945
  %1947 = vdwg.mxu0
  %v1948 = vand.u32 %v1838, 4294901760
  %v1949 = vsub.f32 %v1838, %v1948
  %v1950 = vand.u32 %v1949, 4294901760
  %v1951 = vsub.f32 %v1949, %v1950
  %v1952 = vand.u32 %v1951, 4294901760
  %1953 = vmatpush.msra.mxu0 %v1952
  %v1954 = vand.u32 %v1837, 4294901760
  %v1955 = vsub.f32 %v1837, %v1954
  %v1956 = vand.u32 %v1955, 4294901760
  %v1957 = vsub.f32 %v1955, %v1956
  %v1958 = vand.u32 %v1957, 4294901760
  %1959 = vmatpush.msra.mxu0 %v1958
  %v1960 = vand.u32 %v1836, 4294901760
  %v1961 = vsub.f32 %v1836, %v1960
  %v1962 = vand.u32 %v1961, 4294901760
  %v1963 = vsub.f32 %v1961, %v1962
  %v1964 = vand.u32 %v1963, 4294901760
  %1965 = vmatpush.msra.mxu0 %v1964
  %v1966 = vand.u32 %v1835, 4294901760
  %v1967 = vsub.f32 %v1835, %v1966
  %v1968 = vand.u32 %v1967, 4294901760
  %v1969 = vsub.f32 %v1967, %v1968
  %v1970 = vand.u32 %v1969, 4294901760
  %1971 = vmatpush.msra.mxu0 %v1970
  %v1972 = vand.u32 %v1834, 4294901760
  %v1973 = vsub.f32 %v1834, %v1972
  %v1974 = vand.u32 %v1973, 4294901760
  %v1975 = vsub.f32 %v1973, %v1974
  %v1976 = vand.u32 %v1975, 4294901760
  %1977 = vmatpush.msra.mxu0 %v1976
  %v1978 = vand.u32 %v1833, 4294901760
  %v1979 = vsub.f32 %v1833, %v1978
  %v1980 = vand.u32 %v1979, 4294901760
  %v1981 = vsub.f32 %v1979, %v1980
  %v1982 = vand.u32 %v1981, 4294901760
  %1983 = vmatpush.msra.mxu0 %v1982
  %v1984 = vand.u32 %v1832, 4294901760
  %v1985 = vsub.f32 %v1832, %v1984
  %v1986 = vand.u32 %v1985, 4294901760
  %v1987 = vsub.f32 %v1985, %v1986
  %v1988 = vand.u32 %v1987, 4294901760
  %1989 = vmatpush.msra.mxu0 %v1988
  %v1990 = vand.u32 %v1831, 4294901760
  %v1991 = vsub.f32 %v1831, %v1990
  %v1992 = vand.u32 %v1991, 4294901760
  %v1993 = vsub.f32 %v1991, %v1992
  %v1994 = vand.u32 %v1993, 4294901760
  %1995 = vmatpush.msra.mxu0 %v1994
  %v1996 = vand.u32 %v1830, 4294901760
  %v1997 = vsub.f32 %v1830, %v1996
  %v1998 = vand.u32 %v1997, 4294901760
  %v1999 = vsub.f32 %v1997, %v1998
  %v2000 = vand.u32 %v1999, 4294901760
  %2001 = vmatpush.msra.mxu0 %v2000
  %v2002 = vand.u32 %v1829, 4294901760
  %v2003 = vsub.f32 %v1829, %v2002
  %v2004 = vand.u32 %v2003, 4294901760
  %v2005 = vsub.f32 %v2003, %v2004
  %v2006 = vand.u32 %v2005, 4294901760
  %2007 = vmatpush.msra.mxu0 %v2006
  %v2008 = vand.u32 %v1828, 4294901760
  %v2009 = vsub.f32 %v1828, %v2008
  %v2010 = vand.u32 %v2009, 4294901760
  %v2011 = vsub.f32 %v2009, %v2010
  %v2012 = vand.u32 %v2011, 4294901760
  %2013 = vmatpush.msra.mxu0 %v2012
  %v2014 = vand.u32 %v1827, 4294901760
  %v2015 = vsub.f32 %v1827, %v2014
  %v2016 = vand.u32 %v2015, 4294901760
  %v2017 = vsub.f32 %v2015, %v2016
  %v2018 = vand.u32 %v2017, 4294901760
  %2019 = vmatpush.msra.mxu0 %v2018
  %v2020 = vand.u32 %v1826, 4294901760
  %v2021 = vsub.f32 %v1826, %v2020
  %v2022 = vand.u32 %v2021, 4294901760
  %v2023 = vsub.f32 %v2021, %v2022
  %v2024 = vand.u32 %v2023, 4294901760
  %2025 = vmatpush.msra.mxu0 %v2024
  %v2026 = vand.u32 %v1825, 4294901760
  %v2027 = vsub.f32 %v1825, %v2026
  %v2028 = vand.u32 %v2027, 4294901760
  %v2029 = vsub.f32 %v2027, %v2028
  %v2030 = vand.u32 %v2029, 4294901760
  %2031 = vmatpush.msra.mxu0 %v2030
  %v2032 = vand.u32 %v1824, 4294901760
  %v2033 = vsub.f32 %v1824, %v2032
  %v2034 = vand.u32 %v2033, 4294901760
  %v2035 = vsub.f32 %v2033, %v2034
  %v2036 = vand.u32 %v2035, 4294901760
  %2037 = vmatpush.msra.mxu0 %v2036
  %v2038 = vand.u32 %v1823, 4294901760
  %v2039 = vsub.f32 %v1823, %v2038
  %v2040 = vand.u32 %v2039, 4294901760
  %v2041 = vsub.f32 %v2039, %v2040
  %v2042 = vand.u32 %v2041, 4294901760
  %2043 = vmatpush.msra.mxu0 %v2042
  %v2044 = vand.u32 %v1818, 4294901760
  %2045 = vmatmul.f32.gmra.mxu0 %v2044
  %v2046 = vpop.f32.mrf.mxu0
  %v2047 = vadd.f32 %v1946, %v2046
  %2048 = vdwg.mxu0
  %v2049 = vand.u32 %v1838, 4294901760
  %v2050 = vsub.f32 %v1838, %v2049
  %2051 = vmatpush.msra.mxu0 %v2050
  %v2052 = vand.u32 %v1837, 4294901760
  %v2053 = vsub.f32 %v1837, %v2052
  %2054 = vmatpush.msra.mxu0 %v2053
  %v2055 = vand.u32 %v1836, 4294901760
  %v2056 = vsub.f32 %v1836, %v2055
  %2057 = vmatpush.msra.mxu0 %v2056
  %v2058 = vand.u32 %v1835, 4294901760
  %v2059 = vsub.f32 %v1835, %v2058
  %2060 = vmatpush.msra.mxu0 %v2059
  %v2061 = vand.u32 %v1834, 4294901760
  %v2062 = vsub.f32 %v1834, %v2061
  %2063 = vmatpush.msra.mxu0 %v2062
  %v2064 = vand.u32 %v1833, 4294901760
  %v2065 = vsub.f32 %v1833, %v2064
  %2066 = vmatpush.msra.mxu0 %v2065
  %v2067 = vand.u32 %v1832, 4294901760
  %v2068 = vsub.f32 %v1832, %v2067
  %2069 = vmatpush.msra.mxu0 %v2068
  %v2070 = vand.u32 %v1831, 4294901760
  %v2071 = vsub.f32 %v1831, %v2070
  %2072 = vmatpush.msra.mxu0 %v2071
  %v2073 = vand.u32 %v1830, 4294901760
  %v2074 = vsub.f32 %v1830, %v2073
  %2075 = vmatpush.msra.mxu0 %v2074
  %v2076 = vand.u32 %v1829, 4294901760
  %v2077 = vsub.f32 %v1829, %v2076
  %2078 = vmatpush.msra.mxu0 %v2077
  %v2079 = vand.u32 %v1828, 4294901760
  %v2080 = vsub.f32 %v1828, %v2079
  %2081 = vmatpush.msra.mxu0 %v2080
  %v2082 = vand.u32 %v1827, 4294901760
  %v2083 = vsub.f32 %v1827, %v2082
  %2084 = vmatpush.msra.mxu0 %v2083
  %v2085 = vand.u32 %v1826, 4294901760
  %v2086 = vsub.f32 %v1826, %v2085
  %2087 = vmatpush.msra.mxu0 %v2086
  %v2088 = vand.u32 %v1825, 4294901760
  %v2089 = vsub.f32 %v1825, %v2088
  %2090 = vmatpush.msra.mxu0 %v2089
  %v2091 = vand.u32 %v1824, 4294901760
  %v2092 = vsub.f32 %v1824, %v2091
  %2093 = vmatpush.msra.mxu0 %v2092
  %v2094 = vand.u32 %v1823, 4294901760
  %v2095 = vsub.f32 %v1823, %v2094
  %2096 = vmatpush.msra.mxu0 %v2095
  %v2097 = vand.u32 %v1818, 4294901760
  %v2098 = vsub.f32 %v1818, %v2097
  %2099 = vmatmul.f32.gmra.mxu0 %v2098
  %v2100 = vpop.f32.mrf.mxu0
  %v2101 = vadd.f32 %v2047, %v2100
  %2102 = vdwg.mxu0
  %v2103 = vand.u32 %v1838, 4294901760
  %2104 = vmatpush.msra.mxu0 %v2103
  %v2105 = vand.u32 %v1837, 4294901760
  %2106 = vmatpush.msra.mxu0 %v2105
  %v2107 = vand.u32 %v1836, 4294901760
  %2108 = vmatpush.msra.mxu0 %v2107
  %v2109 = vand.u32 %v1835, 4294901760
  %2110 = vmatpush.msra.mxu0 %v2109
  %v2111 = vand.u32 %v1834, 4294901760
  %2112 = vmatpush.msra.mxu0 %v2111
  %v2113 = vand.u32 %v1833, 4294901760
  %2114 = vmatpush.msra.mxu0 %v2113
  %v2115 = vand.u32 %v1832, 4294901760
  %2116 = vmatpush.msra.mxu0 %v2115
  %v2117 = vand.u32 %v1831, 4294901760
  %2118 = vmatpush.msra.mxu0 %v2117
  %v2119 = vand.u32 %v1830, 4294901760
  %2120 = vmatpush.msra.mxu0 %v2119
  %v2121 = vand.u32 %v1829, 4294901760
  %2122 = vmatpush.msra.mxu0 %v2121
  %v2123 = vand.u32 %v1828, 4294901760
  %2124 = vmatpush.msra.mxu0 %v2123
  %v2125 = vand.u32 %v1827, 4294901760
  %2126 = vmatpush.msra.mxu0 %v2125
  %v2127 = vand.u32 %v1826, 4294901760
  %2128 = vmatpush.msra.mxu0 %v2127
  %v2129 = vand.u32 %v1825, 4294901760
  %2130 = vmatpush.msra.mxu0 %v2129
  %v2131 = vand.u32 %v1824, 4294901760
  %2132 = vmatpush.msra.mxu0 %v2131
  %v2133 = vand.u32 %v1823, 4294901760
  %2134 = vmatpush.msra.mxu0 %v2133
  %v2135 = vand.u32 %v1818, 4294901760
  %v2136 = vsub.f32 %v1818, %v2135
  %v2137 = vand.u32 %v2136, 4294901760
  %2138 = vmatmul.f32.gmra.mxu0 %v2137
  %v2139 = vpop.f32.mrf.mxu0
  %v2140 = vadd.f32 %v2101, %v2139
  %2141 = vdwg.mxu0
  %v2142 = vand.u32 %v1838, 4294901760
  %v2143 = vsub.f32 %v1838, %v2142
  %v2144 = vand.u32 %v2143, 4294901760
  %2145 = vmatpush.msra.mxu0 %v2144
  %v2146 = vand.u32 %v1837, 4294901760
  %v2147 = vsub.f32 %v1837, %v2146
  %v2148 = vand.u32 %v2147, 4294901760
  %2149 = vmatpush.msra.mxu0 %v2148
  %v2150 = vand.u32 %v1836, 4294901760
  %v2151 = vsub.f32 %v1836, %v2150
  %v2152 = vand.u32 %v2151, 4294901760
  %2153 = vmatpush.msra.mxu0 %v2152
  %v2154 = vand.u32 %v1835, 4294901760
  %v2155 = vsub.f32 %v1835, %v2154
  %v2156 = vand.u32 %v2155, 4294901760
  %2157 = vmatpush.msra.mxu0 %v2156
  %v2158 = vand.u32 %v1834, 4294901760
  %v2159 = vsub.f32 %v1834, %v2158
  %v2160 = vand.u32 %v2159, 4294901760
  %2161 = vmatpush.msra.mxu0 %v2160
  %v2162 = vand.u32 %v1833, 4294901760
  %v2163 = vsub.f32 %v1833, %v2162
  %v2164 = vand.u32 %v2163, 4294901760
  %2165 = vmatpush.msra.mxu0 %v2164
  %v2166 = vand.u32 %v1832, 4294901760
  %v2167 = vsub.f32 %v1832, %v2166
  %v2168 = vand.u32 %v2167, 4294901760
  %2169 = vmatpush.msra.mxu0 %v2168
  %v2170 = vand.u32 %v1831, 4294901760
  %v2171 = vsub.f32 %v1831, %v2170
  %v2172 = vand.u32 %v2171, 4294901760
  %2173 = vmatpush.msra.mxu0 %v2172
  %v2174 = vand.u32 %v1830, 4294901760
  %v2175 = vsub.f32 %v1830, %v2174
  %v2176 = vand.u32 %v2175, 4294901760
  %2177 = vmatpush.msra.mxu0 %v2176
  %v2178 = vand.u32 %v1829, 4294901760
  %v2179 = vsub.f32 %v1829, %v2178
  %v2180 = vand.u32 %v2179, 4294901760
  %2181 = vmatpush.msra.mxu0 %v2180
  %v2182 = vand.u32 %v1828, 4294901760
  %v2183 = vsub.f32 %v1828, %v2182
  %v2184 = vand.u32 %v2183, 4294901760
  %2185 = vmatpush.msra.mxu0 %v2184
  %v2186 = vand.u32 %v1827, 4294901760
  %v2187 = vsub.f32 %v1827, %v2186
  %v2188 = vand.u32 %v2187, 4294901760
  %2189 = vmatpush.msra.mxu0 %v2188
  %v2190 = vand.u32 %v1826, 4294901760
  %v2191 = vsub.f32 %v1826, %v2190
  %v2192 = vand.u32 %v2191, 4294901760
  %2193 = vmatpush.msra.mxu0 %v2192
  %v2194 = vand.u32 %v1825, 4294901760
  %v2195 = vsub.f32 %v1825, %v2194
  %v2196 = vand.u32 %v2195, 4294901760
  %2197 = vmatpush.msra.mxu0 %v2196
  %v2198 = vand.u32 %v1824, 4294901760
  %v2199 = vsub.f32 %v1824, %v2198
  %v2200 = vand.u32 %v2199, 4294901760
  %2201 = vmatpush.msra.mxu0 %v2200
  %v2202 = vand.u32 %v1823, 4294901760
  %v2203 = vsub.f32 %v1823, %v2202
  %v2204 = vand.u32 %v2203, 4294901760
  %2205 = vmatpush.msra.mxu0 %v2204
  %v2206 = vand.u32 %v1818, 4294901760
  %2207 = vmatmul.f32.gmra.mxu0 %v2206
  %v2208 = vpop.f32.mrf.mxu0
  %v2209 = vadd.f32 %v2140, %v2208
  %2210 = vdwg.mxu0
  %v2211 = vand.u32 %v1838, 4294901760
  %2212 = vmatpush.msra.mxu0 %v2211
  %v2213 = vand.u32 %v1837, 4294901760
  %2214 = vmatpush.msra.mxu0 %v2213
  %v2215 = vand.u32 %v1836, 4294901760
  %2216 = vmatpush.msra.mxu0 %v2215
  %v2217 = vand.u32 %v1835, 4294901760
  %2218 = vmatpush.msra.mxu0 %v2217
  %v2219 = vand.u32 %v1834, 4294901760
  %2220 = vmatpush.msra.mxu0 %v2219
  %v2221 = vand.u32 %v1833, 4294901760
  %2222 = vmatpush.msra.mxu0 %v2221
  %v2223 = vand.u32 %v1832, 4294901760
  %2224 = vmatpush.msra.mxu0 %v2223
  %v2225 = vand.u32 %v1831, 4294901760
  %2226 = vmatpush.msra.mxu0 %v2225
  %v2227 = vand.u32 %v1830, 4294901760
  %2228 = vmatpush.msra.mxu0 %v2227
  %v2229 = vand.u32 %v1829, 4294901760
  %2230 = vmatpush.msra.mxu0 %v2229
  %v2231 = vand.u32 %v1828, 4294901760
  %2232 = vmatpush.msra.mxu0 %v2231
  %v2233 = vand.u32 %v1827, 4294901760
  %2234 = vmatpush.msra.mxu0 %v2233
  %v2235 = vand.u32 %v1826, 4294901760
  %2236 = vmatpush.msra.mxu0 %v2235
  %v2237 = vand.u32 %v1825, 4294901760
  %2238 = vmatpush.msra.mxu0 %v2237
  %v2239 = vand.u32 %v1824, 4294901760
  %2240 = vmatpush.msra.mxu0 %v2239
  %v2241 = vand.u32 %v1823, 4294901760
  %2242 = vmatpush.msra.mxu0 %v2241
  %v2243 = vand.u32 %v1818, 4294901760
  %2244 = vmatmul.f32.gmra.mxu0 %v2243
  %v2245 = vpop.f32.mrf.mxu0
  %v2246 = vadd.f32 %v2209, %v2245
  %2247 = vdwg.mxu0
  %v2248 = vand.u32 %v1854, 4294901760
  %2249 = vmatpush.msra.mxu0 %v2248
  %v2250 = vand.u32 %v1853, 4294901760
  %2251 = vmatpush.msra.mxu0 %v2250
  %v2252 = vand.u32 %v1852, 4294901760
  %2253 = vmatpush.msra.mxu0 %v2252
  %v2254 = vand.u32 %v1851, 4294901760
  %2255 = vmatpush.msra.mxu0 %v2254
  %v2256 = vand.u32 %v1850, 4294901760
  %2257 = vmatpush.msra.mxu0 %v2256
  %v2258 = vand.u32 %v1849, 4294901760
  %2259 = vmatpush.msra.mxu0 %v2258
  %v2260 = vand.u32 %v1848, 4294901760
  %2261 = vmatpush.msra.mxu0 %v2260
  %v2262 = vand.u32 %v1847, 4294901760
  %2263 = vmatpush.msra.mxu0 %v2262
  %v2264 = vand.u32 %v1846, 4294901760
  %2265 = vmatpush.msra.mxu0 %v2264
  %v2266 = vand.u32 %v1845, 4294901760
  %2267 = vmatpush.msra.mxu0 %v2266
  %v2268 = vand.u32 %v1844, 4294901760
  %2269 = vmatpush.msra.mxu0 %v2268
  %v2270 = vand.u32 %v1843, 4294901760
  %2271 = vmatpush.msra.mxu0 %v2270
  %v2272 = vand.u32 %v1842, 4294901760
  %2273 = vmatpush.msra.mxu0 %v2272
  %v2274 = vand.u32 %v1841, 4294901760
  %2275 = vmatpush.msra.mxu0 %v2274
  %v2276 = vand.u32 %v1840, 4294901760
  %2277 = vmatpush.msra.mxu0 %v2276
  %v2278 = vand.u32 %v1839, 4294901760
  %2279 = vmatpush.msra.mxu0 %v2278
  %v2280 = vand.u32 %v1819, 4294901760
  %v2281 = vsub.f32 %v1819, %v2280
  %v2282 = vand.u32 %v2281, 4294901760
  %v2283 = vsub.f32 %v2281, %v2282
  %v2284 = vand.u32 %v2283, 4294901760
  %2285 = vmatmul.f32.gmra.mxu0 %v2284
  %v2286 = vpop.f32.mrf.mxu0
  %v2287 = vadd.f32 %v2246, %v2286
  %2288 = vdwg.mxu0
  %v2289 = vand.u32 %v1854, 4294901760
  %v2290 = vsub.f32 %v1854, %v2289
  %v2291 = vand.u32 %v2290, 4294901760
  %v2292 = vsub.f32 %v2290, %v2291
  %v2293 = vand.u32 %v2292, 4294901760
  %2294 = vmatpush.msra.mxu0 %v2293
  %v2295 = vand.u32 %v1853, 4294901760
  %v2296 = vsub.f32 %v1853, %v2295
  %v2297 = vand.u32 %v2296, 4294901760
  %v2298 = vsub.f32 %v2296, %v2297
  %v2299 = vand.u32 %v2298, 4294901760
  %2300 = vmatpush.msra.mxu0 %v2299
  %v2301 = vand.u32 %v1852, 4294901760
  %v2302 = vsub.f32 %v1852, %v2301
  %v2303 = vand.u32 %v2302, 4294901760
  %v2304 = vsub.f32 %v2302, %v2303
  %v2305 = vand.u32 %v2304, 4294901760
  %2306 = vmatpush.msra.mxu0 %v2305
  %v2307 = vand.u32 %v1851, 4294901760
  %v2308 = vsub.f32 %v1851, %v2307
  %v2309 = vand.u32 %v2308, 4294901760
  %v2310 = vsub.f32 %v2308, %v2309
  %v2311 = vand.u32 %v2310, 4294901760
  %2312 = vmatpush.msra.mxu0 %v2311
  %v2313 = vand.u32 %v1850, 4294901760
  %v2314 = vsub.f32 %v1850, %v2313
  %v2315 = vand.u32 %v2314, 4294901760
  %v2316 = vsub.f32 %v2314, %v2315
  %v2317 = vand.u32 %v2316, 4294901760
  %2318 = vmatpush.msra.mxu0 %v2317
  %v2319 = vand.u32 %v1849, 4294901760
  %v2320 = vsub.f32 %v1849, %v2319
  %v2321 = vand.u32 %v2320, 4294901760
  %v2322 = vsub.f32 %v2320, %v2321
  %v2323 = vand.u32 %v2322, 4294901760
  %2324 = vmatpush.msra.mxu0 %v2323
  %v2325 = vand.u32 %v1848, 4294901760
  %v2326 = vsub.f32 %v1848, %v2325
  %v2327 = vand.u32 %v2326, 4294901760
  %v2328 = vsub.f32 %v2326, %v2327
  %v2329 = vand.u32 %v2328, 4294901760
  %2330 = vmatpush.msra.mxu0 %v2329
  %v2331 = vand.u32 %v1847, 4294901760
  %v2332 = vsub.f32 %v1847, %v2331
  %v2333 = vand.u32 %v2332, 4294901760
  %v2334 = vsub.f32 %v2332, %v2333
  %v2335 = vand.u32 %v2334, 4294901760
  %2336 = vmatpush.msra.mxu0 %v2335
  %v2337 = vand.u32 %v1846, 4294901760
  %v2338 = vsub.f32 %v1846, %v2337
  %v2339 = vand.u32 %v2338, 4294901760
  %v2340 = vsub.f32 %v2338, %v2339
  %v2341 = vand.u32 %v2340, 4294901760
  %2342 = vmatpush.msra.mxu0 %v2341
  %v2343 = vand.u32 %v1845, 4294901760
  %v2344 = vsub.f32 %v1845, %v2343
  %v2345 = vand.u32 %v2344, 4294901760
  %v2346 = vsub.f32 %v2344, %v2345
  %v2347 = vand.u32 %v2346, 4294901760
  %2348 = vmatpush.msra.mxu0 %v2347
  %v2349 = vand.u32 %v1844, 4294901760
  %v2350 = vsub.f32 %v1844, %v2349
  %v2351 = vand.u32 %v2350, 4294901760
  %v2352 = vsub.f32 %v2350, %v2351
  %v2353 = vand.u32 %v2352, 4294901760
  %2354 = vmatpush.msra.mxu0 %v2353
  %v2355 = vand.u32 %v1843, 4294901760
  %v2356 = vsub.f32 %v1843, %v2355
  %v2357 = vand.u32 %v2356, 4294901760
  %v2358 = vsub.f32 %v2356, %v2357
  %v2359 = vand.u32 %v2358, 4294901760
  %2360 = vmatpush.msra.mxu0 %v2359
  %v2361 = vand.u32 %v1842, 4294901760
  %v2362 = vsub.f32 %v1842, %v2361
  %v2363 = vand.u32 %v2362, 4294901760
  %v2364 = vsub.f32 %v2362, %v2363
  %v2365 = vand.u32 %v2364, 4294901760
  %2366 = vmatpush.msra.mxu0 %v2365
  %v2367 = vand.u32 %v1841, 4294901760
  %v2368 = vsub.f32 %v1841, %v2367
  %v2369 = vand.u32 %v2368, 4294901760
  %v2370 = vsub.f32 %v2368, %v2369
  %v2371 = vand.u32 %v2370, 4294901760
  %2372 = vmatpush.msra.mxu0 %v2371
  %v2373 = vand.u32 %v1840, 4294901760
  %v2374 = vsub.f32 %v1840, %v2373
  %v2375 = vand.u32 %v2374, 4294901760
  %v2376 = vsub.f32 %v2374, %v2375
  %v2377 = vand.u32 %v2376, 4294901760
  %2378 = vmatpush.msra.mxu0 %v2377
  %v2379 = vand.u32 %v1839, 4294901760
  %v2380 = vsub.f32 %v1839, %v2379
  %v2381 = vand.u32 %v2380, 4294901760
  %v2382 = vsub.f32 %v2380, %v2381
  %v2383 = vand.u32 %v2382, 4294901760
  %2384 = vmatpush.msra.mxu0 %v2383
  %v2385 = vand.u32 %v1819, 4294901760
  %2386 = vmatmul.f32.gmra.mxu0 %v2385
  %v2387 = vpop.f32.mrf.mxu0
  %v2388 = vadd.f32 %v2287, %v2387
  %2389 = vdwg.mxu0
  %v2390 = vand.u32 %v1854, 4294901760
  %v2391 = vsub.f32 %v1854, %v2390
  %2392 = vmatpush.msra.mxu0 %v2391
  %v2393 = vand.u32 %v1853, 4294901760
  %v2394 = vsub.f32 %v1853, %v2393
  %2395 = vmatpush.msra.mxu0 %v2394
  %v2396 = vand.u32 %v1852, 4294901760
  %v2397 = vsub.f32 %v1852, %v2396
  %2398 = vmatpush.msra.mxu0 %v2397
  %v2399 = vand.u32 %v1851, 4294901760
  %v2400 = vsub.f32 %v1851, %v2399
  %2401 = vmatpush.msra.mxu0 %v2400
  %v2402 = vand.u32 %v1850, 4294901760
  %v2403 = vsub.f32 %v1850, %v2402
  %2404 = vmatpush.msra.mxu0 %v2403
  %v2405 = vand.u32 %v1849, 4294901760
  %v2406 = vsub.f32 %v1849, %v2405
  %2407 = vmatpush.msra.mxu0 %v2406
  %v2408 = vand.u32 %v1848, 4294901760
  %v2409 = vsub.f32 %v1848, %v2408
  %2410 = vmatpush.msra.mxu0 %v2409
  %v2411 = vand.u32 %v1847, 4294901760
  %v2412 = vsub.f32 %v1847, %v2411
  %2413 = vmatpush.msra.mxu0 %v2412
  %v2414 = vand.u32 %v1846, 4294901760
  %v2415 = vsub.f32 %v1846, %v2414
  %2416 = vmatpush.msra.mxu0 %v2415
  %v2417 = vand.u32 %v1845, 4294901760
  %v2418 = vsub.f32 %v1845, %v2417
  %2419 = vmatpush.msra.mxu0 %v2418
  %v2420 = vand.u32 %v1844, 4294901760
  %v2421 = vsub.f32 %v1844, %v2420
  %2422 = vmatpush.msra.mxu0 %v2421
  %v2423 = vand.u32 %v1843, 4294901760
  %v2424 = vsub.f32 %v1843, %v2423
  %2425 = vmatpush.msra.mxu0 %v2424
  %v2426 = vand.u32 %v1842, 4294901760
  %v2427 = vsub.f32 %v1842, %v2426
  %2428 = vmatpush.msra.mxu0 %v2427
  %v2429 = vand.u32 %v1841, 4294901760
  %v2430 = vsub.f32 %v1841, %v2429
  %2431 = vmatpush.msra.mxu0 %v2430
  %v2432 = vand.u32 %v1840, 4294901760
  %v2433 = vsub.f32 %v1840, %v2432
  %2434 = vmatpush.msra.mxu0 %v2433
  %v2435 = vand.u32 %v1839, 4294901760
  %v2436 = vsub.f32 %v1839, %v2435
  %2437 = vmatpush.msra.mxu0 %v2436
  %v2438 = vand.u32 %v1819, 4294901760
  %v2439 = vsub.f32 %v1819, %v2438
  %2440 = vmatmul.f32.gmra.mxu0 %v2439
  %v2441 = vpop.f32.mrf.mxu0
  %v2442 = vadd.f32 %v2388, %v2441
  %2443 = vdwg.mxu0
  %v2444 = vand.u32 %v1854, 4294901760
  %2445 = vmatpush.msra.mxu0 %v2444
  %v2446 = vand.u32 %v1853, 4294901760
  %2447 = vmatpush.msra.mxu0 %v2446
  %v2448 = vand.u32 %v1852, 4294901760
  %2449 = vmatpush.msra.mxu0 %v2448
  %v2450 = vand.u32 %v1851, 4294901760
  %2451 = vmatpush.msra.mxu0 %v2450
  %v2452 = vand.u32 %v1850, 4294901760
  %2453 = vmatpush.msra.mxu0 %v2452
  %v2454 = vand.u32 %v1849, 4294901760
  %2455 = vmatpush.msra.mxu0 %v2454
  %v2456 = vand.u32 %v1848, 4294901760
  %2457 = vmatpush.msra.mxu0 %v2456
  %v2458 = vand.u32 %v1847, 4294901760
  %2459 = vmatpush.msra.mxu0 %v2458
  %v2460 = vand.u32 %v1846, 4294901760
  %2461 = vmatpush.msra.mxu0 %v2460
  %v2462 = vand.u32 %v1845, 4294901760
  %2463 = vmatpush.msra.mxu0 %v2462
  %v2464 = vand.u32 %v1844, 4294901760
  %2465 = vmatpush.msra.mxu0 %v2464
  %v2466 = vand.u32 %v1843, 4294901760
  %2467 = vmatpush.msra.mxu0 %v2466
  %v2468 = vand.u32 %v1842, 4294901760
  %2469 = vmatpush.msra.mxu0 %v2468
  %v2470 = vand.u32 %v1841, 4294901760
  %2471 = vmatpush.msra.mxu0 %v2470
  %v2472 = vand.u32 %v1840, 4294901760
  %2473 = vmatpush.msra.mxu0 %v2472
  %v2474 = vand.u32 %v1839, 4294901760
  %2475 = vmatpush.msra.mxu0 %v2474
  %v2476 = vand.u32 %v1819, 4294901760
  %v2477 = vsub.f32 %v1819, %v2476
  %v2478 = vand.u32 %v2477, 4294901760
  %2479 = vmatmul.f32.gmra.mxu0 %v2478
  %v2480 = vpop.f32.mrf.mxu0
  %v2481 = vadd.f32 %v2442, %v2480
  %2482 = vdwg.mxu0
  %v2483 = vand.u32 %v1854, 4294901760
  %v2484 = vsub.f32 %v1854, %v2483
  %v2485 = vand.u32 %v2484, 4294901760
  %2486 = vmatpush.msra.mxu0 %v2485
  %v2487 = vand.u32 %v1853, 4294901760
  %v2488 = vsub.f32 %v1853, %v2487
  %v2489 = vand.u32 %v2488, 4294901760
  %2490 = vmatpush.msra.mxu0 %v2489
  %v2491 = vand.u32 %v1852, 4294901760
  %v2492 = vsub.f32 %v1852, %v2491
  %v2493 = vand.u32 %v2492, 4294901760
  %2494 = vmatpush.msra.mxu0 %v2493
  %v2495 = vand.u32 %v1851, 4294901760
  %v2496 = vsub.f32 %v1851, %v2495
  %v2497 = vand.u32 %v2496, 4294901760
  %2498 = vmatpush.msra.mxu0 %v2497
  %v2499 = vand.u32 %v1850, 4294901760
  %v2500 = vsub.f32 %v1850, %v2499
  %v2501 = vand.u32 %v2500, 4294901760
  %2502 = vmatpush.msra.mxu0 %v2501
  %v2503 = vand.u32 %v1849, 4294901760
  %v2504 = vsub.f32 %v1849, %v2503
  %v2505 = vand.u32 %v2504, 4294901760
  %2506 = vmatpush.msra.mxu0 %v2505
  %v2507 = vand.u32 %v1848, 4294901760
  %v2508 = vsub.f32 %v1848, %v2507
  %v2509 = vand.u32 %v2508, 4294901760
  %2510 = vmatpush.msra.mxu0 %v2509
  %v2511 = vand.u32 %v1847, 4294901760
  %v2512 = vsub.f32 %v1847, %v2511
  %v2513 = vand.u32 %v2512, 4294901760
  %2514 = vmatpush.msra.mxu0 %v2513
  %v2515 = vand.u32 %v1846, 4294901760
  %v2516 = vsub.f32 %v1846, %v2515
  %v2517 = vand.u32 %v2516, 4294901760
  %2518 = vmatpush.msra.mxu0 %v2517
  %v2519 = vand.u32 %v1845, 4294901760
  %v2520 = vsub.f32 %v1845, %v2519
  %v2521 = vand.u32 %v2520, 4294901760
  %2522 = vmatpush.msra.mxu0 %v2521
  %v2523 = vand.u32 %v1844, 4294901760
  %v2524 = vsub.f32 %v1844, %v2523
  %v2525 = vand.u32 %v2524, 4294901760
  %2526 = vmatpush.msra.mxu0 %v2525
  %v2527 = vand.u32 %v1843, 4294901760
  %v2528 = vsub.f32 %v1843, %v2527
  %v2529 = vand.u32 %v2528, 4294901760
  %2530 = vmatpush.msra.mxu0 %v2529
  %v2531 = vand.u32 %v1842, 4294901760
  %v2532 = vsub.f32 %v1842, %v2531
  %v2533 = vand.u32 %v2532, 4294901760
  %2534 = vmatpush.msra.mxu0 %v2533
  %v2535 = vand.u32 %v1841, 4294901760
  %v2536 = vsub.f32 %v1841, %v2535
  %v2537 = vand.u32 %v2536, 4294901760
  %2538 = vmatpush.msra.mxu0 %v2537
  %v2539 = vand.u32 %v1840, 4294901760
  %v2540 = vsub.f32 %v1840, %v2539
  %v2541 = vand.u32 %v2540, 4294901760
  %2542 = vmatpush.msra.mxu0 %v2541
  %v2543 = vand.u32 %v1839, 4294901760
  %v2544 = vsub.f32 %v1839, %v2543
  %v2545 = vand.u32 %v2544, 4294901760
  %2546 = vmatpush.msra.mxu0 %v2545
  %v2547 = vand.u32 %v1819, 4294901760
  %2548 = vmatmul.f32.gmra.mxu0 %v2547
  %v2549 = vpop.f32.mrf.mxu0
  %v2550 = vadd.f32 %v2481, %v2549
  %2551 = vdwg.mxu0
  %v2552 = vand.u32 %v1854, 4294901760
  %2553 = vmatpush.msra.mxu0 %v2552
  %v2554 = vand.u32 %v1853, 4294901760
  %2555 = vmatpush.msra.mxu0 %v2554
  %v2556 = vand.u32 %v1852, 4294901760
  %2557 = vmatpush.msra.mxu0 %v2556
  %v2558 = vand.u32 %v1851, 4294901760
  %2559 = vmatpush.msra.mxu0 %v2558
  %v2560 = vand.u32 %v1850, 4294901760
  %2561 = vmatpush.msra.mxu0 %v2560
  %v2562 = vand.u32 %v1849, 4294901760
  %2563 = vmatpush.msra.mxu0 %v2562
  %v2564 = vand.u32 %v1848, 4294901760
  %2565 = vmatpush.msra.mxu0 %v2564
  %v2566 = vand.u32 %v1847, 4294901760
  %2567 = vmatpush.msra.mxu0 %v2566
  %v2568 = vand.u32 %v1846, 4294901760
  %2569 = vmatpush.msra.mxu0 %v2568
  %v2570 = vand.u32 %v1845, 4294901760
  %2571 = vmatpush.msra.mxu0 %v2570
  %v2572 = vand.u32 %v1844, 4294901760
  %2573 = vmatpush.msra.mxu0 %v2572
  %v2574 = vand.u32 %v1843, 4294901760
  %2575 = vmatpush.msra.mxu0 %v2574
  %v2576 = vand.u32 %v1842, 4294901760
  %2577 = vmatpush.msra.mxu0 %v2576
  %v2578 = vand.u32 %v1841, 4294901760
  %2579 = vmatpush.msra.mxu0 %v2578
  %v2580 = vand.u32 %v1840, 4294901760
  %2581 = vmatpush.msra.mxu0 %v2580
  %v2582 = vand.u32 %v1839, 4294901760
  %2583 = vmatpush.msra.mxu0 %v2582
  %v2584 = vand.u32 %v1819, 4294901760
  %2585 = vmatmul.f32.gmra.mxu0 %v2584
  %v2586 = vpop.f32.mrf.mxu0
  %v2587 = vadd.f32 %v2550, %v2586
  %2588 = vdwg.mxu0
  %v2589 = vand.u32 %v1870, 4294901760
  %2590 = vmatpush.msra.mxu0 %v2589
  %v2591 = vand.u32 %v1869, 4294901760
  %2592 = vmatpush.msra.mxu0 %v2591
  %v2593 = vand.u32 %v1868, 4294901760
  %2594 = vmatpush.msra.mxu0 %v2593
  %v2595 = vand.u32 %v1867, 4294901760
  %2596 = vmatpush.msra.mxu0 %v2595
  %v2597 = vand.u32 %v1866, 4294901760
  %2598 = vmatpush.msra.mxu0 %v2597
  %v2599 = vand.u32 %v1865, 4294901760
  %2600 = vmatpush.msra.mxu0 %v2599
  %v2601 = vand.u32 %v1864, 4294901760
  %2602 = vmatpush.msra.mxu0 %v2601
  %v2603 = vand.u32 %v1863, 4294901760
  %2604 = vmatpush.msra.mxu0 %v2603
  %v2605 = vand.u32 %v1862, 4294901760
  %2606 = vmatpush.msra.mxu0 %v2605
  %v2607 = vand.u32 %v1861, 4294901760
  %2608 = vmatpush.msra.mxu0 %v2607
  %v2609 = vand.u32 %v1860, 4294901760
  %2610 = vmatpush.msra.mxu0 %v2609
  %v2611 = vand.u32 %v1859, 4294901760
  %2612 = vmatpush.msra.mxu0 %v2611
  %v2613 = vand.u32 %v1858, 4294901760
  %2614 = vmatpush.msra.mxu0 %v2613
  %v2615 = vand.u32 %v1857, 4294901760
  %2616 = vmatpush.msra.mxu0 %v2615
  %v2617 = vand.u32 %v1856, 4294901760
  %2618 = vmatpush.msra.mxu0 %v2617
  %v2619 = vand.u32 %v1855, 4294901760
  %2620 = vmatpush.msra.mxu0 %v2619
  %v2621 = vand.u32 %v1820, 4294901760
  %v2622 = vsub.f32 %v1820, %v2621
  %v2623 = vand.u32 %v2622, 4294901760
  %v2624 = vsub.f32 %v2622, %v2623
  %v2625 = vand.u32 %v2624, 4294901760
  %2626 = vmatmul.f32.gmra.mxu0 %v2625
  %v2627 = vpop.f32.mrf.mxu0
  %v2628 = vadd.f32 %v2587, %v2627
  %2629 = vdwg.mxu0
  %v2630 = vand.u32 %v1870, 4294901760
  %v2631 = vsub.f32 %v1870, %v2630
  %v2632 = vand.u32 %v2631, 4294901760
  %v2633 = vsub.f32 %v2631, %v2632
  %v2634 = vand.u32 %v2633, 4294901760
  %2635 = vmatpush.msra.mxu0 %v2634
  %v2636 = vand.u32 %v1869, 4294901760
  %v2637 = vsub.f32 %v1869, %v2636
  %v2638 = vand.u32 %v2637, 4294901760
  %v2639 = vsub.f32 %v2637, %v2638
  %v2640 = vand.u32 %v2639, 4294901760
  %2641 = vmatpush.msra.mxu0 %v2640
  %v2642 = vand.u32 %v1868, 4294901760
  %v2643 = vsub.f32 %v1868, %v2642
  %v2644 = vand.u32 %v2643, 4294901760
  %v2645 = vsub.f32 %v2643, %v2644
  %v2646 = vand.u32 %v2645, 4294901760
  %2647 = vmatpush.msra.mxu0 %v2646
  %v2648 = vand.u32 %v1867, 4294901760
  %v2649 = vsub.f32 %v1867, %v2648
  %v2650 = vand.u32 %v2649, 4294901760
  %v2651 = vsub.f32 %v2649, %v2650
  %v2652 = vand.u32 %v2651, 4294901760
  %2653 = vmatpush.msra.mxu0 %v2652
  %v2654 = vand.u32 %v1866, 4294901760
  %v2655 = vsub.f32 %v1866, %v2654
  %v2656 = vand.u32 %v2655, 4294901760
  %v2657 = vsub.f32 %v2655, %v2656
  %v2658 = vand.u32 %v2657, 4294901760
  %2659 = vmatpush.msra.mxu0 %v2658
  %v2660 = vand.u32 %v1865, 4294901760
  %v2661 = vsub.f32 %v1865, %v2660
  %v2662 = vand.u32 %v2661, 4294901760
  %v2663 = vsub.f32 %v2661, %v2662
  %v2664 = vand.u32 %v2663, 4294901760
  %2665 = vmatpush.msra.mxu0 %v2664
  %v2666 = vand.u32 %v1864, 4294901760
  %v2667 = vsub.f32 %v1864, %v2666
  %v2668 = vand.u32 %v2667, 4294901760
  %v2669 = vsub.f32 %v2667, %v2668
  %v2670 = vand.u32 %v2669, 4294901760
  %2671 = vmatpush.msra.mxu0 %v2670
  %v2672 = vand.u32 %v1863, 4294901760
  %v2673 = vsub.f32 %v1863, %v2672
  %v2674 = vand.u32 %v2673, 4294901760
  %v2675 = vsub.f32 %v2673, %v2674
  %v2676 = vand.u32 %v2675, 4294901760
  %2677 = vmatpush.msra.mxu0 %v2676
  %v2678 = vand.u32 %v1862, 4294901760
  %v2679 = vsub.f32 %v1862, %v2678
  %v2680 = vand.u32 %v2679, 4294901760
  %v2681 = vsub.f32 %v2679, %v2680
  %v2682 = vand.u32 %v2681, 4294901760
  %2683 = vmatpush.msra.mxu0 %v2682
  %v2684 = vand.u32 %v1861, 4294901760
  %v2685 = vsub.f32 %v1861, %v2684
  %v2686 = vand.u32 %v2685, 4294901760
  %v2687 = vsub.f32 %v2685, %v2686
  %v2688 = vand.u32 %v2687, 4294901760
  %2689 = vmatpush.msra.mxu0 %v2688
  %v2690 = vand.u32 %v1860, 4294901760
  %v2691 = vsub.f32 %v1860, %v2690
  %v2692 = vand.u32 %v2691, 4294901760
  %v2693 = vsub.f32 %v2691, %v2692
  %v2694 = vand.u32 %v2693, 4294901760
  %2695 = vmatpush.msra.mxu0 %v2694
  %v2696 = vand.u32 %v1859, 4294901760
  %v2697 = vsub.f32 %v1859, %v2696
  %v2698 = vand.u32 %v2697, 4294901760
  %v2699 = vsub.f32 %v2697, %v2698
  %v2700 = vand.u32 %v2699, 4294901760
  %2701 = vmatpush.msra.mxu0 %v2700
  %v2702 = vand.u32 %v1858, 4294901760
  %v2703 = vsub.f32 %v1858, %v2702
  %v2704 = vand.u32 %v2703, 4294901760
  %v2705 = vsub.f32 %v2703, %v2704
  %v2706 = vand.u32 %v2705, 4294901760
  %2707 = vmatpush.msra.mxu0 %v2706
  %v2708 = vand.u32 %v1857, 4294901760
  %v2709 = vsub.f32 %v1857, %v2708
  %v2710 = vand.u32 %v2709, 4294901760
  %v2711 = vsub.f32 %v2709, %v2710
  %v2712 = vand.u32 %v2711, 4294901760
  %2713 = vmatpush.msra.mxu0 %v2712
  %v2714 = vand.u32 %v1856, 4294901760
  %v2715 = vsub.f32 %v1856, %v2714
  %v2716 = vand.u32 %v2715, 4294901760
  %v2717 = vsub.f32 %v2715, %v2716
  %v2718 = vand.u32 %v2717, 4294901760
  %2719 = vmatpush.msra.mxu0 %v2718
  %v2720 = vand.u32 %v1855, 4294901760
  %v2721 = vsub.f32 %v1855, %v2720
  %v2722 = vand.u32 %v2721, 4294901760
  %v2723 = vsub.f32 %v2721, %v2722
  %v2724 = vand.u32 %v2723, 4294901760
  %2725 = vmatpush.msra.mxu0 %v2724
  %v2726 = vand.u32 %v1820, 4294901760
  %2727 = vmatmul.f32.gmra.mxu0 %v2726
  %v2728 = vpop.f32.mrf.mxu0
  %v2729 = vadd.f32 %v2628, %v2728
  %2730 = vdwg.mxu0
  %v2731 = vand.u32 %v1870, 4294901760
  %v2732 = vsub.f32 %v1870, %v2731
  %2733 = vmatpush.msra.mxu0 %v2732
  %v2734 = vand.u32 %v1869, 4294901760
  %v2735 = vsub.f32 %v1869, %v2734
  %2736 = vmatpush.msra.mxu0 %v2735
  %v2737 = vand.u32 %v1868, 4294901760
  %v2738 = vsub.f32 %v1868, %v2737
  %2739 = vmatpush.msra.mxu0 %v2738
  %v2740 = vand.u32 %v1867, 4294901760
  %v2741 = vsub.f32 %v1867, %v2740
  %2742 = vmatpush.msra.mxu0 %v2741
  %v2743 = vand.u32 %v1866, 4294901760
  %v2744 = vsub.f32 %v1866, %v2743
  %2745 = vmatpush.msra.mxu0 %v2744
  %v2746 = vand.u32 %v1865, 4294901760
  %v2747 = vsub.f32 %v1865, %v2746
  %2748 = vmatpush.msra.mxu0 %v2747
  %v2749 = vand.u32 %v1864, 4294901760
  %v2750 = vsub.f32 %v1864, %v2749
  %2751 = vmatpush.msra.mxu0 %v2750
  %v2752 = vand.u32 %v1863, 4294901760
  %v2753 = vsub.f32 %v1863, %v2752
  %2754 = vmatpush.msra.mxu0 %v2753
  %v2755 = vand.u32 %v1862, 4294901760
  %v2756 = vsub.f32 %v1862, %v2755
  %2757 = vmatpush.msra.mxu0 %v2756
  %v2758 = vand.u32 %v1861, 4294901760
  %v2759 = vsub.f32 %v1861, %v2758
  %2760 = vmatpush.msra.mxu0 %v2759
  %v2761 = vand.u32 %v1860, 4294901760
  %v2762 = vsub.f32 %v1860, %v2761
  %2763 = vmatpush.msra.mxu0 %v2762
  %v2764 = vand.u32 %v1859, 4294901760
  %v2765 = vsub.f32 %v1859, %v2764
  %2766 = vmatpush.msra.mxu0 %v2765
  %v2767 = vand.u32 %v1858, 4294901760
  %v2768 = vsub.f32 %v1858, %v2767
  %2769 = vmatpush.msra.mxu0 %v2768
  %v2770 = vand.u32 %v1857, 4294901760
  %v2771 = vsub.f32 %v1857, %v2770
  %2772 = vmatpush.msra.mxu0 %v2771
  %v2773 = vand.u32 %v1856, 4294901760
  %v2774 = vsub.f32 %v1856, %v2773
  %2775 = vmatpush.msra.mxu0 %v2774
  %v2776 = vand.u32 %v1855, 4294901760
  %v2777 = vsub.f32 %v1855, %v2776
  %2778 = vmatpush.msra.mxu0 %v2777
  %v2779 = vand.u32 %v1820, 4294901760
  %v2780 = vsub.f32 %v1820, %v2779
  %2781 = vmatmul.f32.gmra.mxu0 %v2780
  %v2782 = vpop.f32.mrf.mxu0
  %v2783 = vadd.f32 %v2729, %v2782
  %2784 = vdwg.mxu0
  %v2785 = vand.u32 %v1870, 4294901760
  %2786 = vmatpush.msra.mxu0 %v2785
  %v2787 = vand.u32 %v1869, 4294901760
  %2788 = vmatpush.msra.mxu0 %v2787
  %v2789 = vand.u32 %v1868, 4294901760
  %2790 = vmatpush.msra.mxu0 %v2789
  %v2791 = vand.u32 %v1867, 4294901760
  %2792 = vmatpush.msra.mxu0 %v2791
  %v2793 = vand.u32 %v1866, 4294901760
  %2794 = vmatpush.msra.mxu0 %v2793
  %v2795 = vand.u32 %v1865, 4294901760
  %2796 = vmatpush.msra.mxu0 %v2795
  %v2797 = vand.u32 %v1864, 4294901760
  %2798 = vmatpush.msra.mxu0 %v2797
  %v2799 = vand.u32 %v1863, 4294901760
  %2800 = vmatpush.msra.mxu0 %v2799
  %v2801 = vand.u32 %v1862, 4294901760
  %2802 = vmatpush.msra.mxu0 %v2801
  %v2803 = vand.u32 %v1861, 4294901760
  %2804 = vmatpush.msra.mxu0 %v2803
  %v2805 = vand.u32 %v1860, 4294901760
  %2806 = vmatpush.msra.mxu0 %v2805
  %v2807 = vand.u32 %v1859, 4294901760
  %2808 = vmatpush.msra.mxu0 %v2807
  %v2809 = vand.u32 %v1858, 4294901760
  %2810 = vmatpush.msra.mxu0 %v2809
  %v2811 = vand.u32 %v1857, 4294901760
  %2812 = vmatpush.msra.mxu0 %v2811
  %v2813 = vand.u32 %v1856, 4294901760
  %2814 = vmatpush.msra.mxu0 %v2813
  %v2815 = vand.u32 %v1855, 4294901760
  %2816 = vmatpush.msra.mxu0 %v2815
  %v2817 = vand.u32 %v1820, 4294901760
  %v2818 = vsub.f32 %v1820, %v2817
  %v2819 = vand.u32 %v2818, 4294901760
  %2820 = vmatmul.f32.gmra.mxu0 %v2819
  %v2821 = vpop.f32.mrf.mxu0
  %v2822 = vadd.f32 %v2783, %v2821
  %2823 = vdwg.mxu0
  %v2824 = vand.u32 %v1870, 4294901760
  %v2825 = vsub.f32 %v1870, %v2824
  %v2826 = vand.u32 %v2825, 4294901760
  %2827 = vmatpush.msra.mxu0 %v2826
  %v2828 = vand.u32 %v1869, 4294901760
  %v2829 = vsub.f32 %v1869, %v2828
  %v2830 = vand.u32 %v2829, 4294901760
  %2831 = vmatpush.msra.mxu0 %v2830
  %v2832 = vand.u32 %v1868, 4294901760
  %v2833 = vsub.f32 %v1868, %v2832
  %v2834 = vand.u32 %v2833, 4294901760
  %2835 = vmatpush.msra.mxu0 %v2834
  %v2836 = vand.u32 %v1867, 4294901760
  %v2837 = vsub.f32 %v1867, %v2836
  %v2838 = vand.u32 %v2837, 4294901760
  %2839 = vmatpush.msra.mxu0 %v2838
  %v2840 = vand.u32 %v1866, 4294901760
  %v2841 = vsub.f32 %v1866, %v2840
  %v2842 = vand.u32 %v2841, 4294901760
  %2843 = vmatpush.msra.mxu0 %v2842
  %v2844 = vand.u32 %v1865, 4294901760
  %v2845 = vsub.f32 %v1865, %v2844
  %v2846 = vand.u32 %v2845, 4294901760
  %2847 = vmatpush.msra.mxu0 %v2846
  %v2848 = vand.u32 %v1864, 4294901760
  %v2849 = vsub.f32 %v1864, %v2848
  %v2850 = vand.u32 %v2849, 4294901760
  %2851 = vmatpush.msra.mxu0 %v2850
  %v2852 = vand.u32 %v1863, 4294901760
  %v2853 = vsub.f32 %v1863, %v2852
  %v2854 = vand.u32 %v2853, 4294901760
  %2855 = vmatpush.msra.mxu0 %v2854
  %v2856 = vand.u32 %v1862, 4294901760
  %v2857 = vsub.f32 %v1862, %v2856
  %v2858 = vand.u32 %v2857, 4294901760
  %2859 = vmatpush.msra.mxu0 %v2858
  %v2860 = vand.u32 %v1861, 4294901760
  %v2861 = vsub.f32 %v1861, %v2860
  %v2862 = vand.u32 %v2861, 4294901760
  %2863 = vmatpush.msra.mxu0 %v2862
  %v2864 = vand.u32 %v1860, 4294901760
  %v2865 = vsub.f32 %v1860, %v2864
  %v2866 = vand.u32 %v2865, 4294901760
  %2867 = vmatpush.msra.mxu0 %v2866
  %v2868 = vand.u32 %v1859, 4294901760
  %v2869 = vsub.f32 %v1859, %v2868
  %v2870 = vand.u32 %v2869, 4294901760
  %2871 = vmatpush.msra.mxu0 %v2870
  %v2872 = vand.u32 %v1858, 4294901760
  %v2873 = vsub.f32 %v1858, %v2872
  %v2874 = vand.u32 %v2873, 4294901760
  %2875 = vmatpush.msra.mxu0 %v2874
  %v2876 = vand.u32 %v1857, 4294901760
  %v2877 = vsub.f32 %v1857, %v2876
  %v2878 = vand.u32 %v2877, 4294901760
  %2879 = vmatpush.msra.mxu0 %v2878
  %v2880 = vand.u32 %v1856, 4294901760
  %v2881 = vsub.f32 %v1856, %v2880
  %v2882 = vand.u32 %v2881, 4294901760
  %2883 = vmatpush.msra.mxu0 %v2882
  %v2884 = vand.u32 %v1855, 4294901760
  %v2885 = vsub.f32 %v1855, %v2884
  %v2886 = vand.u32 %v2885, 4294901760
  %2887 = vmatpush.msra.mxu0 %v2886
  %v2888 = vand.u32 %v1820, 4294901760
  %2889 = vmatmul.f32.gmra.mxu0 %v2888
  %v2890 = vpop.f32.mrf.mxu0
  %v2891 = vadd.f32 %v2822, %v2890
  %2892 = vdwg.mxu0
  %v2893 = vand.u32 %v1870, 4294901760
  %2894 = vmatpush.msra.mxu0 %v2893
  %v2895 = vand.u32 %v1869, 4294901760
  %2896 = vmatpush.msra.mxu0 %v2895
  %v2897 = vand.u32 %v1868, 4294901760
  %2898 = vmatpush.msra.mxu0 %v2897
  %v2899 = vand.u32 %v1867, 4294901760
  %2900 = vmatpush.msra.mxu0 %v2899
  %v2901 = vand.u32 %v1866, 4294901760
  %2902 = vmatpush.msra.mxu0 %v2901
  %v2903 = vand.u32 %v1865, 4294901760
  %2904 = vmatpush.msra.mxu0 %v2903
  %v2905 = vand.u32 %v1864, 4294901760
  %2906 = vmatpush.msra.mxu0 %v2905
  %v2907 = vand.u32 %v1863, 4294901760
  %2908 = vmatpush.msra.mxu0 %v2907
  %v2909 = vand.u32 %v1862, 4294901760
  %2910 = vmatpush.msra.mxu0 %v2909
  %v2911 = vand.u32 %v1861, 4294901760
  %2912 = vmatpush.msra.mxu0 %v2911
  %v2913 = vand.u32 %v1860, 4294901760
  %2914 = vmatpush.msra.mxu0 %v2913
  %v2915 = vand.u32 %v1859, 4294901760
  %2916 = vmatpush.msra.mxu0 %v2915
  %v2917 = vand.u32 %v1858, 4294901760
  %2918 = vmatpush.msra.mxu0 %v2917
  %v2919 = vand.u32 %v1857, 4294901760
  %2920 = vmatpush.msra.mxu0 %v2919
  %v2921 = vand.u32 %v1856, 4294901760
  %2922 = vmatpush.msra.mxu0 %v2921
  %v2923 = vand.u32 %v1855, 4294901760
  %2924 = vmatpush.msra.mxu0 %v2923
  %v2925 = vand.u32 %v1820, 4294901760
  %2926 = vmatmul.f32.gmra.mxu0 %v2925
  %v2927 = vpop.f32.mrf.mxu0
  %v2928 = vadd.f32 %v2891, %v2927
  %2929 = vdwg.mxu0
  %v2930 = vand.u32 %v1886, 4294901760
  %2931 = vmatpush.msra.mxu0 %v2930
  %v2932 = vand.u32 %v1885, 4294901760
  %2933 = vmatpush.msra.mxu0 %v2932
  %v2934 = vand.u32 %v1884, 4294901760
  %2935 = vmatpush.msra.mxu0 %v2934
  %v2936 = vand.u32 %v1883, 4294901760
  %2937 = vmatpush.msra.mxu0 %v2936
  %v2938 = vand.u32 %v1882, 4294901760
  %2939 = vmatpush.msra.mxu0 %v2938
  %v2940 = vand.u32 %v1881, 4294901760
  %2941 = vmatpush.msra.mxu0 %v2940
  %v2942 = vand.u32 %v1880, 4294901760
  %2943 = vmatpush.msra.mxu0 %v2942
  %v2944 = vand.u32 %v1879, 4294901760
  %2945 = vmatpush.msra.mxu0 %v2944
  %v2946 = vand.u32 %v1878, 4294901760
  %2947 = vmatpush.msra.mxu0 %v2946
  %v2948 = vand.u32 %v1877, 4294901760
  %2949 = vmatpush.msra.mxu0 %v2948
  %v2950 = vand.u32 %v1876, 4294901760
  %2951 = vmatpush.msra.mxu0 %v2950
  %v2952 = vand.u32 %v1875, 4294901760
  %2953 = vmatpush.msra.mxu0 %v2952
  %v2954 = vand.u32 %v1874, 4294901760
  %2955 = vmatpush.msra.mxu0 %v2954
  %v2956 = vand.u32 %v1873, 4294901760
  %2957 = vmatpush.msra.mxu0 %v2956
  %v2958 = vand.u32 %v1872, 4294901760
  %2959 = vmatpush.msra.mxu0 %v2958
  %v2960 = vand.u32 %v1871, 4294901760
  %2961 = vmatpush.msra.mxu0 %v2960
  %v2962 = vand.u32 %v1821, 4294901760
  %v2963 = vsub.f32 %v1821, %v2962
  %v2964 = vand.u32 %v2963, 4294901760
  %v2965 = vsub.f32 %v2963, %v2964
  %v2966 = vand.u32 %v2965, 4294901760
  %2967 = vmatmul.f32.gmra.mxu0 %v2966
  %v2968 = vpop.f32.mrf.mxu0
  %v2969 = vadd.f32 %v2928, %v2968
  %2970 = vdwg.mxu0
  %v2971 = vand.u32 %v1886, 4294901760
  %v2972 = vsub.f32 %v1886, %v2971
  %v2973 = vand.u32 %v2972, 4294901760
  %v2974 = vsub.f32 %v2972, %v2973
  %v2975 = vand.u32 %v2974, 4294901760
  %2976 = vmatpush.msra.mxu0 %v2975
  %v2977 = vand.u32 %v1885, 4294901760
  %v2978 = vsub.f32 %v1885, %v2977
  %v2979 = vand.u32 %v2978, 4294901760
  %v2980 = vsub.f32 %v2978, %v2979
  %v2981 = vand.u32 %v2980, 4294901760
  %2982 = vmatpush.msra.mxu0 %v2981
  %v2983 = vand.u32 %v1884, 4294901760
  %v2984 = vsub.f32 %v1884, %v2983
  %v2985 = vand.u32 %v2984, 4294901760
  %v2986 = vsub.f32 %v2984, %v2985
  %v2987 = vand.u32 %v2986, 4294901760
  %2988 = vmatpush.msra.mxu0 %v2987
  %v2989 = vand.u32 %v1883, 4294901760
  %v2990 = vsub.f32 %v1883, %v2989
  %v2991 = vand.u32 %v2990, 4294901760
  %v2992 = vsub.f32 %v2990, %v2991
  %v2993 = vand.u32 %v2992, 4294901760
  %2994 = vmatpush.msra.mxu0 %v2993
  %v2995 = vand.u32 %v1882, 4294901760
  %v2996 = vsub.f32 %v1882, %v2995
  %v2997 = vand.u32 %v2996, 4294901760
  %v2998 = vsub.f32 %v2996, %v2997
  %v2999 = vand.u32 %v2998, 4294901760
  %3000 = vmatpush.msra.mxu0 %v2999
  %v3001 = vand.u32 %v1881, 4294901760
  %v3002 = vsub.f32 %v1881, %v3001
  %v3003 = vand.u32 %v3002, 4294901760
  %v3004 = vsub.f32 %v3002, %v3003
  %v3005 = vand.u32 %v3004, 4294901760
  %3006 = vmatpush.msra.mxu0 %v3005
  %v3007 = vand.u32 %v1880, 4294901760
  %v3008 = vsub.f32 %v1880, %v3007
  %v3009 = vand.u32 %v3008, 4294901760
  %v3010 = vsub.f32 %v3008, %v3009
  %v3011 = vand.u32 %v3010, 4294901760
  %3012 = vmatpush.msra.mxu0 %v3011
  %v3013 = vand.u32 %v1879, 4294901760
  %v3014 = vsub.f32 %v1879, %v3013
  %v3015 = vand.u32 %v3014, 4294901760
  %v3016 = vsub.f32 %v3014, %v3015
  %v3017 = vand.u32 %v3016, 4294901760
  %3018 = vmatpush.msra.mxu0 %v3017
  %v3019 = vand.u32 %v1878, 4294901760
  %v3020 = vsub.f32 %v1878, %v3019
  %v3021 = vand.u32 %v3020, 4294901760
  %v3022 = vsub.f32 %v3020, %v3021
  %v3023 = vand.u32 %v3022, 4294901760
  %3024 = vmatpush.msra.mxu0 %v3023
  %v3025 = vand.u32 %v1877, 4294901760
  %v3026 = vsub.f32 %v1877, %v3025
  %v3027 = vand.u32 %v3026, 4294901760
  %v3028 = vsub.f32 %v3026, %v3027
  %v3029 = vand.u32 %v3028, 4294901760
  %3030 = vmatpush.msra.mxu0 %v3029
  %v3031 = vand.u32 %v1876, 4294901760
  %v3032 = vsub.f32 %v1876, %v3031
  %v3033 = vand.u32 %v3032, 4294901760
  %v3034 = vsub.f32 %v3032, %v3033
  %v3035 = vand.u32 %v3034, 4294901760
  %3036 = vmatpush.msra.mxu0 %v3035
  %v3037 = vand.u32 %v1875, 4294901760
  %v3038 = vsub.f32 %v1875, %v3037
  %v3039 = vand.u32 %v3038, 4294901760
  %v3040 = vsub.f32 %v3038, %v3039
  %v3041 = vand.u32 %v3040, 4294901760
  %3042 = vmatpush.msra.mxu0 %v3041
  %v3043 = vand.u32 %v1874, 4294901760
  %v3044 = vsub.f32 %v1874, %v3043
  %v3045 = vand.u32 %v3044, 4294901760
  %v3046 = vsub.f32 %v3044, %v3045
  %v3047 = vand.u32 %v3046, 4294901760
  %3048 = vmatpush.msra.mxu0 %v3047
  %v3049 = vand.u32 %v1873, 4294901760
  %v3050 = vsub.f32 %v1873, %v3049
  %v3051 = vand.u32 %v3050, 4294901760
  %v3052 = vsub.f32 %v3050, %v3051
  %v3053 = vand.u32 %v3052, 4294901760
  %3054 = vmatpush.msra.mxu0 %v3053
  %v3055 = vand.u32 %v1872, 4294901760
  %v3056 = vsub.f32 %v1872, %v3055
  %v3057 = vand.u32 %v3056, 4294901760
  %v3058 = vsub.f32 %v3056, %v3057
  %v3059 = vand.u32 %v3058, 4294901760
  %3060 = vmatpush.msra.mxu0 %v3059
  %v3061 = vand.u32 %v1871, 4294901760
  %v3062 = vsub.f32 %v1871, %v3061
  %v3063 = vand.u32 %v3062, 4294901760
  %v3064 = vsub.f32 %v3062, %v3063
  %v3065 = vand.u32 %v3064, 4294901760
  %3066 = vmatpush.msra.mxu0 %v3065
  %v3067 = vand.u32 %v1821, 4294901760
  %3068 = vmatmul.f32.gmra.mxu0 %v3067
  %v3069 = vpop.f32.mrf.mxu0
  %v3070 = vadd.f32 %v2969, %v3069
  %3071 = vdwg.mxu0
  %v3072 = vand.u32 %v1886, 4294901760
  %v3073 = vsub.f32 %v1886, %v3072
  %3074 = vmatpush.msra.mxu0 %v3073
  %v3075 = vand.u32 %v1885, 4294901760
  %v3076 = vsub.f32 %v1885, %v3075
  %3077 = vmatpush.msra.mxu0 %v3076
  %v3078 = vand.u32 %v1884, 4294901760
  %v3079 = vsub.f32 %v1884, %v3078
  %3080 = vmatpush.msra.mxu0 %v3079
  %v3081 = vand.u32 %v1883, 4294901760
  %v3082 = vsub.f32 %v1883, %v3081
  %3083 = vmatpush.msra.mxu0 %v3082
  %v3084 = vand.u32 %v1882, 4294901760
  %v3085 = vsub.f32 %v1882, %v3084
  %3086 = vmatpush.msra.mxu0 %v3085
  %v3087 = vand.u32 %v1881, 4294901760
  %v3088 = vsub.f32 %v1881, %v3087
  %3089 = vmatpush.msra.mxu0 %v3088
  %v3090 = vand.u32 %v1880, 4294901760
  %v3091 = vsub.f32 %v1880, %v3090
  %3092 = vmatpush.msra.mxu0 %v3091
  %v3093 = vand.u32 %v1879, 4294901760
  %v3094 = vsub.f32 %v1879, %v3093
  %3095 = vmatpush.msra.mxu0 %v3094
  %v3096 = vand.u32 %v1878, 4294901760
  %v3097 = vsub.f32 %v1878, %v3096
  %3098 = vmatpush.msra.mxu0 %v3097
  %v3099 = vand.u32 %v1877, 4294901760
  %v3100 = vsub.f32 %v1877, %v3099
  %3101 = vmatpush.msra.mxu0 %v3100
  %v3102 = vand.u32 %v1876, 4294901760
  %v3103 = vsub.f32 %v1876, %v3102
  %3104 = vmatpush.msra.mxu0 %v3103
  %v3105 = vand.u32 %v1875, 4294901760
  %v3106 = vsub.f32 %v1875, %v3105
  %3107 = vmatpush.msra.mxu0 %v3106
  %v3108 = vand.u32 %v1874, 4294901760
  %v3109 = vsub.f32 %v1874, %v3108
  %3110 = vmatpush.msra.mxu0 %v3109
  %v3111 = vand.u32 %v1873, 4294901760
  %v3112 = vsub.f32 %v1873, %v3111
  %3113 = vmatpush.msra.mxu0 %v3112
  %v3114 = vand.u32 %v1872, 4294901760
  %v3115 = vsub.f32 %v1872, %v3114
  %3116 = vmatpush.msra.mxu0 %v3115
  %v3117 = vand.u32 %v1871, 4294901760
  %v3118 = vsub.f32 %v1871, %v3117
  %3119 = vmatpush.msra.mxu0 %v3118
  %v3120 = vand.u32 %v1821, 4294901760
  %v3121 = vsub.f32 %v1821, %v3120
  %3122 = vmatmul.f32.gmra.mxu0 %v3121
  %v3123 = vpop.f32.mrf.mxu0
  %v3124 = vadd.f32 %v3070, %v3123
  %3125 = vdwg.mxu0
  %v3126 = vand.u32 %v1886, 4294901760
  %3127 = vmatpush.msra.mxu0 %v3126
  %v3128 = vand.u32 %v1885, 4294901760
  %3129 = vmatpush.msra.mxu0 %v3128
  %v3130 = vand.u32 %v1884, 4294901760
  %3131 = vmatpush.msra.mxu0 %v3130
  %v3132 = vand.u32 %v1883, 4294901760
  %3133 = vmatpush.msra.mxu0 %v3132
  %v3134 = vand.u32 %v1882, 4294901760
  %3135 = vmatpush.msra.mxu0 %v3134
  %v3136 = vand.u32 %v1881, 4294901760
  %3137 = vmatpush.msra.mxu0 %v3136
  %v3138 = vand.u32 %v1880, 4294901760
  %3139 = vmatpush.msra.mxu0 %v3138
  %v3140 = vand.u32 %v1879, 4294901760
  %3141 = vmatpush.msra.mxu0 %v3140
  %v3142 = vand.u32 %v1878, 4294901760
  %3143 = vmatpush.msra.mxu0 %v3142
  %v3144 = vand.u32 %v1877, 4294901760
  %3145 = vmatpush.msra.mxu0 %v3144
  %v3146 = vand.u32 %v1876, 4294901760
  %3147 = vmatpush.msra.mxu0 %v3146
  %v3148 = vand.u32 %v1875, 4294901760
  %3149 = vmatpush.msra.mxu0 %v3148
  %v3150 = vand.u32 %v1874, 4294901760
  %3151 = vmatpush.msra.mxu0 %v3150
  %v3152 = vand.u32 %v1873, 4294901760
  %3153 = vmatpush.msra.mxu0 %v3152
  %v3154 = vand.u32 %v1872, 4294901760
  %3155 = vmatpush.msra.mxu0 %v3154
  %v3156 = vand.u32 %v1871, 4294901760
  %3157 = vmatpush.msra.mxu0 %v3156
  %v3158 = vand.u32 %v1821, 4294901760
  %v3159 = vsub.f32 %v1821, %v3158
  %v3160 = vand.u32 %v3159, 4294901760
  %3161 = vmatmul.f32.gmra.mxu0 %v3160
  %v3162 = vpop.f32.mrf.mxu0
  %v3163 = vadd.f32 %v3124, %v3162
  %3164 = vdwg.mxu0
  %v3165 = vand.u32 %v1886, 4294901760
  %v3166 = vsub.f32 %v1886, %v3165
  %v3167 = vand.u32 %v3166, 4294901760
  %3168 = vmatpush.msra.mxu0 %v3167
  %v3169 = vand.u32 %v1885, 4294901760
  %v3170 = vsub.f32 %v1885, %v3169
  %v3171 = vand.u32 %v3170, 4294901760
  %3172 = vmatpush.msra.mxu0 %v3171
  %v3173 = vand.u32 %v1884, 4294901760
  %v3174 = vsub.f32 %v1884, %v3173
  %v3175 = vand.u32 %v3174, 4294901760
  %3176 = vmatpush.msra.mxu0 %v3175
  %v3177 = vand.u32 %v1883, 4294901760
  %v3178 = vsub.f32 %v1883, %v3177
  %v3179 = vand.u32 %v3178, 4294901760
  %3180 = vmatpush.msra.mxu0 %v3179
  %v3181 = vand.u32 %v1882, 4294901760
  %v3182 = vsub.f32 %v1882, %v3181
  %v3183 = vand.u32 %v3182, 4294901760
  %3184 = vmatpush.msra.mxu0 %v3183
  %v3185 = vand.u32 %v1881, 4294901760
  %v3186 = vsub.f32 %v1881, %v3185
  %v3187 = vand.u32 %v3186, 4294901760
  %3188 = vmatpush.msra.mxu0 %v3187
  %v3189 = vand.u32 %v1880, 4294901760
  %v3190 = vsub.f32 %v1880, %v3189
  %v3191 = vand.u32 %v3190, 4294901760
  %3192 = vmatpush.msra.mxu0 %v3191
  %v3193 = vand.u32 %v1879, 4294901760
  %v3194 = vsub.f32 %v1879, %v3193
  %v3195 = vand.u32 %v3194, 4294901760
  %3196 = vmatpush.msra.mxu0 %v3195
  %v3197 = vand.u32 %v1878, 4294901760
  %v3198 = vsub.f32 %v1878, %v3197
  %v3199 = vand.u32 %v3198, 4294901760
  %3200 = vmatpush.msra.mxu0 %v3199
  %v3201 = vand.u32 %v1877, 4294901760
  %v3202 = vsub.f32 %v1877, %v3201
  %v3203 = vand.u32 %v3202, 4294901760
  %3204 = vmatpush.msra.mxu0 %v3203
  %v3205 = vand.u32 %v1876, 4294901760
  %v3206 = vsub.f32 %v1876, %v3205
  %v3207 = vand.u32 %v3206, 4294901760
  %3208 = vmatpush.msra.mxu0 %v3207
  %v3209 = vand.u32 %v1875, 4294901760
  %v3210 = vsub.f32 %v1875, %v3209
  %v3211 = vand.u32 %v3210, 4294901760
  %3212 = vmatpush.msra.mxu0 %v3211
  %v3213 = vand.u32 %v1874, 4294901760
  %v3214 = vsub.f32 %v1874, %v3213
  %v3215 = vand.u32 %v3214, 4294901760
  %3216 = vmatpush.msra.mxu0 %v3215
  %v3217 = vand.u32 %v1873, 4294901760
  %v3218 = vsub.f32 %v1873, %v3217
  %v3219 = vand.u32 %v3218, 4294901760
  %3220 = vmatpush.msra.mxu0 %v3219
  %v3221 = vand.u32 %v1872, 4294901760
  %v3222 = vsub.f32 %v1872, %v3221
  %v3223 = vand.u32 %v3222, 4294901760
  %3224 = vmatpush.msra.mxu0 %v3223
  %v3225 = vand.u32 %v1871, 4294901760
  %v3226 = vsub.f32 %v1871, %v3225
  %v3227 = vand.u32 %v3226, 4294901760
  %3228 = vmatpush.msra.mxu0 %v3227
  %v3229 = vand.u32 %v1821, 4294901760
  %3230 = vmatmul.f32.gmra.mxu0 %v3229
  %v3231 = vpop.f32.mrf.mxu0
  %v3232 = vadd.f32 %v3163, %v3231
  %3233 = vdwg.mxu0
  %v3234 = vand.u32 %v1886, 4294901760
  %3235 = vmatpush.msra.mxu0 %v3234
  %v3236 = vand.u32 %v1885, 4294901760
  %3237 = vmatpush.msra.mxu0 %v3236
  %v3238 = vand.u32 %v1884, 4294901760
  %3239 = vmatpush.msra.mxu0 %v3238
  %v3240 = vand.u32 %v1883, 4294901760
  %3241 = vmatpush.msra.mxu0 %v3240
  %v3242 = vand.u32 %v1882, 4294901760
  %3243 = vmatpush.msra.mxu0 %v3242
  %v3244 = vand.u32 %v1881, 4294901760
  %3245 = vmatpush.msra.mxu0 %v3244
  %v3246 = vand.u32 %v1880, 4294901760
  %3247 = vmatpush.msra.mxu0 %v3246
  %v3248 = vand.u32 %v1879, 4294901760
  %3249 = vmatpush.msra.mxu0 %v3248
  %v3250 = vand.u32 %v1878, 4294901760
  %3251 = vmatpush.msra.mxu0 %v3250
  %v3252 = vand.u32 %v1877, 4294901760
  %3253 = vmatpush.msra.mxu0 %v3252
  %v3254 = vand.u32 %v1876, 4294901760
  %3255 = vmatpush.msra.mxu0 %v3254
  %v3256 = vand.u32 %v1875, 4294901760
  %3257 = vmatpush.msra.mxu0 %v3256
  %v3258 = vand.u32 %v1874, 4294901760
  %3259 = vmatpush.msra.mxu0 %v3258
  %v3260 = vand.u32 %v1873, 4294901760
  %3261 = vmatpush.msra.mxu0 %v3260
  %v3262 = vand.u32 %v1872, 4294901760
  %3263 = vmatpush.msra.mxu0 %v3262
  %v3264 = vand.u32 %v1871, 4294901760
  %3265 = vmatpush.msra.mxu0 %v3264
  %v3266 = vand.u32 %v1821, 4294901760
  %3267 = vmatmul.f32.gmra.mxu0 %v3266
  %v3268 = vpop.f32.mrf.mxu0
  %v3269 = vadd.f32 %v3232, %v3268
  %3270 = vdwg.mxu0
  %v3271 = vand.u32 %v1902, 4294901760
  %3272 = vmatpush.msra.mxu0 %v3271
  %v3273 = vand.u32 %v1901, 4294901760
  %3274 = vmatpush.msra.mxu0 %v3273
  %v3275 = vand.u32 %v1900, 4294901760
  %3276 = vmatpush.msra.mxu0 %v3275
  %v3277 = vand.u32 %v1899, 4294901760
  %3278 = vmatpush.msra.mxu0 %v3277
  %v3279 = vand.u32 %v1898, 4294901760
  %3280 = vmatpush.msra.mxu0 %v3279
  %v3281 = vand.u32 %v1897, 4294901760
  %3282 = vmatpush.msra.mxu0 %v3281
  %v3283 = vand.u32 %v1896, 4294901760
  %3284 = vmatpush.msra.mxu0 %v3283
  %v3285 = vand.u32 %v1895, 4294901760
  %3286 = vmatpush.msra.mxu0 %v3285
  %v3287 = vand.u32 %v1894, 4294901760
  %3288 = vmatpush.msra.mxu0 %v3287
  %v3289 = vand.u32 %v1893, 4294901760
  %3290 = vmatpush.msra.mxu0 %v3289
  %v3291 = vand.u32 %v1892, 4294901760
  %3292 = vmatpush.msra.mxu0 %v3291
  %v3293 = vand.u32 %v1891, 4294901760
  %3294 = vmatpush.msra.mxu0 %v3293
  %v3295 = vand.u32 %v1890, 4294901760
  %3296 = vmatpush.msra.mxu0 %v3295
  %v3297 = vand.u32 %v1889, 4294901760
  %3298 = vmatpush.msra.mxu0 %v3297
  %v3299 = vand.u32 %v1888, 4294901760
  %3300 = vmatpush.msra.mxu0 %v3299
  %v3301 = vand.u32 %v1887, 4294901760
  %3302 = vmatpush.msra.mxu0 %v3301
  %v3303 = vand.u32 %v1822, 4294901760
  %v3304 = vsub.f32 %v1822, %v3303
  %v3305 = vand.u32 %v3304, 4294901760
  %v3306 = vsub.f32 %v3304, %v3305
  %v3307 = vand.u32 %v3306, 4294901760
  %3308 = vmatmul.f32.gmra.mxu0 %v3307
  %v3309 = vpop.f32.mrf.mxu0
  %v3310 = vadd.f32 %v3269, %v3309
  %3311 = vdwg.mxu0
  %v3312 = vand.u32 %v1902, 4294901760
  %v3313 = vsub.f32 %v1902, %v3312
  %v3314 = vand.u32 %v3313, 4294901760
  %v3315 = vsub.f32 %v3313, %v3314
  %v3316 = vand.u32 %v3315, 4294901760
  %3317 = vmatpush.msra.mxu0 %v3316
  %v3318 = vand.u32 %v1901, 4294901760
  %v3319 = vsub.f32 %v1901, %v3318
  %v3320 = vand.u32 %v3319, 4294901760
  %v3321 = vsub.f32 %v3319, %v3320
  %v3322 = vand.u32 %v3321, 4294901760
  %3323 = vmatpush.msra.mxu0 %v3322
  %v3324 = vand.u32 %v1900, 4294901760
  %v3325 = vsub.f32 %v1900, %v3324
  %v3326 = vand.u32 %v3325, 4294901760
  %v3327 = vsub.f32 %v3325, %v3326
  %v3328 = vand.u32 %v3327, 4294901760
  %3329 = vmatpush.msra.mxu0 %v3328
  %v3330 = vand.u32 %v1899, 4294901760
  %v3331 = vsub.f32 %v1899, %v3330
  %v3332 = vand.u32 %v3331, 4294901760
  %v3333 = vsub.f32 %v3331, %v3332
  %v3334 = vand.u32 %v3333, 4294901760
  %3335 = vmatpush.msra.mxu0 %v3334
  %v3336 = vand.u32 %v1898, 4294901760
  %v3337 = vsub.f32 %v1898, %v3336
  %v3338 = vand.u32 %v3337, 4294901760
  %v3339 = vsub.f32 %v3337, %v3338
  %v3340 = vand.u32 %v3339, 4294901760
  %3341 = vmatpush.msra.mxu0 %v3340
  %v3342 = vand.u32 %v1897, 4294901760
  %v3343 = vsub.f32 %v1897, %v3342
  %v3344 = vand.u32 %v3343, 4294901760
  %v3345 = vsub.f32 %v3343, %v3344
  %v3346 = vand.u32 %v3345, 4294901760
  %3347 = vmatpush.msra.mxu0 %v3346
  %v3348 = vand.u32 %v1896, 4294901760
  %v3349 = vsub.f32 %v1896, %v3348
  %v3350 = vand.u32 %v3349, 4294901760
  %v3351 = vsub.f32 %v3349, %v3350
  %v3352 = vand.u32 %v3351, 4294901760
  %3353 = vmatpush.msra.mxu0 %v3352
  %v3354 = vand.u32 %v1895, 4294901760
  %v3355 = vsub.f32 %v1895, %v3354
  %v3356 = vand.u32 %v3355, 4294901760
  %v3357 = vsub.f32 %v3355, %v3356
  %v3358 = vand.u32 %v3357, 4294901760
  %3359 = vmatpush.msra.mxu0 %v3358
  %v3360 = vand.u32 %v1894, 4294901760
  %v3361 = vsub.f32 %v1894, %v3360
  %v3362 = vand.u32 %v3361, 4294901760
  %v3363 = vsub.f32 %v3361, %v3362
  %v3364 = vand.u32 %v3363, 4294901760
  %3365 = vmatpush.msra.mxu0 %v3364
  %v3366 = vand.u32 %v1893, 4294901760
  %v3367 = vsub.f32 %v1893, %v3366
  %v3368 = vand.u32 %v3367, 4294901760
  %v3369 = vsub.f32 %v3367, %v3368
  %v3370 = vand.u32 %v3369, 4294901760
  %3371 = vmatpush.msra.mxu0 %v3370
  %v3372 = vand.u32 %v1892, 4294901760
  %v3373 = vsub.f32 %v1892, %v3372
  %v3374 = vand.u32 %v3373, 4294901760
  %v3375 = vsub.f32 %v3373, %v3374
  %v3376 = vand.u32 %v3375, 4294901760
  %3377 = vmatpush.msra.mxu0 %v3376
  %v3378 = vand.u32 %v1891, 4294901760
  %v3379 = vsub.f32 %v1891, %v3378
  %v3380 = vand.u32 %v3379, 4294901760
  %v3381 = vsub.f32 %v3379, %v3380
  %v3382 = vand.u32 %v3381, 4294901760
  %3383 = vmatpush.msra.mxu0 %v3382
  %v3384 = vand.u32 %v1890, 4294901760
  %v3385 = vsub.f32 %v1890, %v3384
  %v3386 = vand.u32 %v3385, 4294901760
  %v3387 = vsub.f32 %v3385, %v3386
  %v3388 = vand.u32 %v3387, 4294901760
  %3389 = vmatpush.msra.mxu0 %v3388
  %v3390 = vand.u32 %v1889, 4294901760
  %v3391 = vsub.f32 %v1889, %v3390
  %v3392 = vand.u32 %v3391, 4294901760
  %v3393 = vsub.f32 %v3391, %v3392
  %v3394 = vand.u32 %v3393, 4294901760
  %3395 = vmatpush.msra.mxu0 %v3394
  %v3396 = vand.u32 %v1888, 4294901760
  %v3397 = vsub.f32 %v1888, %v3396
  %v3398 = vand.u32 %v3397, 4294901760
  %v3399 = vsub.f32 %v3397, %v3398
  %v3400 = vand.u32 %v3399, 4294901760
  %3401 = vmatpush.msra.mxu0 %v3400
  %v3402 = vand.u32 %v1887, 4294901760
  %v3403 = vsub.f32 %v1887, %v3402
  %v3404 = vand.u32 %v3403, 4294901760
  %v3405 = vsub.f32 %v3403, %v3404
  %v3406 = vand.u32 %v3405, 4294901760
  %3407 = vmatpush.msra.mxu0 %v3406
  %v3408 = vand.u32 %v1822, 4294901760
  %3409 = vmatmul.f32.gmra.mxu0 %v3408
  %v3410 = vpop.f32.mrf.mxu0
  %v3411 = vadd.f32 %v3310, %v3410
  %3412 = vdwg.mxu0
  %v3413 = vand.u32 %v1902, 4294901760
  %v3414 = vsub.f32 %v1902, %v3413
  %3415 = vmatpush.msra.mxu0 %v3414
  %v3416 = vand.u32 %v1901, 4294901760
  %v3417 = vsub.f32 %v1901, %v3416
  %3418 = vmatpush.msra.mxu0 %v3417
  %v3419 = vand.u32 %v1900, 4294901760
  %v3420 = vsub.f32 %v1900, %v3419
  %3421 = vmatpush.msra.mxu0 %v3420
  %v3422 = vand.u32 %v1899, 4294901760
  %v3423 = vsub.f32 %v1899, %v3422
  %3424 = vmatpush.msra.mxu0 %v3423
  %v3425 = vand.u32 %v1898, 4294901760
  %v3426 = vsub.f32 %v1898, %v3425
  %3427 = vmatpush.msra.mxu0 %v3426
  %v3428 = vand.u32 %v1897, 4294901760
  %v3429 = vsub.f32 %v1897, %v3428
  %3430 = vmatpush.msra.mxu0 %v3429
  %v3431 = vand.u32 %v1896, 4294901760
  %v3432 = vsub.f32 %v1896, %v3431
  %3433 = vmatpush.msra.mxu0 %v3432
  %v3434 = vand.u32 %v1895, 4294901760
  %v3435 = vsub.f32 %v1895, %v3434
  %3436 = vmatpush.msra.mxu0 %v3435
  %v3437 = vand.u32 %v1894, 4294901760
  %v3438 = vsub.f32 %v1894, %v3437
  %3439 = vmatpush.msra.mxu0 %v3438
  %v3440 = vand.u32 %v1893, 4294901760
  %v3441 = vsub.f32 %v1893, %v3440
  %3442 = vmatpush.msra.mxu0 %v3441
  %v3443 = vand.u32 %v1892, 4294901760
  %v3444 = vsub.f32 %v1892, %v3443
  %3445 = vmatpush.msra.mxu0 %v3444
  %v3446 = vand.u32 %v1891, 4294901760
  %v3447 = vsub.f32 %v1891, %v3446
  %3448 = vmatpush.msra.mxu0 %v3447
  %v3449 = vand.u32 %v1890, 4294901760
  %v3450 = vsub.f32 %v1890, %v3449
  %3451 = vmatpush.msra.mxu0 %v3450
  %v3452 = vand.u32 %v1889, 4294901760
  %v3453 = vsub.f32 %v1889, %v3452
  %3454 = vmatpush.msra.mxu0 %v3453
  %v3455 = vand.u32 %v1888, 4294901760
  %v3456 = vsub.f32 %v1888, %v3455
  %3457 = vmatpush.msra.mxu0 %v3456
  %v3458 = vand.u32 %v1887, 4294901760
  %v3459 = vsub.f32 %v1887, %v3458
  %3460 = vmatpush.msra.mxu0 %v3459
  %v3461 = vand.u32 %v1822, 4294901760
  %v3462 = vsub.f32 %v1822, %v3461
  %3463 = vmatmul.f32.gmra.mxu0 %v3462
  %v3464 = vpop.f32.mrf.mxu0
  %v3465 = vadd.f32 %v3411, %v3464
  %3466 = vdwg.mxu0
  %v3467 = vand.u32 %v1902, 4294901760
  %3468 = vmatpush.msra.mxu0 %v3467
  %v3469 = vand.u32 %v1901, 4294901760
  %3470 = vmatpush.msra.mxu0 %v3469
  %v3471 = vand.u32 %v1900, 4294901760
  %3472 = vmatpush.msra.mxu0 %v3471
  %v3473 = vand.u32 %v1899, 4294901760
  %3474 = vmatpush.msra.mxu0 %v3473
  %v3475 = vand.u32 %v1898, 4294901760
  %3476 = vmatpush.msra.mxu0 %v3475
  %v3477 = vand.u32 %v1897, 4294901760
  %3478 = vmatpush.msra.mxu0 %v3477
  %v3479 = vand.u32 %v1896, 4294901760
  %3480 = vmatpush.msra.mxu0 %v3479
  %v3481 = vand.u32 %v1895, 4294901760
  %3482 = vmatpush.msra.mxu0 %v3481
  %v3483 = vand.u32 %v1894, 4294901760
  %3484 = vmatpush.msra.mxu0 %v3483
  %v3485 = vand.u32 %v1893, 4294901760
  %3486 = vmatpush.msra.mxu0 %v3485
  %v3487 = vand.u32 %v1892, 4294901760
  %3488 = vmatpush.msra.mxu0 %v3487
  %v3489 = vand.u32 %v1891, 4294901760
  %3490 = vmatpush.msra.mxu0 %v3489
  %v3491 = vand.u32 %v1890, 4294901760
  %3492 = vmatpush.msra.mxu0 %v3491
  %v3493 = vand.u32 %v1889, 4294901760
  %3494 = vmatpush.msra.mxu0 %v3493
  %v3495 = vand.u32 %v1888, 4294901760
  %3496 = vmatpush.msra.mxu0 %v3495
  %v3497 = vand.u32 %v1887, 4294901760
  %3498 = vmatpush.msra.mxu0 %v3497
  %v3499 = vand.u32 %v1822, 4294901760
  %v3500 = vsub.f32 %v1822, %v3499
  %v3501 = vand.u32 %v3500, 4294901760
  %3502 = vmatmul.f32.gmra.mxu0 %v3501
  %v3503 = vpop.f32.mrf.mxu0
  %v3504 = vadd.f32 %v3465, %v3503
  %3505 = vdwg.mxu0
  %v3506 = vand.u32 %v1902, 4294901760
  %v3507 = vsub.f32 %v1902, %v3506
  %v3508 = vand.u32 %v3507, 4294901760
  %3509 = vmatpush.msra.mxu0 %v3508
  %v3510 = vand.u32 %v1901, 4294901760
  %v3511 = vsub.f32 %v1901, %v3510
  %v3512 = vand.u32 %v3511, 4294901760
  %3513 = vmatpush.msra.mxu0 %v3512
  %v3514 = vand.u32 %v1900, 4294901760
  %v3515 = vsub.f32 %v1900, %v3514
  %v3516 = vand.u32 %v3515, 4294901760
  %3517 = vmatpush.msra.mxu0 %v3516
  %v3518 = vand.u32 %v1899, 4294901760
  %v3519 = vsub.f32 %v1899, %v3518
  %v3520 = vand.u32 %v3519, 4294901760
  %3521 = vmatpush.msra.mxu0 %v3520
  %v3522 = vand.u32 %v1898, 4294901760
  %v3523 = vsub.f32 %v1898, %v3522
  %v3524 = vand.u32 %v3523, 4294901760
  %3525 = vmatpush.msra.mxu0 %v3524
  %v3526 = vand.u32 %v1897, 4294901760
  %v3527 = vsub.f32 %v1897, %v3526
  %v3528 = vand.u32 %v3527, 4294901760
  %3529 = vmatpush.msra.mxu0 %v3528
  %v3530 = vand.u32 %v1896, 4294901760
  %v3531 = vsub.f32 %v1896, %v3530
  %v3532 = vand.u32 %v3531, 4294901760
  %3533 = vmatpush.msra.mxu0 %v3532
  %v3534 = vand.u32 %v1895, 4294901760
  %v3535 = vsub.f32 %v1895, %v3534
  %v3536 = vand.u32 %v3535, 4294901760
  %3537 = vmatpush.msra.mxu0 %v3536
  %v3538 = vand.u32 %v1894, 4294901760
  %v3539 = vsub.f32 %v1894, %v3538
  %v3540 = vand.u32 %v3539, 4294901760
  %3541 = vmatpush.msra.mxu0 %v3540
  %v3542 = vand.u32 %v1893, 4294901760
  %v3543 = vsub.f32 %v1893, %v3542
  %v3544 = vand.u32 %v3543, 4294901760
  %3545 = vmatpush.msra.mxu0 %v3544
  %v3546 = vand.u32 %v1892, 4294901760
  %v3547 = vsub.f32 %v1892, %v3546
  %v3548 = vand.u32 %v3547, 4294901760
  %3549 = vmatpush.msra.mxu0 %v3548
  %v3550 = vand.u32 %v1891, 4294901760
  %v3551 = vsub.f32 %v1891, %v3550
  %v3552 = vand.u32 %v3551, 4294901760
  %3553 = vmatpush.msra.mxu0 %v3552
  %v3554 = vand.u32 %v1890, 4294901760
  %v3555 = vsub.f32 %v1890, %v3554
  %v3556 = vand.u32 %v3555, 4294901760
  %3557 = vmatpush.msra.mxu0 %v3556
  %v3558 = vand.u32 %v1889, 4294901760
  %v3559 = vsub.f32 %v1889, %v3558
  %v3560 = vand.u32 %v3559, 4294901760
  %3561 = vmatpush.msra.mxu0 %v3560
  %v3562 = vand.u32 %v1888, 4294901760
  %v3563 = vsub.f32 %v1888, %v3562
  %v3564 = vand.u32 %v3563, 4294901760
  %3565 = vmatpush.msra.mxu0 %v3564
  %v3566 = vand.u32 %v1887, 4294901760
  %v3567 = vsub.f32 %v1887, %v3566
  %v3568 = vand.u32 %v3567, 4294901760
  %3569 = vmatpush.msra.mxu0 %v3568
  %v3570 = vand.u32 %v1822, 4294901760
  %3571 = vmatmul.f32.gmra.mxu0 %v3570
  %v3572 = vpop.f32.mrf.mxu0
  %v3573 = vadd.f32 %v3504, %v3572
  %3574 = vdwg.mxu0
  %v3575 = vand.u32 %v1902, 4294901760
  %3576 = vmatpush.msra.mxu0 %v3575
  %v3577 = vand.u32 %v1901, 4294901760
  %3578 = vmatpush.msra.mxu0 %v3577
  %v3579 = vand.u32 %v1900, 4294901760
  %3580 = vmatpush.msra.mxu0 %v3579
  %v3581 = vand.u32 %v1899, 4294901760
  %3582 = vmatpush.msra.mxu0 %v3581
  %v3583 = vand.u32 %v1898, 4294901760
  %3584 = vmatpush.msra.mxu0 %v3583
  %v3585 = vand.u32 %v1897, 4294901760
  %3586 = vmatpush.msra.mxu0 %v3585
  %v3587 = vand.u32 %v1896, 4294901760
  %3588 = vmatpush.msra.mxu0 %v3587
  %v3589 = vand.u32 %v1895, 4294901760
  %3590 = vmatpush.msra.mxu0 %v3589
  %v3591 = vand.u32 %v1894, 4294901760
  %3592 = vmatpush.msra.mxu0 %v3591
  %v3593 = vand.u32 %v1893, 4294901760
  %3594 = vmatpush.msra.mxu0 %v3593
  %v3595 = vand.u32 %v1892, 4294901760
  %3596 = vmatpush.msra.mxu0 %v3595
  %v3597 = vand.u32 %v1891, 4294901760
  %3598 = vmatpush.msra.mxu0 %v3597
  %v3599 = vand.u32 %v1890, 4294901760
  %3600 = vmatpush.msra.mxu0 %v3599
  %v3601 = vand.u32 %v1889, 4294901760
  %3602 = vmatpush.msra.mxu0 %v3601
  %v3603 = vand.u32 %v1888, 4294901760
  %3604 = vmatpush.msra.mxu0 %v3603
  %v3605 = vand.u32 %v1887, 4294901760
  %3606 = vmatpush.msra.mxu0 %v3605
  %v3607 = vand.u32 %v1822, 4294901760
  %3608 = vmatmul.f32.gmra.mxu0 %v3607
  %v3609 = vpop.f32.mrf.mxu0
  %v3610 = vadd.f32 %v3573, %v3609
  %3611 = vdwg.mxu0
  %3612 = vst [vmem:[%s5] sm:$0xff] %v3610
  // Predicated region
  $region22: #{snn_forward.1} parent=0 // pred_check
    _
  $region23: #{snn_forward.1} parent=0 // pred_check_branch
    %3614 = sbr.rel (0) target = $region25
  $region24: #{snn_forward.1} parent=0 // pred_region
    _
  $region25: #{snn_forward.1} parent=0 // pred_fallthru
    _
  // Predicated region
  $region26: #{snn_forward.1} parent=0 // pred_check
    _
  $region27: #{snn_forward.1} parent=0 // pred_check_branch
    %3616 = sbr.rel (0) target = $region29
  $region28: #{snn_forward.1} parent=0 // pred_region
    _
  $region29: #{snn_forward.1} parent=0 // pred_fallthru
    _

</llo_original>
